<compile_context>
chip_gen: v5e
topology: v5e:2x2
jax: 0.10.0
libtpu: 0.0.40
codegen_flags: <defaults>
</compile_context>

<pallas_src>
import jax
import jax.numpy as jnp
import numpy as np
from jax import lax
from jax.experimental import pallas as pl
from jax.experimental.pallas import tpu as pltpu


# Left halo of the conv2 scratch is padded to 8 columns so that the interior
# store lands on a sublane-aligned offset; the nine patch reads then use
# column offsets _WPAD_L-1 .. _WPAD_L+1.
_WPAD_L = 8


def bottleneck_kernel(x_ref, w1_ref, b1_ref, w2_ref, b2_ref, w3_ref, b3_ref,
                      out_ref, hpad_ref, patch_ref):
    _, H, W, Cin = x_ref.shape
    Cw = w1_ref.shape[1]
    Cout = w3_ref.shape[1]

    # conv2 halo buffer: the interior is fully re-written every grid step,
    # zeroing keeps the border (the conv padding) at zero.
    hpad_ref[...] = jnp.zeros(hpad_ref.shape, hpad_ref.dtype)

    # ---- conv1 (1x1, BN1 scale pre-folded into w1) + bias + ReLU ----------
    xb = x_ref[0].astype(jnp.bfloat16).reshape(H * W, Cin)
    h = jnp.dot(xb, w1_ref[...], preferred_element_type=jnp.float32)
    h = jnp.maximum(h + b1_ref[...], 0.0)

    # ---- conv2 (3x3, stride 1, SAME) as ONE im2col matmul (K = 9*Cw) ------
    # Write h into the zero-padded halo scratch (sublane-aligned interior
    # store), then gather the nine shifted windows into a lane-contiguous
    # bf16 patch matrix and do a single MXU matmul.
    hpad_ref[1:H + 1, _WPAD_L:_WPAD_L + W, :] = h.reshape(H, W, Cw)
    for ky in range(3):
        for kx in range(3):
            k = 3 * ky + kx
            c0 = _WPAD_L - 1 + kx
            patch = hpad_ref[ky:ky + H, c0:c0 + W, :]
            patch_ref[:, :, k * Cw:(k + 1) * Cw] = patch.astype(jnp.bfloat16)
    h2 = jnp.dot(patch_ref[...].reshape(H * W, 9 * Cw), w2_ref[...],
                 preferred_element_type=jnp.float32)
    h2 = jnp.maximum(h2 + b2_ref[...], 0.0)

    # ---- conv3 (1x1, BN3 scale pre-folded) + bias --------------------------
    h3 = jnp.dot(h2.astype(jnp.bfloat16), w3_ref[...],
                 preferred_element_type=jnp.float32)
    h3 = h3 + b3_ref[...]

    # ---- residual add + ReLU (re-read x; no long-lived f32 copy of x) -----
    res = x_ref[0].astype(jnp.float32).reshape(H * W, Cin)
    out = jnp.maximum(h3 + res, 0.0)
    out_ref[0] = out.reshape(H, W, Cout).astype(out_ref.dtype)


def _fold_bn_into_conv(w, gamma, beta, mean, var, eps=1e-5):
    """Fold inference-mode BatchNorm into the preceding bias-free conv.

    `w` must have its output-channel axis last.  Returns the scaled weight in
    bf16 (MXU input dtype) and an f32 (1, C) bias.
    """
    scale = gamma / jnp.sqrt(var + eps)
    bias = beta - mean * scale
    return (w * scale).astype(jnp.bfloat16), bias.reshape(1, -1).astype(jnp.float32)


@jax.jit
def bottleneck_forward(x, w1f, b1, w2f, b2, w3f, b3):
    N, H, W, Cin = x.shape
    Cw = w1f.shape[1]
    Cout = w3f.shape[1]
    if Cin != Cout:
        raise ValueError("identity shortcut requires inplanes == 4 * planes")

    flops = 2 * N * H * W * (Cin * Cw + 9 * Cw * Cw + Cw * Cout)
    bytes_accessed = (
        x.size * x.dtype.itemsize                       # input
        + N * H * W * Cout * x.dtype.itemsize           # output
        + (w1f.size + w2f.size + w3f.size) * 2          # bf16 weights
        + (b1.size + b2.size + b3.size) * 4)            # f32 biases

    grid_spec = pltpu.PrefetchScalarGridSpec(
        num_scalar_prefetch=0,
        grid=(N,),                                      # one image per grid step
        in_specs=[
            pl.BlockSpec((1, H, W, Cin), lambda n: (n, 0, 0, 0)),
            # weights / biases: constant index maps -> DMA'd into VMEM once
            pl.BlockSpec((Cin, Cw), lambda n: (0, 0)),
            pl.BlockSpec((1, Cw), lambda n: (0, 0)),
            pl.BlockSpec((9 * Cw, Cw), lambda n: (0, 0)),
            pl.BlockSpec((1, Cw), lambda n: (0, 0)),
            pl.BlockSpec((Cw, Cout), lambda n: (0, 0)),
            pl.BlockSpec((1, Cout), lambda n: (0, 0)),
        ],
        out_specs=pl.BlockSpec((1, H, W, Cout), lambda n: (n, 0, 0, 0)),
        scratch_shapes=[
            pltpu.VMEM((H + 2, _WPAD_L + W + 2, Cw), jnp.float32),   # conv2 halo
            pltpu.VMEM((H, W, 9 * Cw), jnp.bfloat16),                # im2col patches
        ],
    )
    return pl.pallas_call(
        bottleneck_kernel,
        out_shape=jax.ShapeDtypeStruct((N, H, W, Cout), x.dtype),
        grid_spec=grid_spec,
        compiler_params=pltpu.CompilerParams(
            dimension_semantics=("parallel",),           # shard batch across TCs
            vmem_limit_bytes=48 * 1024 * 1024,
        ),
        cost_estimate=pl.CostEstimate(
            flops=flops, transcendentals=0, bytes_accessed=bytes_accessed),
    )(x, w1f, b1, w2f, b2, w3f, b3)


def reference_forward(x, w1, w2, w3, bn1, bn2, bn3, eps=1e-5):
    """Plain-JAX f32 reference of the PyTorch Bottleneck forward (NHWC)."""
    dn = ('NHWC', 'HWIO', 'NHWC')
    hp = lax.Precision.HIGHEST

    def bn(h, params):
        gamma, beta, mean, var = params
        return (h - mean) * (gamma / jnp.sqrt(var + eps)) + beta

    h = lax.conv_general_dilated(x, w1.reshape(1, 1, *w1.shape), (1, 1), 'VALID',
                                 dimension_numbers=dn, precision=hp)
    h = jnp.maximum(bn(h, bn1), 0.0)
    h = lax.conv_general_dilated(h, w2, (1, 1), 'SAME',
                                 dimension_numbers=dn, precision=hp)
    h = jnp.maximum(bn(h, bn2), 0.0)
    h = lax.conv_general_dilated(h, w3.reshape(1, 1, *w3.shape), (1, 1), 'VALID',
                                 dimension_numbers=dn, precision=hp)
    h = bn(h, bn3)
    return jnp.maximum(h + x, 0.0)


if __name__ == "__main__":
    # Bottleneck(inplanes=512, planes=128): width = 128, out = 512 (= inplanes,
    # so the identity shortcut applies; stride=1, groups=1, dilation=1).
    # A real ResNet config: keeps the channel/lane dimension 128-dense.
    N, H, W = 2, 16, 16
    inplanes, planes = 512, 128
    width = planes                  # base_width=64, groups=1
    out_ch = planes * 4             # expansion = 4

    key = jax.random.PRNGKey(0)
    ks = jax.random.split(key, 8)

    # NHWC input.
    x = jax.random.normal(ks[0], (N, H, W, inplanes), jnp.float32)

    # conv weights with the output-channel axis last (1x1 as matmul weights,
    # 3x3 as HWIO), fan-in scaled like PyTorch's default init.
    w1 = jax.random.normal(ks[1], (inplanes, width), jnp.float32) / np.sqrt(inplanes)
    w2 = jax.random.normal(ks[2], (3, 3, width, width), jnp.float32) / np.sqrt(9 * width)
    w3 = jax.random.normal(ks[3], (width, out_ch), jnp.float32) / np.sqrt(width)

    # deterministic BatchNorm parameters (gamma, beta, running_mean, running_var)
    def bn_params(k, c):
        k1, k2, k3, k4 = jax.random.split(k, 4)
        gamma = 1.0 + 0.1 * jax.random.normal(k1, (c,), jnp.float32)
        beta = 0.1 * jax.random.normal(k2, (c,), jnp.float32)
        mean = 0.1 * jax.random.normal(k3, (c,), jnp.float32)
        var = 0.5 + jnp.abs(jax.random.normal(k4, (c,), jnp.float32))
        return gamma, beta, mean, var

    bn1 = bn_params(ks[4], width)
    bn2 = bn_params(ks[5], width)
    bn3 = bn_params(ks[6], out_ch)

    w1f, b1 = _fold_bn_into_conv(w1, *bn1)
    w2f, b2 = _fold_bn_into_conv(w2, *bn2)
    w2f = w2f.reshape(9 * width, width)   # (ky, kx, cin) flattened -> K = 9*width
    w3f, b3 = _fold_bn_into_conv(w3, *bn3)

    out = jax.block_until_ready(bottleneck_forward(x, w1f, b1, w2f, b2, w3f, b3))
    ref = jax.block_until_ready(reference_forward(x, w1, w2, w3, bn1, bn2, bn3))

    # bf16 matmuls with f32 accumulation vs. an f32 reference: loosened tolerance.
    np.testing.assert_allclose(np.asarray(out), np.asarray(ref), rtol=3e-2, atol=3e-2)
    print("KERNEL_OK")
</pallas_src>

<mosaic_0001>
module attributes {stable_mosaic.version = 11 : i64} {
  func.func @bottleneck_kernel(%arg0: i32, %arg1: memref<1x16x16x512xf32, #tpu.memory_space<vmem>>, %arg2: memref<512x128xbf16, #tpu.memory_space<vmem>>, %arg3: memref<1x128xf32, #tpu.memory_space<vmem>>, %arg4: memref<1152x128xbf16, #tpu.memory_space<vmem>>, %arg5: memref<1x128xf32, #tpu.memory_space<vmem>>, %arg6: memref<128x512xbf16, #tpu.memory_space<vmem>>, %arg7: memref<1x512xf32, #tpu.memory_space<vmem>>, %arg8: memref<1x16x16x512xf32, #tpu.memory_space<vmem>>, %arg9: memref<18x26x128xf32, #tpu.memory_space<vmem>>, %arg10: memref<16x16x1152xbf16, #tpu.memory_space<vmem>>) attributes {dimension_semantics = [#tpu.dimension_semantics<parallel>], iteration_bounds = array<i64: 2>, scalar_prefetch = 0 : i64, scratch_operands = 2 : i64, tpu.core_type = #tpu.core_type<tc>, window_params = [{transform_indices = @transform_0, window_bounds = array<i64: 1, 16, 16, 512>}, {pipeline_mode = #tpu.pipeline_mode<synchronous>, transform_indices = @transform_1, window_bounds = array<i64: 512, 128>}, {pipeline_mode = #tpu.pipeline_mode<synchronous>, transform_indices = @transform_2, window_bounds = array<i64: 1, 128>}, {pipeline_mode = #tpu.pipeline_mode<synchronous>, transform_indices = @transform_3, window_bounds = array<i64: 1152, 128>}, {pipeline_mode = #tpu.pipeline_mode<synchronous>, transform_indices = @transform_4, window_bounds = array<i64: 1, 128>}, {pipeline_mode = #tpu.pipeline_mode<synchronous>, transform_indices = @transform_5, window_bounds = array<i64: 128, 512>}, {pipeline_mode = #tpu.pipeline_mode<synchronous>, transform_indices = @transform_6, window_bounds = array<i64: 1, 512>}, {transform_indices = @transform_7, window_bounds = array<i64: 1, 16, 16, 512>}]} {
    %cst = arith.constant 0.000000e+00 : f32
    %0 = vector.broadcast %cst : f32 to vector<18x26x128xf32>
    %c0 = arith.constant 0 : index
    %c0_0 = arith.constant 0 : index
    %c0_1 = arith.constant 0 : index
    %1 = vector.load %arg9[%c0, %c0_0, %c0_1] : memref<18x26x128xf32, #tpu.memory_space<vmem>>, vector<18x26x128xf32>
    tpu.vector_store %arg9[%c0, %c0_0, %c0_1], %0 {strides = array<i32>} : memref<18x26x128xf32, #tpu.memory_space<vmem>>, vector<18x26x128xf32>,
    %c0_2 = arith.constant 0 : index
    %c0_3 = arith.constant 0 : index
    %c0_4 = arith.constant 0 : index
    %c0_5 = arith.constant 0 : index
    %2 = vector.load %arg1[%c0_2, %c0_3, %c0_4, %c0_5] : memref<1x16x16x512xf32, #tpu.memory_space<vmem>>, vector<1x16x16x512xf32>
    %3 = vector.shape_cast %2 : vector<1x16x16x512xf32> to vector<16x16x512xf32>
    %4 = arith.truncf %3 : vector<16x16x512xf32> to vector<16x16x512xbf16>
    %5 = vector.shape_cast %4 : vector<16x16x512xbf16> to vector<256x512xbf16>
    %c0_6 = arith.constant 0 : index
    %c0_7 = arith.constant 0 : index
    %6 = vector.load %arg2[%c0_6, %c0_7] : memref<512x128xbf16, #tpu.memory_space<vmem>>, vector<512x128xbf16>
    %cst_8 = arith.constant dense<0.000000e+00> : vector<256x128xf32>
    %7 = tpu.matmul %5, %6, %cst_8 {dimension_numbers = #tpu.dot_dimension_numbers<[1], [0], [0], [1], [0, 0, 1, 1], [], []>} : vector<256x512xbf16>, vector<512x128xbf16>, vector<256x128xf32> -> vector<256x128xf32>
    %c0_9 = arith.constant 0 : index
    %c0_10 = arith.constant 0 : index
    %8 = vector.load %arg3[%c0_9, %c0_10] : memref<1x128xf32, #tpu.memory_space<vmem>>, vector<1x128xf32>
    %9 = vector.broadcast %8 : vector<1x128xf32> to vector<256x128xf32>
    %10 = arith.addf %7, %9 : vector<256x128xf32>
    %cst_11 = arith.constant 0.000000e+00 : f32
    %11 = vector.broadcast %cst_11 : f32 to vector<256x128xf32>
    %12 = arith.maximumf %10, %11 : vector<256x128xf32>
    %13 = vector.shape_cast %12 : vector<256x128xf32> to vector<16x16x128xf32>
    %c1 = arith.constant 1 : index
    %c8 = arith.constant 8 : index
    %c0_12 = arith.constant 0 : index
    %14 = vector.load %arg9[%c1, %c8, %c0_12] : memref<18x26x128xf32, #tpu.memory_space<vmem>>, vector<16x16x128xf32>
    tpu.vector_store %arg9[%c1, %c8, %c0_12], %13 {strides = array<i32>} : memref<18x26x128xf32, #tpu.memory_space<vmem>>, vector<16x16x128xf32>,
    %c0_13 = arith.constant 0 : index
    %c7 = arith.constant 7 : index
    %c0_14 = arith.constant 0 : index
    %15 = vector.load %arg9[%c0_13, %c7, %c0_14] : memref<18x26x128xf32, #tpu.memory_space<vmem>>, vector<16x16x128xf32>
    %16 = arith.truncf %15 : vector<16x16x128xf32> to vector<16x16x128xbf16>
    %c0_15 = arith.constant 0 : index
    %c0_16 = arith.constant 0 : index
    %c0_17 = arith.constant 0 : index
    %17 = vector.load %arg10[%c0_15, %c0_16, %c0_17] : memref<16x16x1152xbf16, #tpu.memory_space<vmem>>, vector<16x16x128xbf16>
    tpu.vector_store %arg10[%c0_15, %c0_16, %c0_17], %16 {strides = array<i32>} : memref<16x16x1152xbf16, #tpu.memory_space<vmem>>, vector<16x16x128xbf16>,
    %c0_18 = arith.constant 0 : index
    %c8_19 = arith.constant 8 : index
    %c0_20 = arith.constant 0 : index
    %18 = vector.load %arg9[%c0_18, %c8_19, %c0_20] : memref<18x26x128xf32, #tpu.memory_space<vmem>>, vector<16x16x128xf32>
    %19 = arith.truncf %18 : vector<16x16x128xf32> to vector<16x16x128xbf16>
    %c0_21 = arith.constant 0 : index
    %c0_22 = arith.constant 0 : index
    %c128 = arith.constant 128 : index
    %20 = vector.load %arg10[%c0_21, %c0_22, %c128] : memref<16x16x1152xbf16, #tpu.memory_space<vmem>>, vector<16x16x128xbf16>
    tpu.vector_store %arg10[%c0_21, %c0_22, %c128], %19 {strides = array<i32>} : memref<16x16x1152xbf16, #tpu.memory_space<vmem>>, vector<16x16x128xbf16>,
    %c0_23 = arith.constant 0 : index
    %c9 = arith.constant 9 : index
    %c0_24 = arith.constant 0 : index
    %21 = vector.load %arg9[%c0_23, %c9, %c0_24] : memref<18x26x128xf32, #tpu.memory_space<vmem>>, vector<16x16x128xf32>
    %22 = arith.truncf %21 : vector<16x16x128xf32> to vector<16x16x128xbf16>
    %c0_25 = arith.constant 0 : index
    %c0_26 = arith.constant 0 : index
    %c256 = arith.constant 256 : index
    %23 = vector.load %arg10[%c0_25, %c0_26, %c256] : memref<16x16x1152xbf16, #tpu.memory_space<vmem>>, vector<16x16x128xbf16>
    tpu.vector_store %arg10[%c0_25, %c0_26, %c256], %22 {strides = array<i32>} : memref<16x16x1152xbf16, #tpu.memory_space<vmem>>, vector<16x16x128xbf16>,
    %c1_27 = arith.constant 1 : index
    %c7_28 = arith.constant 7 : index
    %c0_29 = arith.constant 0 : index
    %24 = vector.load %arg9[%c1_27, %c7_28, %c0_29] : memref<18x26x128xf32, #tpu.memory_space<vmem>>, vector<16x16x128xf32>
    %25 = arith.truncf %24 : vector<16x16x128xf32> to vector<16x16x128xbf16>
    %c0_30 = arith.constant 0 : index
    %c0_31 = arith.constant 0 : index
    %c384 = arith.constant 384 : index
    %26 = vector.load %arg10[%c0_30, %c0_31, %c384] : memref<16x16x1152xbf16, #tpu.memory_space<vmem>>, vector<16x16x128xbf16>
    tpu.vector_store %arg10[%c0_30, %c0_31, %c384], %25 {strides = array<i32>} : memref<16x16x1152xbf16, #tpu.memory_space<vmem>>, vector<16x16x128xbf16>,
    %c1_32 = arith.constant 1 : index
    %c8_33 = arith.constant 8 : index
    %c0_34 = arith.constant 0 : index
    %27 = vector.load %arg9[%c1_32, %c8_33, %c0_34] : memref<18x26x128xf32, #tpu.memory_space<vmem>>, vector<16x16x128xf32>
    %28 = arith.truncf %27 : vector<16x16x128xf32> to vector<16x16x128xbf16>
    %c0_35 = arith.constant 0 : index
    %c0_36 = arith.constant 0 : index
    %c512 = arith.constant 512 : index
    %29 = vector.load %arg10[%c0_35, %c0_36, %c512] : memref<16x16x1152xbf16, #tpu.memory_space<vmem>>, vector<16x16x128xbf16>
    tpu.vector_store %arg10[%c0_35, %c0_36, %c512], %28 {strides = array<i32>} : memref<16x16x1152xbf16, #tpu.memory_space<vmem>>, vector<16x16x128xbf16>,
    %c1_37 = arith.constant 1 : index
    %c9_38 = arith.constant 9 : index
    %c0_39 = arith.constant 0 : index
    %30 = vector.load %arg9[%c1_37, %c9_38, %c0_39] : memref<18x26x128xf32, #tpu.memory_space<vmem>>, vector<16x16x128xf32>
    %31 = arith.truncf %30 : vector<16x16x128xf32> to vector<16x16x128xbf16>
    %c0_40 = arith.constant 0 : index
    %c0_41 = arith.constant 0 : index
    %c640 = arith.constant 640 : index
    %32 = vector.load %arg10[%c0_40, %c0_41, %c640] : memref<16x16x1152xbf16, #tpu.memory_space<vmem>>, vector<16x16x128xbf16>
    tpu.vector_store %arg10[%c0_40, %c0_41, %c640], %31 {strides = array<i32>} : memref<16x16x1152xbf16, #tpu.memory_space<vmem>>, vector<16x16x128xbf16>,
    %c2 = arith.constant 2 : index
    %c7_42 = arith.constant 7 : index
    %c0_43 = arith.constant 0 : index
    %33 = vector.load %arg9[%c2, %c7_42, %c0_43] : memref<18x26x128xf32, #tpu.memory_space<vmem>>, vector<16x16x128xf32>
    %34 = arith.truncf %33 : vector<16x16x128xf32> to vector<16x16x128xbf16>
    %c0_44 = arith.constant 0 : index
    %c0_45 = arith.constant 0 : index
    %c768 = arith.constant 768 : index
    %35 = vector.load %arg10[%c0_44, %c0_45, %c768] : memref<16x16x1152xbf16, #tpu.memory_space<vmem>>, vector<16x16x128xbf16>
    tpu.vector_store %arg10[%c0_44, %c0_45, %c768], %34 {strides = array<i32>} : memref<16x16x1152xbf16, #tpu.memory_space<vmem>>, vector<16x16x128xbf16>,
    %c2_46 = arith.constant 2 : index
    %c8_47 = arith.constant 8 : index
    %c0_48 = arith.constant 0 : index
    %36 = vector.load %arg9[%c2_46, %c8_47, %c0_48] : memref<18x26x128xf32, #tpu.memory_space<vmem>>, vector<16x16x128xf32>
    %37 = arith.truncf %36 : vector<16x16x128xf32> to vector<16x16x128xbf16>
    %c0_49 = arith.constant 0 : index
    %c0_50 = arith.constant 0 : index
    %c896 = arith.constant 896 : index
    %38 = vector.load %arg10[%c0_49, %c0_50, %c896] : memref<16x16x1152xbf16, #tpu.memory_space<vmem>>, vector<16x16x128xbf16>
    tpu.vector_store %arg10[%c0_49, %c0_50, %c896], %37 {strides = array<i32>} : memref<16x16x1152xbf16, #tpu.memory_space<vmem>>, vector<16x16x128xbf16>,
    %c2_51 = arith.constant 2 : index
    %c9_52 = arith.constant 9 : index
    %c0_53 = arith.constant 0 : index
    %39 = vector.load %arg9[%c2_51, %c9_52, %c0_53] : memref<18x26x128xf32, #tpu.memory_space<vmem>>, vector<16x16x128xf32>
    %40 = arith.truncf %39 : vector<16x16x128xf32> to vector<16x16x128xbf16>
    %c0_54 = arith.constant 0 : index
    %c0_55 = arith.constant 0 : index
    %c1024 = arith.constant 1024 : index
    %41 = vector.load %arg10[%c0_54, %c0_55, %c1024] : memref<16x16x1152xbf16, #tpu.memory_space<vmem>>, vector<16x16x128xbf16>
    tpu.vector_store %arg10[%c0_54, %c0_55, %c1024], %40 {strides = array<i32>} : memref<16x16x1152xbf16, #tpu.memory_space<vmem>>, vector<16x16x128xbf16>,
    %c0_56 = arith.constant 0 : index
    %c0_57 = arith.constant 0 : index
    %c0_58 = arith.constant 0 : index
    %42 = vector.load %arg10[%c0_56, %c0_57, %c0_58] : memref<16x16x1152xbf16, #tpu.memory_space<vmem>>, vector<16x16x1152xbf16>
    %43 = vector.shape_cast %42 : vector<16x16x1152xbf16> to vector<256x1152xbf16>
    %c0_59 = arith.constant 0 : index
    %c0_60 = arith.constant 0 : index
    %44 = vector.load %arg4[%c0_59, %c0_60] : memref<1152x128xbf16, #tpu.memory_space<vmem>>, vector<1152x128xbf16>
    %cst_61 = arith.constant dense<0.000000e+00> : vector<256x128xf32>
    %45 = tpu.matmul %43, %44, %cst_61 {dimension_numbers = #tpu.dot_dimension_numbers<[1], [0], [0], [1], [0, 0, 1, 1], [], []>} : vector<256x1152xbf16>, vector<1152x128xbf16>, vector<256x128xf32> -> vector<256x128xf32>
    %c0_62 = arith.constant 0 : index
    %c0_63 = arith.constant 0 : index
    %46 = vector.load %arg5[%c0_62, %c0_63] : memref<1x128xf32, #tpu.memory_space<vmem>>, vector<1x128xf32>
    %47 = vector.broadcast %46 : vector<1x128xf32> to vector<256x128xf32>
    %48 = arith.addf %45, %47 : vector<256x128xf32>
    %cst_64 = arith.constant 0.000000e+00 : f32
    %49 = vector.broadcast %cst_64 : f32 to vector<256x128xf32>
    %50 = arith.maximumf %48, %49 : vector<256x128xf32>
    %51 = arith.truncf %50 : vector<256x128xf32> to vector<256x128xbf16>
    %c0_65 = arith.constant 0 : index
    %c0_66 = arith.constant 0 : index
    %52 = vector.load %arg6[%c0_65, %c0_66] : memref<128x512xbf16, #tpu.memory_space<vmem>>, vector<128x512xbf16>
    %cst_67 = arith.constant dense<0.000000e+00> : vector<256x512xf32>
    %53 = tpu.matmul %51, %52, %cst_67 {dimension_numbers = #tpu.dot_dimension_numbers<[1], [0], [0], [1], [0, 0, 1, 1], [], []>} : vector<256x128xbf16>, vector<128x512xbf16>, vector<256x512xf32> -> vector<256x512xf32>
    %c0_68 = arith.constant 0 : index
    %c0_69 = arith.constant 0 : index
    %54 = vector.load %arg7[%c0_68, %c0_69] : memref<1x512xf32, #tpu.memory_space<vmem>>, vector<1x512xf32>
    %55 = vector.broadcast %54 : vector<1x512xf32> to vector<256x512xf32>
    %56 = arith.addf %53, %55 : vector<256x512xf32>
    %c0_70 = arith.constant 0 : index
    %c0_71 = arith.constant 0 : index
    %c0_72 = arith.constant 0 : index
    %c0_73 = arith.constant 0 : index
    %57 = vector.load %arg1[%c0_70, %c0_71, %c0_72, %c0_73] : memref<1x16x16x512xf32, #tpu.memory_space<vmem>>, vector<1x16x16x512xf32>
    %58 = vector.shape_cast %57 : vector<1x16x16x512xf32> to vector<16x16x512xf32>
    %59 = vector.shape_cast %58 : vector<16x16x512xf32> to vector<256x512xf32>
    %60 = arith.addf %56, %59 : vector<256x512xf32>
    %cst_74 = arith.constant 0.000000e+00 : f32
    %61 = vector.broadcast %cst_74 : f32 to vector<256x512xf32>
    %62 = arith.maximumf %60, %61 : vector<256x512xf32>
    %63 = vector.shape_cast %62 : vector<256x512xf32> to vector<16x16x512xf32>
    %c0_75 = arith.constant 0 : index
    %c0_76 = arith.constant 0 : index
    %c0_77 = arith.constant 0 : index
    %c0_78 = arith.constant 0 : index
    %64 = vector.load %arg8[%c0_75, %c0_76, %c0_77, %c0_78] : memref<1x16x16x512xf32, #tpu.memory_space<vmem>>, vector<1x16x16x512xf32>
    %65 = vector.shape_cast %64 : vector<1x16x16x512xf32> to vector<16x16x512xf32>
    %66 = vector.shape_cast %63 : vector<16x16x512xf32> to vector<1x16x16x512xf32>
    tpu.vector_store %arg8[%c0_75, %c0_76, %c0_77, %c0_78], %66 {strides = array<i32>} : memref<1x16x16x512xf32, #tpu.memory_space<vmem>>, vector<1x16x16x512xf32>,
    return
  }
  func.func @transform_0(%arg0: i32) -> (i32, i32, i32, i32) {
    %c0_i32 = arith.constant 0 : i32
    %c0_i32_0 = arith.constant 0 : i32
    %c0_i32_1 = arith.constant 0 : i32
    %c0_i32_2 = arith.constant 0 : i32
    return %arg0, %c0_i32, %c0_i32_0, %c0_i32_1 : i32, i32, i32, i32
  }
  func.func @transform_1(%arg0: i32) -> (i32, i32) {
    %c0_i32 = arith.constant 0 : i32
    %c0_i32_0 = arith.constant 0 : i32
    %c0_i32_1 = arith.constant 0 : i32
    return %c0_i32, %c0_i32_0 : i32, i32
  }
  func.func @transform_2(%arg0: i32) -> (i32, i32) {
    %c0_i32 = arith.constant 0 : i32
    %c0_i32_0 = arith.constant 0 : i32
    %c0_i32_1 = arith.constant 0 : i32
    return %c0_i32, %c0_i32_0 : i32, i32
  }
  func.func @transform_3(%arg0: i32) -> (i32, i32) {
    %c0_i32 = arith.constant 0 : i32
    %c0_i32_0 = arith.constant 0 : i32
    %c0_i32_1 = arith.constant 0 : i32
    return %c0_i32, %c0_i32_0 : i32, i32
  }
  func.func @transform_4(%arg0: i32) -> (i32, i32) {
    %c0_i32 = arith.constant 0 : i32
    %c0_i32_0 = arith.constant 0 : i32
    %c0_i32_1 = arith.constant 0 : i32
    return %c0_i32, %c0_i32_0 : i32, i32
  }
  func.func @transform_5(%arg0: i32) -> (i32, i32) {
    %c0_i32 = arith.constant 0 : i32
    %c0_i32_0 = arith.constant 0 : i32
    %c0_i32_1 = arith.constant 0 : i32
    return %c0_i32, %c0_i32_0 : i32, i32
  }
  func.func @transform_6(%arg0: i32) -> (i32, i32) {
    %c0_i32 = arith.constant 0 : i32
    %c0_i32_0 = arith.constant 0 : i32
    %c0_i32_1 = arith.constant 0 : i32
    return %c0_i32, %c0_i32_0 : i32, i32
  }
  func.func @transform_7(%arg0: i32) -> (i32, i32, i32, i32) {
    %c0_i32 = arith.constant 0 : i32
    %c0_i32_0 = arith.constant 0 : i32
    %c0_i32_1 = arith.constant 0 : i32
    %c0_i32_2 = arith.constant 0 : i32
    return %arg0, %c0_i32, %c0_i32_0, %c0_i32_1 : i32, i32, i32, i32
  }
}

</mosaic_0001>

<llo_original>
// kernel: bottleneck_forward.1
$region0: #{bottleneck_forward.1}
  #allocation0 [shape = 'u32[]', space=smem, size = 0x4, offset = 0x4, fixed_abs, tag = 'smem constant byte address 0x4 - core index']
  #allocation1 [shape = 'u32[72,128]{1,0:T(1,128)}', space=vmem, size = 0x9000, scoped, tag = 'internal scratch']
  #allocation2 [shape = 'f32[18,26,128]{2,1,0:T(8,128)}', space=vmem, size = 0x48000, scoped, tag = 'scratch operand']
  #allocation3 [shape = 'bf16[16,16,1152]{2,1,0:T(8,128)(2,1)}', space=vmem, size = 0x90000, scoped, tag = 'scratch operand']
  %s0 = inlined_call_operand.hbm [shape: f32[2,16,16,512], index: 0, kind: input, shape index: {}]
  %s1 = inlined_call_operand.hbm [shape: bf16[512,128], index: 1, kind: input, shape index: {}]
  %s2 = inlined_call_operand.vmem [shape: f32[1,128], index: 2, kind: input, shape index: {}]
  %s3 = inlined_call_operand.hbm [shape: bf16[1152,128], index: 3, kind: input, shape index: {}]
  %s4 = inlined_call_operand.hbm [shape: f32[1,128], index: 4, kind: input, shape index: {}]
  %s5 = inlined_call_operand.hbm [shape: bf16[128,512], index: 5, kind: input, shape index: {}]
  %s6 = inlined_call_operand.vmem [shape: f32[1,512], index: 6, kind: input, shape index: {}]
  %s7 = inlined_call_operand.hbm [shape: f32[2,16,16,512], index: 7, kind: output, shape index: {}]
  %s8 = sld [smem:[#allocation0]]
  $region81: #{bottleneck_forward.1} parent=0
    _
  %s10 = ssub.s32 1, %s8
  %s11 = scalar_select 0, %s10, %s8
  $region1: #{bottleneck_forward.1} parent=0
    #allocation4 [shape = 'u8[1048576]{0}', space=vmem, size = 0x100000, scoped, tag = 'input window, operand 0']
    #allocation5 [shape = 's32[2]{0}', space=sflag, size = 0x8, scoped, tag = 'scoped memory for bottleneck_forward.1']
    #allocation6 [shape = 's32[2]{0}', space=sflag, size = 0x8, scoped, tag = 'scoped memory for bottleneck_forward.1']
    #allocation7 [shape = 'u8[131072]{0}', space=vmem, size = 0x20000, scoped, tag = 'input window, operand 1, single buffered']
    #allocation8 [shape = 's32[1]{0}', space=sflag, size = 0x4, scoped, tag = 'scoped memory for bottleneck_forward.1']
    #allocation9 [shape = 'u8[294912]{0}', space=vmem, size = 0x48000, scoped, tag = 'input window, operand 3, single buffered']
    #allocation10 [shape = 'u8[512]{0}', space=vmem, size = 0x400, scoped, tag = 'input window, operand 4, single buffered']
    #allocation11 [shape = 's32[1]{0}', space=sflag, size = 0x4, scoped, tag = 'scoped memory for bottleneck_forward.1']
    #allocation12 [shape = 'u8[131072]{0}', space=vmem, size = 0x20000, scoped, tag = 'input window, operand 5, single buffered']
    #allocation13 [shape = 'u8[1048576]{0}', space=vmem, size = 0x100000, scoped, tag = 'output window, operand 0']
    %12 = vsyncpa [#allocation5], 0
    %s13 = scalar_lea.sflag [#allocation5], 1
    %14 = vsyncpa %s13, 0
    %15 = vsyncpa [#allocation8], 0
    %16 = vsyncpa [#allocation11], 0
    %17 = vsyncpa [#allocation6], 0
    %s18 = scalar_lea.sflag [#allocation6], 1
    %19 = vsyncpa %s18, 0
    loop: start=0, step=1, limit=4
    $region2: #{bottleneck_forward.1} parent=1 // loop_pre_header
      _
    $region3: #{bottleneck_forward.1} parent=1 // loop_header
      %s21 = sphi 0, %s25
      %p22 = scmp.ge.s32.totalorder %s21, 4
      %s31 = sphi 0, %s33
      %s34 = sphi 0, %s31
      %s35 = sphi 0, %s34
      %s51 = sphi 0, %s35
      %s55 = sphi 0, %s55
      %s57 = sphi 0, %s55
      %s58 = sphi 0, %s57
      %s72 = sphi 0, %s58
      %s76 = sphi 0, %s76
      %s78 = sphi 0, %s76
      %s79 = sphi 0, %s78
      %s93 = sphi 0, %s79
      %s97 = sphi 0, %s97
      %s99 = sphi 0, %s97
      %s100 = sphi 0, %s99
      %s114 = sphi 0, %s100
      %s118 = sphi 0, %s118
      %s120 = sphi 0, %s118
      %s121 = sphi 0, %s120
      %s135 = sphi 0, %s121
      %s139 = sphi 0, %s139
      %s141 = sphi 0, %s139
      %s142 = sphi 0, %s141
      %s156 = sphi 0, %s142
      %s160 = sphi 0, %s160
      %s162 = sphi 0, %s160
      %s163 = sphi 0, %s162
      %s177 = sphi 0, %s163
      %s183 = sphi 0, %s185
      %s186 = sphi 0, %s183
      %s187 = sphi 0, %s186
      %s203 = sphi 0, %s187
    $region4: #{bottleneck_forward.1} parent=1 // loop_header_branch
      %24 = sbr.rel (%p22) target = $region8
    $region5: #{bottleneck_forward.1} parent=1 // loop_body
      %s26 = ssub.s32 %s21, 1
      %s27 = ssub.s32 %s21, 2
      %s28 = sadd.s32 %s21, 1
      %s29 = ssub.s32 %s21, %s28
      %p30 = scmp.eq.s32.totalorder %s29, 0
      %s32 = sadd.s32 %s31, 1
      %s33 = scalar_select %p30, %s31, %s32
      %p36 = pneg %p30
      %p37 = scmp.eq.s32.totalorder %s21, 1
      %p38 = por %p36, %p37
      %p39 = scmp.ne.s32.totalorder %s31, %s34
      %p40 = scmp.eq.s32.totalorder %s21, 0
      %p41 = por %p39, %p40
      %p42 = scmp.ne.s32.totalorder %s31, %s34
      %p43 = scmp.eq.s32.totalorder %s26, 1
      %p44 = por %p42, %p43
      %p45 = scmp.ne.s32.totalorder %s34, %s35
      %p46 = scmp.eq.s32.totalorder %s26, 0
      %p47 = por %p45, %p46
      %p48 = scmp.ne.s32.totalorder %s34, %s35
      %p49 = scmp.eq.s32.totalorder %s27, 1
      %p50 = por %p48, %p49
      %p52 = scmp.ne.s32.totalorder %s35, %s51
      %p53 = scmp.eq.s32.totalorder %s27, 0
      %p54 = por %p52, %p53
      %s56 = sadd.s32 %s55, 1
      %p59 = scmp.eq.s32.totalorder %s21, 1
      %p60 = scmp.ne.s32.totalorder %s55, %s57
      %p61 = scmp.eq.s32.totalorder %s21, 0
      %p62 = por %p60, %p61
      %p63 = scmp.ne.s32.totalorder %s55, %s57
      %p64 = scmp.eq.s32.totalorder %s26, 1
      %p65 = por %p63, %p64
      %p66 = scmp.ne.s32.totalorder %s57, %s58
      %p67 = scmp.eq.s32.totalorder %s26, 0
      %p68 = por %p66, %p67
      %p69 = scmp.ne.s32.totalorder %s57, %s58
      %p70 = scmp.eq.s32.totalorder %s27, 1
      %p71 = por %p69, %p70
      %p73 = scmp.ne.s32.totalorder %s58, %s72
      %p74 = scmp.eq.s32.totalorder %s27, 0
      %p75 = por %p73, %p74
      %s77 = sadd.s32 %s76, 1
      %p80 = scmp.eq.s32.totalorder %s21, 1
      %p81 = scmp.ne.s32.totalorder %s76, %s78
      %p82 = scmp.eq.s32.totalorder %s21, 0
      %p83 = por %p81, %p82
      %p84 = scmp.ne.s32.totalorder %s76, %s78
      %p85 = scmp.eq.s32.totalorder %s26, 1
      %p86 = por %p84, %p85
      %p87 = scmp.ne.s32.totalorder %s78, %s79
      %p88 = scmp.eq.s32.totalorder %s26, 0
      %p89 = por %p87, %p88
      %p90 = scmp.ne.s32.totalorder %s78, %s79
      %p91 = scmp.eq.s32.totalorder %s27, 1
      %p92 = por %p90, %p91
      %p94 = scmp.ne.s32.totalorder %s79, %s93
      %p95 = scmp.eq.s32.totalorder %s27, 0
      %p96 = por %p94, %p95
      %s98 = sadd.s32 %s97, 1
      %p101 = scmp.eq.s32.totalorder %s21, 1
      %p102 = scmp.ne.s32.totalorder %s97, %s99
      %p103 = scmp.eq.s32.totalorder %s21, 0
      %p104 = por %p102, %p103
      %p105 = scmp.ne.s32.totalorder %s97, %s99
      %p106 = scmp.eq.s32.totalorder %s26, 1
      %p107 = por %p105, %p106
      %p108 = scmp.ne.s32.totalorder %s99, %s100
      %p109 = scmp.eq.s32.totalorder %s26, 0
      %p110 = por %p108, %p109
      %p111 = scmp.ne.s32.totalorder %s99, %s100
      %p112 = scmp.eq.s32.totalorder %s27, 1
      %p113 = por %p111, %p112
      %p115 = scmp.ne.s32.totalorder %s100, %s114
      %p116 = scmp.eq.s32.totalorder %s27, 0
      %p117 = por %p115, %p116
      %s119 = sadd.s32 %s118, 1
      %p122 = scmp.eq.s32.totalorder %s21, 1
      %p123 = scmp.ne.s32.totalorder %s118, %s120
      %p124 = scmp.eq.s32.totalorder %s21, 0
      %p125 = por %p123, %p124
      %p126 = scmp.ne.s32.totalorder %s118, %s120
      %p127 = scmp.eq.s32.totalorder %s26, 1
      %p128 = por %p126, %p127
      %p129 = scmp.ne.s32.totalorder %s120, %s121
      %p130 = scmp.eq.s32.totalorder %s26, 0
      %p131 = por %p129, %p130
      %p132 = scmp.ne.s32.totalorder %s120, %s121
      %p133 = scmp.eq.s32.totalorder %s27, 1
      %p134 = por %p132, %p133
      %p136 = scmp.ne.s32.totalorder %s121, %s135
      %p137 = scmp.eq.s32.totalorder %s27, 0
      %p138 = por %p136, %p137
      %s140 = sadd.s32 %s139, 1
      %p143 = scmp.eq.s32.totalorder %s21, 1
      %p144 = scmp.ne.s32.totalorder %s139, %s141
      %p145 = scmp.eq.s32.totalorder %s21, 0
      %p146 = por %p144, %p145
      %p147 = scmp.ne.s32.totalorder %s139, %s141
      %p148 = scmp.eq.s32.totalorder %s26, 1
      %p149 = por %p147, %p148
      %p150 = scmp.ne.s32.totalorder %s141, %s142
      %p151 = scmp.eq.s32.totalorder %s26, 0
      %p152 = por %p150, %p151
      %p153 = scmp.ne.s32.totalorder %s141, %s142
      %p154 = scmp.eq.s32.totalorder %s27, 1
      %p155 = por %p153, %p154
      %p157 = scmp.ne.s32.totalorder %s142, %s156
      %p158 = scmp.eq.s32.totalorder %s27, 0
      %p159 = por %p157, %p158
      %s161 = sadd.s32 %s160, 1
      %p164 = scmp.eq.s32.totalorder %s21, 1
      %p165 = scmp.ne.s32.totalorder %s160, %s162
      %p166 = scmp.eq.s32.totalorder %s21, 0
      %p167 = por %p165, %p166
      %p168 = scmp.ne.s32.totalorder %s160, %s162
      %p169 = scmp.eq.s32.totalorder %s26, 1
      %p170 = por %p168, %p169
      %p171 = scmp.ne.s32.totalorder %s162, %s163
      %p172 = scmp.eq.s32.totalorder %s26, 0
      %p173 = por %p171, %p172
      %p174 = scmp.ne.s32.totalorder %s162, %s163
      %p175 = scmp.eq.s32.totalorder %s27, 1
      %p176 = por %p174, %p175
      %p178 = scmp.ne.s32.totalorder %s163, %s177
      %p179 = scmp.eq.s32.totalorder %s27, 0
      %p180 = por %p178, %p179
      %s181 = ssub.s32 %s21, %s28
      %p182 = scmp.eq.s32.totalorder %s181, 0
      %s184 = sadd.s32 %s183, 1
      %s185 = scalar_select %p182, %s183, %s184
      %p188 = pneg %p182
      %p189 = scmp.eq.s32.totalorder %s21, 1
      %p190 = por %p188, %p189
      %p191 = scmp.ne.s32.totalorder %s183, %s186
      %p192 = scmp.eq.s32.totalorder %s21, 0
      %p193 = por %p191, %p192
      %p194 = scmp.ne.s32.totalorder %s183, %s186
      %p195 = scmp.eq.s32.totalorder %s26, 1
      %p196 = por %p194, %p195
      %p197 = scmp.ne.s32.totalorder %s186, %s187
      %p198 = scmp.eq.s32.totalorder %s26, 0
      %p199 = por %p197, %p198
      %p200 = scmp.ne.s32.totalorder %s186, %s187
      %p201 = scmp.eq.s32.totalorder %s27, 1
      %p202 = por %p200, %p201
      %p204 = scmp.ne.s32.totalorder %s187, %s203
      %p205 = scmp.eq.s32.totalorder %s27, 0
      %p206 = por %p204, %p205
      %p207 = scmp.le.s32.totalorder 1, %s21
      %p208 = scmp.lt.s32.totalorder %s21, 3
      %p209 = pnand %p207, %p208
      %p210 = pneg %p209
      // Predicated region
      $region9: #{bottleneck_forward.1} parent=5 // pred_check
        _
      $region10: #{bottleneck_forward.1} parent=5 // pred_check_branch
        %212 = sbr.rel (%p209) target = $region12
      $region11: #{bottleneck_forward.1} parent=5 // pred_region
        %s213 = ssub.s32 %s21, 1
        // Predicated region
        $region13: #{bottleneck_forward.1} parent=11 // pred_check
          %p214 = pneg %p68
        $region14: #{bottleneck_forward.1} parent=11 // pred_check_branch
          %216 = sbr.rel (%p214) target = $region16
        $region15: #{bottleneck_forward.1} parent=11 // pred_region
          %218 = vsyncadd [#allocation8], 0
          %s219 = sshll.u32 %s1, 4
          %s220 = int_to_ptr.hbm [resolvable:$true] %s219
          %s221 = sshll.u32 [#allocation7], 4
          %s222 = int_to_ptr.vmem [resolvable:$true] %s221
          %227 = dma.hbm_to_vmem [thread:$0]  %s220, 4096, %s222, [#allocation8], 64, 64, 4
        $region16: #{bottleneck_forward.1} parent=11 // pred_fallthru
          _
        // Predicated region
        $region17: #{bottleneck_forward.1} parent=11 // pred_check
          %p228 = pneg %p89
        $region18: #{bottleneck_forward.1} parent=11 // pred_check_branch
          %230 = sbr.rel (%p228) target = $region20
        $region19: #{bottleneck_forward.1} parent=11 // pred_region
          _
        $region20: #{bottleneck_forward.1} parent=11 // pred_fallthru
          _
        // Predicated region
        $region21: #{bottleneck_forward.1} parent=11 // pred_check
          %p231 = pneg %p110
        $region22: #{bottleneck_forward.1} parent=11 // pred_check_branch
          %233 = sbr.rel (%p231) target = $region24
        $region23: #{bottleneck_forward.1} parent=11 // pred_region
          %235 = vsyncadd [#allocation8], 0
          %s236 = sshll.u32 %s3, 4
          %s237 = int_to_ptr.hbm [resolvable:$true] %s236
          %s238 = sshll.u32 [#allocation9], 4
          %s239 = int_to_ptr.vmem [resolvable:$true] %s238
          %244 = dma.hbm_to_vmem [thread:$0]  %s237, 9216, %s239, [#allocation8], 64, 64, 4
        $region24: #{bottleneck_forward.1} parent=11 // pred_fallthru
          _
        // Predicated region
        $region25: #{bottleneck_forward.1} parent=11 // pred_check
          %p245 = pneg %p131
        $region26: #{bottleneck_forward.1} parent=11 // pred_check_branch
          %247 = sbr.rel (%p245) target = $region28
        $region27: #{bottleneck_forward.1} parent=11 // pred_region
          %249 = vsyncadd [#allocation11], 0
          %s251 = sshll.u32 %s4, 4
          %s252 = int_to_ptr.hbm [resolvable:$true] %s251
          %s253 = sshll.u32 [#allocation10], 4
          %s254 = int_to_ptr.vmem [resolvable:$true] %s253
          %256 = dma.hbm_to_vmem [thread:$0]  %s252, 16, %s254, [#allocation11]
        $region28: #{bottleneck_forward.1} parent=11 // pred_fallthru
          _
        // Predicated region
        $region29: #{bottleneck_forward.1} parent=11 // pred_check
          %p257 = pneg %p152
        $region30: #{bottleneck_forward.1} parent=11 // pred_check_branch
          %259 = sbr.rel (%p257) target = $region32
        $region31: #{bottleneck_forward.1} parent=11 // pred_region
          %261 = vsyncadd [#allocation11], 0
          %s262 = sshll.u32 %s5, 4
          %s263 = int_to_ptr.hbm [resolvable:$true] %s262
          %s264 = sshll.u32 [#allocation12], 4
          %s265 = int_to_ptr.vmem [resolvable:$true] %s264
          %270 = dma.hbm_to_vmem [thread:$0]  %s263, 4096, %s265, [#allocation11], 256, 256, 16
        $region32: #{bottleneck_forward.1} parent=11 // pred_fallthru
          _
        // Predicated region
        $region33: #{bottleneck_forward.1} parent=11 // pred_check
          %p271 = pneg %p173
        $region34: #{bottleneck_forward.1} parent=11 // pred_check_branch
          %273 = sbr.rel (%p271) target = $region36
        $region35: #{bottleneck_forward.1} parent=11 // pred_region
          _
        $region36: #{bottleneck_forward.1} parent=11 // pred_fallthru
          _
      $region12: #{bottleneck_forward.1} parent=5 // pred_fallthru
        _
      %p274 = scmp.lt.s32.totalorder %s21, 2
      // Predicated region
      $region37: #{bottleneck_forward.1} parent=5 // pred_check
        %p275 = pneg %p274
      $region38: #{bottleneck_forward.1} parent=5 // pred_check_branch
        %277 = sbr.rel (%p275) target = $region40
      $region39: #{bottleneck_forward.1} parent=5 // pred_region
        // Predicated region
        $region41: #{bottleneck_forward.1} parent=39 // pred_check
          %p278 = pneg %p41
        $region42: #{bottleneck_forward.1} parent=39 // pred_check_branch
          %280 = sbr.rel (%p278) target = $region44
        $region43: #{bottleneck_forward.1} parent=39 // pred_region
          %s281 = sand.u32 %s31, 1
          %s282 = scalar_lea.sflag [#allocation5], %s281
          %s283 = sand.u32 %s31, 1
          %s284 = smul.addr %s283, 1024
          %s285 = scalar_lea.vmem [#allocation4], %s284
          %287 = vsyncadd %s282, 0
          %s288 = smul.addr %s21, 128
          %s289 = smul.addr %s288, 8
          %s290 = scalar_lea.hbm %s0, %s289
          %s291 = sshll.u32 %s290, 4
          %s292 = int_to_ptr.hbm [resolvable:$true] %s291
          %s293 = sshll.u32 %s285, 4
          %s294 = int_to_ptr.vmem [resolvable:$true] %s293
          %299 = dma.hbm_to_vmem [thread:$0]  %s292, 16384, %s294, %s282, 512, 512, 32
        $region44: #{bottleneck_forward.1} parent=39 // pred_fallthru
          _
      $region40: #{bottleneck_forward.1} parent=5 // pred_fallthru
        _
      %p300 = scmp.le.s32.totalorder 1, %s21
      %p301 = scmp.lt.s32.totalorder %s21, 3
      %p302 = pnand %p300, %p301
      %p303 = pneg %p302
      // Predicated region
      $region45: #{bottleneck_forward.1} parent=5 // pred_check
        _
      $region46: #{bottleneck_forward.1} parent=5 // pred_check_branch
        %305 = sbr.rel (%p302) target = $region48
      $region47: #{bottleneck_forward.1} parent=5 // pred_region
        %s306 = ssub.s32 %s21, 1
        %s307 = sand.u32 %s34, 1
        %s308 = scalar_lea.sflag [#allocation5], %s307
        %s309 = sand.u32 %s34, 1
        %s310 = smul.addr %s309, 1024
        %s311 = scalar_lea.vmem [#allocation4], %s310
        // Predicated region
        $region49: #{bottleneck_forward.1} parent=47 // pred_check
          %p312 = pneg %p47
        $region50: #{bottleneck_forward.1} parent=47 // pred_check_branch
          %314 = sbr.rel (%p312) target = $region52
        $region51: #{bottleneck_forward.1} parent=47 // pred_region
          %316 = dma.done %s308, 16384
        $region52: #{bottleneck_forward.1} parent=47 // pred_fallthru
          _
        // Predicated region
        $region53: #{bottleneck_forward.1} parent=47 // pred_check
          %p317 = pneg %p68
        $region54: #{bottleneck_forward.1} parent=47 // pred_check_branch
          %319 = sbr.rel (%p317) target = $region56
        $region55: #{bottleneck_forward.1} parent=47 // pred_region
          %321 = dma.done [#allocation8], 4096
        $region56: #{bottleneck_forward.1} parent=47 // pred_fallthru
          _
        // Predicated region
        $region57: #{bottleneck_forward.1} parent=47 // pred_check
          %p322 = pneg %p110
        $region58: #{bottleneck_forward.1} parent=47 // pred_check_branch
          %324 = sbr.rel (%p322) target = $region60
        $region59: #{bottleneck_forward.1} parent=47 // pred_region
          %326 = dma.done [#allocation8], 9216
        $region60: #{bottleneck_forward.1} parent=47 // pred_fallthru
          _
        // Predicated region
        $region61: #{bottleneck_forward.1} parent=47 // pred_check
          %p327 = pneg %p131
        $region62: #{bottleneck_forward.1} parent=47 // pred_check_branch
          %329 = sbr.rel (%p327) target = $region64
        $region63: #{bottleneck_forward.1} parent=47 // pred_region
          %331 = dma.done [#allocation11], 16
        $region64: #{bottleneck_forward.1} parent=47 // pred_fallthru
          _
        // Predicated region
        $region65: #{bottleneck_forward.1} parent=47 // pred_check
          %p332 = pneg %p152
        $region66: #{bottleneck_forward.1} parent=47 // pred_check_branch
          %334 = sbr.rel (%p332) target = $region68
        $region67: #{bottleneck_forward.1} parent=47 // pred_region
          %336 = dma.done [#allocation11], 4096
        $region68: #{bottleneck_forward.1} parent=47 // pred_fallthru
          _
        %s337 = sand.u32 %s34, 1
        %s338 = scalar_lea.sflag [#allocation5], %s337
        %s339 = sand.u32 %s34, 1
        %s340 = smul.addr %s339, 1024
        %s341 = scalar_lea.vmem [#allocation4], %s340
        %p342 = pneg %p47
        %p343 = pneg %p44
        %p344 = pneg %p68
        %p345 = pneg %p65
        %p346 = pneg %p89
        %p347 = pneg %p86
        %p348 = pneg %p110
        %p349 = pneg %p107
        %p350 = pneg %p131
        %p351 = pneg %p128
        %p352 = pneg %p152
        %p353 = pneg %p149
        %p354 = pneg %p173
        %p355 = pneg %p170
        %p356 = pneg %p199
        %p357 = pneg %p196
        %s358 = sand.u32 %s186, 1
        %s359 = scalar_lea.sflag [#allocation6], %s358
        %s360 = sand.u32 %s186, 1
        %s361 = smul.addr %s360, 1024
        %s362 = scalar_lea.vmem [#allocation13], %s361
        %363 = vst [vmem:[#allocation2] sm:$0xff] 0.0
        %364 = vst [vmem:[#allocation2 + $0x8] sm:$0xff] 0.0
        %365 = vst [vmem:[#allocation2 + $0x10] sm:$0xff] 0.0
        %366 = vst [vmem:[#allocation2 + $0x18] sm:$0x3] 0.0
        %367 = vst [vmem:[#allocation2 + $0x20] sm:$0xff] 0.0
        %368 = vst [vmem:[#allocation2 + $0x28] sm:$0xff] 0.0
        %369 = vst [vmem:[#allocation2 + $0x30] sm:$0xff] 0.0
        %370 = vst [vmem:[#allocation2 + $0x38] sm:$0x3] 0.0
        %371 = vst [vmem:[#allocation2 + $0x40] sm:$0xff] 0.0
        %372 = vst [vmem:[#allocation2 + $0x48] sm:$0xff] 0.0
        %373 = vst [vmem:[#allocation2 + $0x50] sm:$0xff] 0.0
        %374 = vst [vmem:[#allocation2 + $0x58] sm:$0x3] 0.0
        %375 = vst [vmem:[#allocation2 + $0x60] sm:$0xff] 0.0
        %376 = vst [vmem:[#allocation2 + $0x68] sm:$0xff] 0.0
        %377 = vst [vmem:[#allocation2 + $0x70] sm:$0xff] 0.0
        %378 = vst [vmem:[#allocation2 + $0x78] sm:$0x3] 0.0
        %379 = vst [vmem:[#allocation2 + $0x80] sm:$0xff] 0.0
        %380 = vst [vmem:[#allocation2 + $0x88] sm:$0xff] 0.0
        %381 = vst [vmem:[#allocation2 + $0x90] sm:$0xff] 0.0
        %382 = vst [vmem:[#allocation2 + $0x98] sm:$0x3] 0.0
        %383 = vst [vmem:[#allocation2 + $0xa0] sm:$0xff] 0.0
        %384 = vst [vmem:[#allocation2 + $0xa8] sm:$0xff] 0.0
        %385 = vst [vmem:[#allocation2 + $0xb0] sm:$0xff] 0.0
        %386 = vst [vmem:[#allocation2 + $0xb8] sm:$0x3] 0.0
        %387 = vst [vmem:[#allocation2 + $0xc0] sm:$0xff] 0.0
        %388 = vst [vmem:[#allocation2 + $0xc8] sm:$0xff] 0.0
        %389 = vst [vmem:[#allocation2 + $0xd0] sm:$0xff] 0.0
        %390 = vst [vmem:[#allocation2 + $0xd8] sm:$0x3] 0.0
        %391 = vst [vmem:[#allocation2 + $0xe0] sm:$0xff] 0.0
        %392 = vst [vmem:[#allocation2 + $0xe8] sm:$0xff] 0.0
        %393 = vst [vmem:[#allocation2 + $0xf0] sm:$0xff] 0.0
        %394 = vst [vmem:[#allocation2 + $0xf8] sm:$0x3] 0.0
        %395 = vst [vmem:[#allocation2 + $0x100] sm:$0xff] 0.0
        %396 = vst [vmem:[#allocation2 + $0x108] sm:$0xff] 0.0
        %397 = vst [vmem:[#allocation2 + $0x110] sm:$0xff] 0.0
        %398 = vst [vmem:[#allocation2 + $0x118] sm:$0x3] 0.0
        %399 = vst [vmem:[#allocation2 + $0x120] sm:$0xff] 0.0
        %400 = vst [vmem:[#allocation2 + $0x128] sm:$0xff] 0.0
        %401 = vst [vmem:[#allocation2 + $0x130] sm:$0xff] 0.0
        %402 = vst [vmem:[#allocation2 + $0x138] sm:$0x3] 0.0
        %403 = vst [vmem:[#allocation2 + $0x140] sm:$0xff] 0.0
        %404 = vst [vmem:[#allocation2 + $0x148] sm:$0xff] 0.0
        %405 = vst [vmem:[#allocation2 + $0x150] sm:$0xff] 0.0
        %406 = vst [vmem:[#allocation2 + $0x158] sm:$0x3] 0.0
        %407 = vst [vmem:[#allocation2 + $0x160] sm:$0xff] 0.0
        %408 = vst [vmem:[#allocation2 + $0x168] sm:$0xff] 0.0
        %409 = vst [vmem:[#allocation2 + $0x170] sm:$0xff] 0.0
        %410 = vst [vmem:[#allocation2 + $0x178] sm:$0x3] 0.0
        %411 = vst [vmem:[#allocation2 + $0x180] sm:$0xff] 0.0
        %412 = vst [vmem:[#allocation2 + $0x188] sm:$0xff] 0.0
        %413 = vst [vmem:[#allocation2 + $0x190] sm:$0xff] 0.0
        %414 = vst [vmem:[#allocation2 + $0x198] sm:$0x3] 0.0
        %415 = vst [vmem:[#allocation2 + $0x1a0] sm:$0xff] 0.0
        %416 = vst [vmem:[#allocation2 + $0x1a8] sm:$0xff] 0.0
        %417 = vst [vmem:[#allocation2 + $0x1b0] sm:$0xff] 0.0
        %418 = vst [vmem:[#allocation2 + $0x1b8] sm:$0x3] 0.0
        %419 = vst [vmem:[#allocation2 + $0x1c0] sm:$0xff] 0.0
        %420 = vst [vmem:[#allocation2 + $0x1c8] sm:$0xff] 0.0
        %421 = vst [vmem:[#allocation2 + $0x1d0] sm:$0xff] 0.0
        %422 = vst [vmem:[#allocation2 + $0x1d8] sm:$0x3] 0.0
        %423 = vst [vmem:[#allocation2 + $0x1e0] sm:$0xff] 0.0
        %424 = vst [vmem:[#allocation2 + $0x1e8] sm:$0xff] 0.0
        %425 = vst [vmem:[#allocation2 + $0x1f0] sm:$0xff] 0.0
        %426 = vst [vmem:[#allocation2 + $0x1f8] sm:$0x3] 0.0
        %427 = vst [vmem:[#allocation2 + $0x200] sm:$0xff] 0.0
        %428 = vst [vmem:[#allocation2 + $0x208] sm:$0xff] 0.0
        %429 = vst [vmem:[#allocation2 + $0x210] sm:$0xff] 0.0
        %430 = vst [vmem:[#allocation2 + $0x218] sm:$0x3] 0.0
        %431 = vst [vmem:[#allocation2 + $0x220] sm:$0xff] 0.0
        %432 = vst [vmem:[#allocation2 + $0x228] sm:$0xff] 0.0
        %433 = vst [vmem:[#allocation2 + $0x230] sm:$0xff] 0.0
        %434 = vst [vmem:[#allocation2 + $0x238] sm:$0x3] 0.0
        %v435 = vld [vmem:[%s311] sm:$0xff]
        %v436 = vld [vmem:[%s311 + $0x8] sm:$0xff]
        %v437 = vld [vmem:[%s311 + $0x10] sm:$0xff]
        %v438 = vld [vmem:[%s311 + $0x18] sm:$0xff]
        %v439 = vld [vmem:[%s311 + $0x20] sm:$0xff]
        %v440 = vld [vmem:[%s311 + $0x28] sm:$0xff]
        %v441 = vld [vmem:[%s311 + $0x30] sm:$0xff]
        %v442 = vld [vmem:[%s311 + $0x38] sm:$0xff]
        %v443 = vld [vmem:[%s311 + $0x40] sm:$0xff]
        %v444 = vld [vmem:[%s311 + $0x48] sm:$0xff]
        %v445 = vld [vmem:[%s311 + $0x50] sm:$0xff]
        %v446 = vld [vmem:[%s311 + $0x58] sm:$0xff]
        %v447 = vld [vmem:[%s311 + $0x60] sm:$0xff]
        %v448 = vld [vmem:[%s311 + $0x68] sm:$0xff]
        %v449 = vld [vmem:[%s311 + $0x70] sm:$0xff]
        %v450 = vld [vmem:[%s311 + $0x78] sm:$0xff]
        %v451 = vld [vmem:[%s311 + $0x80] sm:$0xff]
        %v452 = vld [vmem:[%s311 + $0x88] sm:$0xff]
        %v453 = vld [vmem:[%s311 + $0x90] sm:$0xff]
        %v454 = vld [vmem:[%s311 + $0x98] sm:$0xff]
        %v455 = vld [vmem:[%s311 + $0xa0] sm:$0xff]
        %v456 = vld [vmem:[%s311 + $0xa8] sm:$0xff]
        %v457 = vld [vmem:[%s311 + $0xb0] sm:$0xff]
        %v458 = vld [vmem:[%s311 + $0xb8] sm:$0xff]
        %v459 = vld [vmem:[%s311 + $0xc0] sm:$0xff]
        %v460 = vld [vmem:[%s311 + $0xc8] sm:$0xff]
        %v461 = vld [vmem:[%s311 + $0xd0] sm:$0xff]
        %v462 = vld [vmem:[%s311 + $0xd8] sm:$0xff]
        %v463 = vld [vmem:[%s311 + $0xe0] sm:$0xff]
        %v464 = vld [vmem:[%s311 + $0xe8] sm:$0xff]
        %v465 = vld [vmem:[%s311 + $0xf0] sm:$0xff]
        %v466 = vld [vmem:[%s311 + $0xf8] sm:$0xff]
        %v467 = vld [vmem:[%s311 + $0x100] sm:$0xff]
        %v468 = vld [vmem:[%s311 + $0x108] sm:$0xff]
        %v469 = vld [vmem:[%s311 + $0x110] sm:$0xff]
        %v470 = vld [vmem:[%s311 + $0x118] sm:$0xff]
        %v471 = vld [vmem:[%s311 + $0x120] sm:$0xff]
        %v472 = vld [vmem:[%s311 + $0x128] sm:$0xff]
        %v473 = vld [vmem:[%s311 + $0x130] sm:$0xff]
        %v474 = vld [vmem:[%s311 + $0x138] sm:$0xff]
        %v475 = vld [vmem:[%s311 + $0x140] sm:$0xff]
        %v476 = vld [vmem:[%s311 + $0x148] sm:$0xff]
        %v477 = vld [vmem:[%s311 + $0x150] sm:$0xff]
        %v478 = vld [vmem:[%s311 + $0x158] sm:$0xff]
        %v479 = vld [vmem:[%s311 + $0x160] sm:$0xff]
        %v480 = vld [vmem:[%s311 + $0x168] sm:$0xff]
        %v481 = vld [vmem:[%s311 + $0x170] sm:$0xff]
        %v482 = vld [vmem:[%s311 + $0x178] sm:$0xff]
        %v483 = vld [vmem:[%s311 + $0x180] sm:$0xff]
        %v484 = vld [vmem:[%s311 + $0x188] sm:$0xff]
        %v485 = vld [vmem:[%s311 + $0x190] sm:$0xff]
        %v486 = vld [vmem:[%s311 + $0x198] sm:$0xff]
        %v487 = vld [vmem:[%s311 + $0x1a0] sm:$0xff]
        %v488 = vld [vmem:[%s311 + $0x1a8] sm:$0xff]
        %v489 = vld [vmem:[%s311 + $0x1b0] sm:$0xff]
        %v490 = vld [vmem:[%s311 + $0x1b8] sm:$0xff]
        %v491 = vld [vmem:[%s311 + $0x1c0] sm:$0xff]
        %v492 = vld [vmem:[%s311 + $0x1c8] sm:$0xff]
        %v493 = vld [vmem:[%s311 + $0x1d0] sm:$0xff]
        %v494 = vld [vmem:[%s311 + $0x1d8] sm:$0xff]
        %v495 = vld [vmem:[%s311 + $0x1e0] sm:$0xff]
        %v496 = vld [vmem:[%s311 + $0x1e8] sm:$0xff]
        %v497 = vld [vmem:[%s311 + $0x1f0] sm:$0xff]
        %v498 = vld [vmem:[%s311 + $0x1f8] sm:$0xff]
        %v499 = vld [vmem:[%s311 + $0x200] sm:$0xff]
        %v500 = vld [vmem:[%s311 + $0x208] sm:$0xff]
        %v501 = vld [vmem:[%s311 + $0x210] sm:$0xff]
        %v502 = vld [vmem:[%s311 + $0x218] sm:$0xff]
        %v503 = vld [vmem:[%s311 + $0x220] sm:$0xff]
        %v504 = vld [vmem:[%s311 + $0x228] sm:$0xff]
        %v505 = vld [vmem:[%s311 + $0x230] sm:$0xff]
        %v506 = vld [vmem:[%s311 + $0x238] sm:$0xff]
        %v507 = vld [vmem:[%s311 + $0x240] sm:$0xff]
        %v508 = vld [vmem:[%s311 + $0x248] sm:$0xff]
        %v509 = vld [vmem:[%s311 + $0x250] sm:$0xff]
        %v510 = vld [vmem:[%s311 + $0x258] sm:$0xff]
        %v511 = vld [vmem:[%s311 + $0x260] sm:$0xff]
        %v512 = vld [vmem:[%s311 + $0x268] sm:$0xff]
        %v513 = vld [vmem:[%s311 + $0x270] sm:$0xff]
        %v514 = vld [vmem:[%s311 + $0x278] sm:$0xff]
        %v515 = vld [vmem:[%s311 + $0x280] sm:$0xff]
        %v516 = vld [vmem:[%s311 + $0x288] sm:$0xff]
        %v517 = vld [vmem:[%s311 + $0x290] sm:$0xff]
        %v518 = vld [vmem:[%s311 + $0x298] sm:$0xff]
        %v519 = vld [vmem:[%s311 + $0x2a0] sm:$0xff]
        %v520 = vld [vmem:[%s311 + $0x2a8] sm:$0xff]
        %v521 = vld [vmem:[%s311 + $0x2b0] sm:$0xff]
        %v522 = vld [vmem:[%s311 + $0x2b8] sm:$0xff]
        %v523 = vld [vmem:[%s311 + $0x2c0] sm:$0xff]
        %v524 = vld [vmem:[%s311 + $0x2c8] sm:$0xff]
        %v525 = vld [vmem:[%s311 + $0x2d0] sm:$0xff]
        %v526 = vld [vmem:[%s311 + $0x2d8] sm:$0xff]
        %v527 = vld [vmem:[%s311 + $0x2e0] sm:$0xff]
        %v528 = vld [vmem:[%s311 + $0x2e8] sm:$0xff]
        %v529 = vld [vmem:[%s311 + $0x2f0] sm:$0xff]
        %v530 = vld [vmem:[%s311 + $0x2f8] sm:$0xff]
        %v531 = vld [vmem:[%s311 + $0x300] sm:$0xff]
        %v532 = vld [vmem:[%s311 + $0x308] sm:$0xff]
        %v533 = vld [vmem:[%s311 + $0x310] sm:$0xff]
        %v534 = vld [vmem:[%s311 + $0x318] sm:$0xff]
        %v535 = vld [vmem:[%s311 + $0x320] sm:$0xff]
        %v536 = vld [vmem:[%s311 + $0x328] sm:$0xff]
        %v537 = vld [vmem:[%s311 + $0x330] sm:$0xff]
        %v538 = vld [vmem:[%s311 + $0x338] sm:$0xff]
        %v539 = vld [vmem:[%s311 + $0x340] sm:$0xff]
        %v540 = vld [vmem:[%s311 + $0x348] sm:$0xff]
        %v541 = vld [vmem:[%s311 + $0x350] sm:$0xff]
        %v542 = vld [vmem:[%s311 + $0x358] sm:$0xff]
        %v543 = vld [vmem:[%s311 + $0x360] sm:$0xff]
        %v544 = vld [vmem:[%s311 + $0x368] sm:$0xff]
        %v545 = vld [vmem:[%s311 + $0x370] sm:$0xff]
        %v546 = vld [vmem:[%s311 + $0x378] sm:$0xff]
        %v547 = vld [vmem:[%s311 + $0x380] sm:$0xff]
        %v548 = vld [vmem:[%s311 + $0x388] sm:$0xff]
        %v549 = vld [vmem:[%s311 + $0x390] sm:$0xff]
        %v550 = vld [vmem:[%s311 + $0x398] sm:$0xff]
        %v551 = vld [vmem:[%s311 + $0x3a0] sm:$0xff]
        %v552 = vld [vmem:[%s311 + $0x3a8] sm:$0xff]
        %v553 = vld [vmem:[%s311 + $0x3b0] sm:$0xff]
        %v554 = vld [vmem:[%s311 + $0x3b8] sm:$0xff]
        %v555 = vld [vmem:[%s311 + $0x3c0] sm:$0xff]
        %v556 = vld [vmem:[%s311 + $0x3c8] sm:$0xff]
        %v557 = vld [vmem:[%s311 + $0x3d0] sm:$0xff]
        %v558 = vld [vmem:[%s311 + $0x3d8] sm:$0xff]
        %v559 = vld [vmem:[%s311 + $0x3e0] sm:$0xff]
        %v560 = vld [vmem:[%s311 + $0x3e8] sm:$0xff]
        %v561 = vld [vmem:[%s311 + $0x3f0] sm:$0xff]
        %v562 = vld [vmem:[%s311 + $0x3f8] sm:$0xff]
        %v563 = vpack.c.bf16 %v436, %v435
        %v564 = vpack.c.bf16 %v438, %v437
        %v565 = vpack.c.bf16 %v440, %v439
        %v566 = vpack.c.bf16 %v442, %v441
        %v567 = vpack.c.bf16 %v444, %v443
        %v568 = vpack.c.bf16 %v446, %v445
        %v569 = vpack.c.bf16 %v448, %v447
        %v570 = vpack.c.bf16 %v450, %v449
        %v571 = vpack.c.bf16 %v452, %v451
        %v572 = vpack.c.bf16 %v454, %v453
        %v573 = vpack.c.bf16 %v456, %v455
        %v574 = vpack.c.bf16 %v458, %v457
        %v575 = vpack.c.bf16 %v460, %v459
        %v576 = vpack.c.bf16 %v462, %v461
        %v577 = vpack.c.bf16 %v464, %v463
        %v578 = vpack.c.bf16 %v466, %v465
        %v579 = vpack.c.bf16 %v468, %v467
        %v580 = vpack.c.bf16 %v470, %v469
        %v581 = vpack.c.bf16 %v472, %v471
        %v582 = vpack.c.bf16 %v474, %v473
        %v583 = vpack.c.bf16 %v476, %v475
        %v584 = vpack.c.bf16 %v478, %v477
        %v585 = vpack.c.bf16 %v480, %v479
        %v586 = vpack.c.bf16 %v482, %v481
        %v587 = vpack.c.bf16 %v484, %v483
        %v588 = vpack.c.bf16 %v486, %v485
        %v589 = vpack.c.bf16 %v488, %v487
        %v590 = vpack.c.bf16 %v490, %v489
        %v591 = vpack.c.bf16 %v492, %v491
        %v592 = vpack.c.bf16 %v494, %v493
        %v593 = vpack.c.bf16 %v496, %v495
        %v594 = vpack.c.bf16 %v498, %v497
        %v595 = vpack.c.bf16 %v500, %v499
        %v596 = vpack.c.bf16 %v502, %v501
        %v597 = vpack.c.bf16 %v504, %v503
        %v598 = vpack.c.bf16 %v506, %v505
        %v599 = vpack.c.bf16 %v508, %v507
        %v600 = vpack.c.bf16 %v510, %v509
        %v601 = vpack.c.bf16 %v512, %v511
        %v602 = vpack.c.bf16 %v514, %v513
        %v603 = vpack.c.bf16 %v516, %v515
        %v604 = vpack.c.bf16 %v518, %v517
        %v605 = vpack.c.bf16 %v520, %v519
        %v606 = vpack.c.bf16 %v522, %v521
        %v607 = vpack.c.bf16 %v524, %v523
        %v608 = vpack.c.bf16 %v526, %v525
        %v609 = vpack.c.bf16 %v528, %v527
        %v610 = vpack.c.bf16 %v530, %v529
        %v611 = vpack.c.bf16 %v532, %v531
        %v612 = vpack.c.bf16 %v534, %v533
        %v613 = vpack.c.bf16 %v536, %v535
        %v614 = vpack.c.bf16 %v538, %v537
        %v615 = vpack.c.bf16 %v540, %v539
        %v616 = vpack.c.bf16 %v542, %v541
        %v617 = vpack.c.bf16 %v544, %v543
        %v618 = vpack.c.bf16 %v546, %v545
        %v619 = vpack.c.bf16 %v548, %v547
        %v620 = vpack.c.bf16 %v550, %v549
        %v621 = vpack.c.bf16 %v552, %v551
        %v622 = vpack.c.bf16 %v554, %v553
        %v623 = vpack.c.bf16 %v556, %v555
        %v624 = vpack.c.bf16 %v558, %v557
        %v625 = vpack.c.bf16 %v560, %v559
        %v626 = vpack.c.bf16 %v562, %v561
        %v627 = vld [vmem:[#allocation7] sm:$0xf]
        %v628 = vld [vmem:[#allocation7 + $0x4] sm:$0xf]
        %v629 = vld [vmem:[#allocation7 + $0x8] sm:$0xf]
        %v630 = vld [vmem:[#allocation7 + $0xc] sm:$0xf]
        %v631 = vld [vmem:[#allocation7 + $0x10] sm:$0xf]
        %v632 = vld [vmem:[#allocation7 + $0x14] sm:$0xf]
        %v633 = vld [vmem:[#allocation7 + $0x18] sm:$0xf]
        %v634 = vld [vmem:[#allocation7 + $0x1c] sm:$0xf]
        %v635 = vld [vmem:[#allocation7 + $0x20] sm:$0xf]
        %v636 = vld [vmem:[#allocation7 + $0x24] sm:$0xf]
        %v637 = vld [vmem:[#allocation7 + $0x28] sm:$0xf]
        %v638 = vld [vmem:[#allocation7 + $0x2c] sm:$0xf]
        %v639 = vld [vmem:[#allocation7 + $0x30] sm:$0xf]
        %v640 = vld [vmem:[#allocation7 + $0x34] sm:$0xf]
        %v641 = vld [vmem:[#allocation7 + $0x38] sm:$0xf]
        %v642 = vld [vmem:[#allocation7 + $0x3c] sm:$0xf]
        %v643 = vld [vmem:[#allocation7 + $0x40] sm:$0xf]
        %v644 = vld [vmem:[#allocation7 + $0x44] sm:$0xf]
        %v645 = vld [vmem:[#allocation7 + $0x48] sm:$0xf]
        %v646 = vld [vmem:[#allocation7 + $0x4c] sm:$0xf]
        %v647 = vld [vmem:[#allocation7 + $0x50] sm:$0xf]
        %v648 = vld [vmem:[#allocation7 + $0x54] sm:$0xf]
        %v649 = vld [vmem:[#allocation7 + $0x58] sm:$0xf]
        %v650 = vld [vmem:[#allocation7 + $0x5c] sm:$0xf]
        %v651 = vld [vmem:[#allocation7 + $0x60] sm:$0xf]
        %v652 = vld [vmem:[#allocation7 + $0x64] sm:$0xf]
        %v653 = vld [vmem:[#allocation7 + $0x68] sm:$0xf]
        %v654 = vld [vmem:[#allocation7 + $0x6c] sm:$0xf]
        %v655 = vld [vmem:[#allocation7 + $0x70] sm:$0xf]
        %v656 = vld [vmem:[#allocation7 + $0x74] sm:$0xf]
        %v657 = vld [vmem:[#allocation7 + $0x78] sm:$0xf]
        %v658 = vld [vmem:[#allocation7 + $0x7c] sm:$0xf]
        %v659 = vld [vmem:[#allocation7 + $0x80] sm:$0xf]
        %v660 = vld [vmem:[#allocation7 + $0x84] sm:$0xf]
        %v661 = vld [vmem:[#allocation7 + $0x88] sm:$0xf]
        %v662 = vld [vmem:[#allocation7 + $0x8c] sm:$0xf]
        %v663 = vld [vmem:[#allocation7 + $0x90] sm:$0xf]
        %v664 = vld [vmem:[#allocation7 + $0x94] sm:$0xf]
        %v665 = vld [vmem:[#allocation7 + $0x98] sm:$0xf]
        %v666 = vld [vmem:[#allocation7 + $0x9c] sm:$0xf]
        %v667 = vld [vmem:[#allocation7 + $0xa0] sm:$0xf]
        %v668 = vld [vmem:[#allocation7 + $0xa4] sm:$0xf]
        %v669 = vld [vmem:[#allocation7 + $0xa8] sm:$0xf]
        %v670 = vld [vmem:[#allocation7 + $0xac] sm:$0xf]
        %v671 = vld [vmem:[#allocation7 + $0xb0] sm:$0xf]
        %v672 = vld [vmem:[#allocation7 + $0xb4] sm:$0xf]
        %v673 = vld [vmem:[#allocation7 + $0xb8] sm:$0xf]
        %v674 = vld [vmem:[#allocation7 + $0xbc] sm:$0xf]
        %v675 = vld [vmem:[#allocation7 + $0xc0] sm:$0xf]
        %v676 = vld [vmem:[#allocation7 + $0xc4] sm:$0xf]
        %v677 = vld [vmem:[#allocation7 + $0xc8] sm:$0xf]
        %v678 = vld [vmem:[#allocation7 + $0xcc] sm:$0xf]
        %v679 = vld [vmem:[#allocation7 + $0xd0] sm:$0xf]
        %v680 = vld [vmem:[#allocation7 + $0xd4] sm:$0xf]
        %v681 = vld [vmem:[#allocation7 + $0xd8] sm:$0xf]
        %v682 = vld [vmem:[#allocation7 + $0xdc] sm:$0xf]
        %v683 = vld [vmem:[#allocation7 + $0xe0] sm:$0xf]
        %v684 = vld [vmem:[#allocation7 + $0xe4] sm:$0xf]
        %v685 = vld [vmem:[#allocation7 + $0xe8] sm:$0xf]
        %v686 = vld [vmem:[#allocation7 + $0xec] sm:$0xf]
        %v687 = vld [vmem:[#allocation7 + $0xf0] sm:$0xf]
        %v688 = vld [vmem:[#allocation7 + $0xf4] sm:$0xf]
        %v689 = vld [vmem:[#allocation7 + $0xf8] sm:$0xf]
        %v690 = vld [vmem:[#allocation7 + $0xfc] sm:$0xf]
        %v691 = vld [vmem:[%s2] sm:$0x1]
        %v693 = vperm.slane %v691, 0
        %v759 = vunpack.c.l.b16 %v563
        %v760 = vunpack.c.h.b16 %v563
        %v761 = vunpack.c.l.b16 %v564
        %v762 = vunpack.c.h.b16 %v564
        %v763 = vunpack.c.l.b16 %v565
        %v764 = vunpack.c.h.b16 %v565
        %v765 = vunpack.c.l.b16 %v566
        %v766 = vunpack.c.h.b16 %v566
        %v767 = vunpack.c.l.b16 %v567
        %v768 = vunpack.c.h.b16 %v567
        %v769 = vunpack.c.l.b16 %v568
        %v770 = vunpack.c.h.b16 %v568
        %v771 = vunpack.c.l.b16 %v569
        %v772 = vunpack.c.h.b16 %v569
        %v773 = vunpack.c.l.b16 %v570
        %v774 = vunpack.c.h.b16 %v570
        %v775 = vunpack.c.l.b16 %v571
        %v776 = vunpack.c.h.b16 %v571
        %v777 = vunpack.c.l.b16 %v572
        %v778 = vunpack.c.h.b16 %v572
        %v779 = vunpack.c.l.b16 %v573
        %v780 = vunpack.c.h.b16 %v573
        %v781 = vunpack.c.l.b16 %v574
        %v782 = vunpack.c.h.b16 %v574
        %v783 = vunpack.c.l.b16 %v575
        %v784 = vunpack.c.h.b16 %v575
        %v785 = vunpack.c.l.b16 %v576
        %v786 = vunpack.c.h.b16 %v576
        %v787 = vunpack.c.l.b16 %v577
        %v788 = vunpack.c.h.b16 %v577
        %v789 = vunpack.c.l.b16 %v578
        %v790 = vunpack.c.h.b16 %v578
        %v791 = vunpack.c.l.b16 %v579
        %v792 = vunpack.c.h.b16 %v579
        %v793 = vunpack.c.l.b16 %v580
        %v794 = vunpack.c.h.b16 %v580
        %v795 = vunpack.c.l.b16 %v581
        %v796 = vunpack.c.h.b16 %v581
        %v797 = vunpack.c.l.b16 %v582
        %v798 = vunpack.c.h.b16 %v582
        %v799 = vunpack.c.l.b16 %v583
        %v800 = vunpack.c.h.b16 %v583
        %v801 = vunpack.c.l.b16 %v584
        %v802 = vunpack.c.h.b16 %v584
        %v803 = vunpack.c.l.b16 %v585
        %v804 = vunpack.c.h.b16 %v585
        %v805 = vunpack.c.l.b16 %v586
        %v806 = vunpack.c.h.b16 %v586
        %v807 = vunpack.c.l.b16 %v587
        %v808 = vunpack.c.h.b16 %v587
        %v809 = vunpack.c.l.b16 %v588
        %v810 = vunpack.c.h.b16 %v588
        %v811 = vunpack.c.l.b16 %v589
        %v812 = vunpack.c.h.b16 %v589
        %v813 = vunpack.c.l.b16 %v590
        %v814 = vunpack.c.h.b16 %v590
        %v815 = vunpack.c.l.b16 %v591
        %v816 = vunpack.c.h.b16 %v591
        %v817 = vunpack.c.l.b16 %v592
        %v818 = vunpack.c.h.b16 %v592
        %v819 = vunpack.c.l.b16 %v593
        %v820 = vunpack.c.h.b16 %v593
        %v821 = vunpack.c.l.b16 %v594
        %v822 = vunpack.c.h.b16 %v594
        %v823 = vunpack.c.l.b16 %v595
        %v824 = vunpack.c.h.b16 %v595
        %v825 = vunpack.c.l.b16 %v596
        %v826 = vunpack.c.h.b16 %v596
        %v827 = vunpack.c.l.b16 %v597
        %v828 = vunpack.c.h.b16 %v597
        %v829 = vunpack.c.l.b16 %v598
        %v830 = vunpack.c.h.b16 %v598
        %v831 = vunpack.c.l.b16 %v599
        %v832 = vunpack.c.h.b16 %v599
        %v833 = vunpack.c.l.b16 %v600
        %v834 = vunpack.c.h.b16 %v600
        %v835 = vunpack.c.l.b16 %v601
        %v836 = vunpack.c.h.b16 %v601
        %v837 = vunpack.c.l.b16 %v602
        %v838 = vunpack.c.h.b16 %v602
        %v839 = vunpack.c.l.b16 %v603
        %v840 = vunpack.c.h.b16 %v603
        %v841 = vunpack.c.l.b16 %v604
        %v842 = vunpack.c.h.b16 %v604
        %v843 = vunpack.c.l.b16 %v605
        %v844 = vunpack.c.h.b16 %v605
        %v845 = vunpack.c.l.b16 %v606
        %v846 = vunpack.c.h.b16 %v606
        %v847 = vunpack.c.l.b16 %v607
        %v848 = vunpack.c.h.b16 %v607
        %v849 = vunpack.c.l.b16 %v608
        %v850 = vunpack.c.h.b16 %v608
        %v851 = vunpack.c.l.b16 %v609
        %v852 = vunpack.c.h.b16 %v609
        %v853 = vunpack.c.l.b16 %v610
        %v854 = vunpack.c.h.b16 %v610
        %v855 = vunpack.c.l.b16 %v611
        %v856 = vunpack.c.h.b16 %v611
        %v857 = vunpack.c.l.b16 %v612
        %v858 = vunpack.c.h.b16 %v612
        %v859 = vunpack.c.l.b16 %v613
        %v860 = vunpack.c.h.b16 %v613
        %v861 = vunpack.c.l.b16 %v614
        %v862 = vunpack.c.h.b16 %v614
        %v863 = vunpack.c.l.b16 %v615
        %v864 = vunpack.c.h.b16 %v615
        %v865 = vunpack.c.l.b16 %v616
        %v866 = vunpack.c.h.b16 %v616
        %v867 = vunpack.c.l.b16 %v617
        %v868 = vunpack.c.h.b16 %v617
        %v869 = vunpack.c.l.b16 %v618
        %v870 = vunpack.c.h.b16 %v618
        %v871 = vunpack.c.l.b16 %v619
        %v872 = vunpack.c.h.b16 %v619
        %v873 = vunpack.c.l.b16 %v620
        %v874 = vunpack.c.h.b16 %v620
        %v875 = vunpack.c.l.b16 %v621
        %v876 = vunpack.c.h.b16 %v621
        %v877 = vunpack.c.l.b16 %v622
        %v878 = vunpack.c.h.b16 %v622
        %v879 = vunpack.c.l.b16 %v623
        %v880 = vunpack.c.h.b16 %v623
        %v881 = vunpack.c.l.b16 %v624
        %v882 = vunpack.c.h.b16 %v624
        %v883 = vunpack.c.l.b16 %v625
        %v884 = vunpack.c.h.b16 %v625
        %v885 = vunpack.c.l.b16 %v626
        %v886 = vunpack.c.h.b16 %v626
        %v887 = vpack.c.b16 %v763, %v759
        %v888 = vpack.c.b16 %v764, %v760
        %v889 = vpack.c.b16 %v765, %v761
        %v890 = vpack.c.b16 %v766, %v762
        %v891 = vpack.c.b16 %v771, %v767
        %v892 = vpack.c.b16 %v772, %v768
        %v893 = vpack.c.b16 %v773, %v769
        %v894 = vpack.c.b16 %v774, %v770
        %v895 = vpack.c.b16 %v779, %v775
        %v896 = vpack.c.b16 %v780, %v776
        %v897 = vpack.c.b16 %v781, %v777
        %v898 = vpack.c.b16 %v782, %v778
        %v899 = vpack.c.b16 %v787, %v783
        %v900 = vpack.c.b16 %v788, %v784
        %v901 = vpack.c.b16 %v789, %v785
        %v902 = vpack.c.b16 %v790, %v786
        %v903 = vpack.c.b16 %v795, %v791
        %v904 = vpack.c.b16 %v796, %v792
        %v905 = vpack.c.b16 %v797, %v793
        %v906 = vpack.c.b16 %v798, %v794
        %v907 = vpack.c.b16 %v803, %v799
        %v908 = vpack.c.b16 %v804, %v800
        %v909 = vpack.c.b16 %v805, %v801
        %v910 = vpack.c.b16 %v806, %v802
        %v911 = vpack.c.b16 %v811, %v807
        %v912 = vpack.c.b16 %v812, %v808
        %v913 = vpack.c.b16 %v813, %v809
        %v914 = vpack.c.b16 %v814, %v810
        %v915 = vpack.c.b16 %v819, %v815
        %v916 = vpack.c.b16 %v820, %v816
        %v917 = vpack.c.b16 %v821, %v817
        %v918 = vpack.c.b16 %v822, %v818
        %v919 = vpack.c.b16 %v827, %v823
        %v920 = vpack.c.b16 %v828, %v824
        %v921 = vpack.c.b16 %v829, %v825
        %v922 = vpack.c.b16 %v830, %v826
        %v923 = vpack.c.b16 %v835, %v831
        %v924 = vpack.c.b16 %v836, %v832
        %v925 = vpack.c.b16 %v837, %v833
        %v926 = vpack.c.b16 %v838, %v834
        %v927 = vpack.c.b16 %v843, %v839
        %v928 = vpack.c.b16 %v844, %v840
        %v929 = vpack.c.b16 %v845, %v841
        %v930 = vpack.c.b16 %v846, %v842
        %v931 = vpack.c.b16 %v851, %v847
        %v932 = vpack.c.b16 %v852, %v848
        %v933 = vpack.c.b16 %v853, %v849
        %v934 = vpack.c.b16 %v854, %v850
        %v935 = vpack.c.b16 %v859, %v855
        %v936 = vpack.c.b16 %v860, %v856
        %v937 = vpack.c.b16 %v861, %v857
        %v938 = vpack.c.b16 %v862, %v858
        %v939 = vpack.c.b16 %v867, %v863
        %v940 = vpack.c.b16 %v868, %v864
        %v941 = vpack.c.b16 %v869, %v865
        %v942 = vpack.c.b16 %v870, %v866
        %v943 = vpack.c.b16 %v875, %v871
        %v944 = vpack.c.b16 %v876, %v872
        %v945 = vpack.c.b16 %v877, %v873
        %v946 = vpack.c.b16 %v878, %v874
        %v947 = vpack.c.b16 %v883, %v879
        %v948 = vpack.c.b16 %v884, %v880
        %v949 = vpack.c.b16 %v885, %v881
        %v950 = vpack.c.b16 %v886, %v882
        %v1079 = vunpack.c.l.b16 %v627
        %v1080 = vunpack.c.l.b16 %v628
        %v1081 = vunpack.c.l.b16 %v629
        %v1082 = vunpack.c.l.b16 %v630
        %v1083 = vunpack.c.l.b16 %v631
        %v1084 = vunpack.c.l.b16 %v632
        %v1085 = vunpack.c.l.b16 %v633
        %v1086 = vunpack.c.l.b16 %v634
        %v1087 = vunpack.c.l.b16 %v635
        %v1088 = vunpack.c.l.b16 %v636
        %v1089 = vunpack.c.l.b16 %v637
        %v1090 = vunpack.c.l.b16 %v638
        %v1091 = vunpack.c.l.b16 %v639
        %v1092 = vunpack.c.l.b16 %v640
        %v1093 = vunpack.c.l.b16 %v641
        %v1094 = vunpack.c.l.b16 %v642
        %v1095 = vunpack.c.l.b16 %v643
        %v1096 = vunpack.c.l.b16 %v644
        %v1097 = vunpack.c.l.b16 %v645
        %v1098 = vunpack.c.l.b16 %v646
        %v1099 = vunpack.c.l.b16 %v647
        %v1100 = vunpack.c.l.b16 %v648
        %v1101 = vunpack.c.l.b16 %v649
        %v1102 = vunpack.c.l.b16 %v650
        %v1103 = vunpack.c.l.b16 %v651
        %v1104 = vunpack.c.l.b16 %v652
        %v1105 = vunpack.c.l.b16 %v653
        %v1106 = vunpack.c.l.b16 %v654
        %v1107 = vunpack.c.l.b16 %v655
        %v1108 = vunpack.c.l.b16 %v656
        %v1109 = vunpack.c.l.b16 %v657
        %v1110 = vunpack.c.l.b16 %v658
        %v1111 = vunpack.c.l.b16 %v659
        %v1112 = vunpack.c.l.b16 %v660
        %v1113 = vunpack.c.l.b16 %v661
        %v1114 = vunpack.c.l.b16 %v662
        %v1115 = vunpack.c.l.b16 %v663
        %v1116 = vunpack.c.l.b16 %v664
        %v1117 = vunpack.c.l.b16 %v665
        %v1118 = vunpack.c.l.b16 %v666
        %v1119 = vunpack.c.l.b16 %v667
        %v1120 = vunpack.c.l.b16 %v668
        %v1121 = vunpack.c.l.b16 %v669
        %v1122 = vunpack.c.l.b16 %v670
        %v1123 = vunpack.c.l.b16 %v671
        %v1124 = vunpack.c.l.b16 %v672
        %v1125 = vunpack.c.l.b16 %v673
        %v1126 = vunpack.c.l.b16 %v674
        %v1127 = vunpack.c.l.b16 %v675
        %v1128 = vunpack.c.l.b16 %v676
        %v1129 = vunpack.c.l.b16 %v677
        %v1130 = vunpack.c.l.b16 %v678
        %v1131 = vunpack.c.l.b16 %v679
        %v1132 = vunpack.c.l.b16 %v680
        %v1133 = vunpack.c.l.b16 %v681
        %v1134 = vunpack.c.l.b16 %v682
        %v1135 = vunpack.c.l.b16 %v683
        %v1136 = vunpack.c.l.b16 %v684
        %v1137 = vunpack.c.l.b16 %v685
        %v1138 = vunpack.c.l.b16 %v686
        %v1139 = vunpack.c.l.b16 %v687
        %v1140 = vunpack.c.l.b16 %v688
        %v1141 = vunpack.c.l.b16 %v689
        %v1142 = vunpack.c.l.b16 %v690
        %v1143 = vpack.c.b16 %v1080, %v1079
        %v1144 = vpack.c.b16 %v1082, %v1081
        %v1145 = vpack.c.b16 %v1084, %v1083
        %v1146 = vpack.c.b16 %v1086, %v1085
        %v1147 = vpack.c.b16 %v1088, %v1087
        %v1148 = vpack.c.b16 %v1090, %v1089
        %v1149 = vpack.c.b16 %v1092, %v1091
        %v1150 = vpack.c.b16 %v1094, %v1093
        %v1151 = vpack.c.b16 %v1096, %v1095
        %v1152 = vpack.c.b16 %v1098, %v1097
        %v1153 = vpack.c.b16 %v1100, %v1099
        %v1154 = vpack.c.b16 %v1102, %v1101
        %v1155 = vpack.c.b16 %v1104, %v1103
        %v1156 = vpack.c.b16 %v1106, %v1105
        %v1157 = vpack.c.b16 %v1108, %v1107
        %v1158 = vpack.c.b16 %v1110, %v1109
        %v1159 = vpack.c.b16 %v1112, %v1111
        %v1160 = vpack.c.b16 %v1114, %v1113
        %v1161 = vpack.c.b16 %v1116, %v1115
        %v1162 = vpack.c.b16 %v1118, %v1117
        %v1163 = vpack.c.b16 %v1120, %v1119
        %v1164 = vpack.c.b16 %v1122, %v1121
        %v1165 = vpack.c.b16 %v1124, %v1123
        %v1166 = vpack.c.b16 %v1126, %v1125
        %v1167 = vpack.c.b16 %v1128, %v1127
        %v1168 = vpack.c.b16 %v1130, %v1129
        %v1169 = vpack.c.b16 %v1132, %v1131
        %v1170 = vpack.c.b16 %v1134, %v1133
        %v1171 = vpack.c.b16 %v1136, %v1135
        %v1172 = vpack.c.b16 %v1138, %v1137
        %v1173 = vpack.c.b16 %v1140, %v1139
        %v1174 = vpack.c.b16 %v1142, %v1141
        %1207 = vmatpush.bf16.msra.mxu0 %v1150
        %1208 = vmatpush.bf16.msra.mxu0 %v1149
        %1209 = vmatpush.bf16.msra.mxu0 %v1148
        %1210 = vmatpush.bf16.msra.mxu0 %v1147
        %1211 = vmatpush.bf16.msra.mxu0 %v1146
        %1212 = vmatpush.bf16.msra.mxu0 %v1145
        %1213 = vmatpush.bf16.msra.mxu0 %v1144
        %1214 = vmatpush.bf16.msra.mxu0 %v1143
        %1215 = vmatmul.bf16.gmra.mxu0 %v887
        %v1216 = vpop.f32.mrf.mxu0
        %v1217 = vadd.f32 %v693, %v1216
        %v1218 = vpop.f32.mrf.mxu0
        %v1219 = vadd.f32 %v693, %v1218
        %1220 = vmatmul.bf16.gmra.mxu0 %v891
        %v1221 = vpop.f32.mrf.mxu0
        %v1222 = vadd.f32 %v693, %v1221
        %v1223 = vpop.f32.mrf.mxu0
        %v1224 = vadd.f32 %v693, %v1223
        %1225 = vmatmul.bf16.gmra.mxu0 %v895
        %v1226 = vpop.f32.mrf.mxu0
        %v1227 = vadd.f32 %v693, %v1226
        %v1228 = vpop.f32.mrf.mxu0
        %v1229 = vadd.f32 %v693, %v1228
        %1230 = vmatmul.bf16.gmra.mxu0 %v899
        %v1231 = vpop.f32.mrf.mxu0
        %v1232 = vadd.f32 %v693, %v1231
        %v1233 = vpop.f32.mrf.mxu0
        %v1234 = vadd.f32 %v693, %v1233
        %1235 = vmatmul.bf16.gmra.mxu0 %v903
        %v1236 = vpop.f32.mrf.mxu0
        %v1237 = vadd.f32 %v693, %v1236
        %v1238 = vpop.f32.mrf.mxu0
        %v1239 = vadd.f32 %v693, %v1238
        %1240 = vmatmul.bf16.gmra.mxu0 %v907
        %v1241 = vpop.f32.mrf.mxu0
        %v1242 = vadd.f32 %v693, %v1241
        %v1243 = vpop.f32.mrf.mxu0
        %v1244 = vadd.f32 %v693, %v1243
        %1245 = vmatmul.bf16.gmra.mxu0 %v911
        %v1246 = vpop.f32.mrf.mxu0
        %v1247 = vadd.f32 %v693, %v1246
        %v1248 = vpop.f32.mrf.mxu0
        %v1249 = vadd.f32 %v693, %v1248
        %1250 = vmatmul.bf16.gmra.mxu0 %v915
        %v1251 = vpop.f32.mrf.mxu0
        %v1252 = vadd.f32 %v693, %v1251
        %v1253 = vpop.f32.mrf.mxu0
        %v1254 = vadd.f32 %v693, %v1253
        %1255 = vmatmul.bf16.gmra.mxu0 %v919
        %v1256 = vpop.f32.mrf.mxu0
        %v1257 = vadd.f32 %v693, %v1256
        %v1258 = vpop.f32.mrf.mxu0
        %v1259 = vadd.f32 %v693, %v1258
        %1260 = vmatmul.bf16.gmra.mxu0 %v923
        %v1261 = vpop.f32.mrf.mxu0
        %v1262 = vadd.f32 %v693, %v1261
        %v1263 = vpop.f32.mrf.mxu0
        %v1264 = vadd.f32 %v693, %v1263
        %1265 = vmatmul.bf16.gmra.mxu0 %v927
        %v1266 = vpop.f32.mrf.mxu0
        %v1267 = vadd.f32 %v693, %v1266
        %v1268 = vpop.f32.mrf.mxu0
        %v1269 = vadd.f32 %v693, %v1268
        %1270 = vmatmul.bf16.gmra.mxu0 %v931
        %v1271 = vpop.f32.mrf.mxu0
        %v1272 = vadd.f32 %v693, %v1271
        %v1273 = vpop.f32.mrf.mxu0
        %v1274 = vadd.f32 %v693, %v1273
        %1275 = vmatmul.bf16.gmra.mxu0 %v935
        %v1276 = vpop.f32.mrf.mxu0
        %v1277 = vadd.f32 %v693, %v1276
        %v1278 = vpop.f32.mrf.mxu0
        %v1279 = vadd.f32 %v693, %v1278
        %1280 = vmatmul.bf16.gmra.mxu0 %v939
        %v1281 = vpop.f32.mrf.mxu0
        %v1282 = vadd.f32 %v693, %v1281
        %v1283 = vpop.f32.mrf.mxu0
        %v1284 = vadd.f32 %v693, %v1283
        %1285 = vmatmul.bf16.gmra.mxu0 %v943
        %v1286 = vpop.f32.mrf.mxu0
        %v1287 = vadd.f32 %v693, %v1286
        %v1288 = vpop.f32.mrf.mxu0
        %v1289 = vadd.f32 %v693, %v1288
        %1290 = vmatmul.bf16.gmra.mxu0 %v947
        %v1291 = vpop.f32.mrf.mxu0
        %v1292 = vadd.f32 %v693, %v1291
        %v1293 = vpop.f32.mrf.mxu0
        %v1294 = vadd.f32 %v693, %v1293
        %1295 = vdwg.mxu0
        %1296 = vmatpush.bf16.msra.mxu0 %v1158
        %1297 = vmatpush.bf16.msra.mxu0 %v1157
        %1298 = vmatpush.bf16.msra.mxu0 %v1156
        %1299 = vmatpush.bf16.msra.mxu0 %v1155
        %1300 = vmatpush.bf16.msra.mxu0 %v1154
        %1301 = vmatpush.bf16.msra.mxu0 %v1153
        %1302 = vmatpush.bf16.msra.mxu0 %v1152
        %1303 = vmatpush.bf16.msra.mxu0 %v1151
        %1304 = vmatmul.bf16.gmra.mxu0 %v888
        %v1305 = vpop.f32.mrf.mxu0
        %v1306 = vadd.f32 %v1217, %v1305
        %v1307 = vpop.f32.mrf.mxu0
        %v1308 = vadd.f32 %v1219, %v1307
        %1309 = vmatmul.bf16.gmra.mxu0 %v892
        %v1310 = vpop.f32.mrf.mxu0
        %v1311 = vadd.f32 %v1222, %v1310
        %v1312 = vpop.f32.mrf.mxu0
        %v1313 = vadd.f32 %v1224, %v1312
        %1314 = vmatmul.bf16.gmra.mxu0 %v896
        %v1315 = vpop.f32.mrf.mxu0
        %v1316 = vadd.f32 %v1227, %v1315
        %v1317 = vpop.f32.mrf.mxu0
        %v1318 = vadd.f32 %v1229, %v1317
        %1319 = vmatmul.bf16.gmra.mxu0 %v900
        %v1320 = vpop.f32.mrf.mxu0
        %v1321 = vadd.f32 %v1232, %v1320
        %v1322 = vpop.f32.mrf.mxu0
        %v1323 = vadd.f32 %v1234, %v1322
        %1324 = vmatmul.bf16.gmra.mxu0 %v904
        %v1325 = vpop.f32.mrf.mxu0
        %v1326 = vadd.f32 %v1237, %v1325
        %v1327 = vpop.f32.mrf.mxu0
        %v1328 = vadd.f32 %v1239, %v1327
        %1329 = vmatmul.bf16.gmra.mxu0 %v908
        %v1330 = vpop.f32.mrf.mxu0
        %v1331 = vadd.f32 %v1242, %v1330
        %v1332 = vpop.f32.mrf.mxu0
        %v1333 = vadd.f32 %v1244, %v1332
        %1334 = vmatmul.bf16.gmra.mxu0 %v912
        %v1335 = vpop.f32.mrf.mxu0
        %v1336 = vadd.f32 %v1247, %v1335
        %v1337 = vpop.f32.mrf.mxu0
        %v1338 = vadd.f32 %v1249, %v1337
        %1339 = vmatmul.bf16.gmra.mxu0 %v916
        %v1340 = vpop.f32.mrf.mxu0
        %v1341 = vadd.f32 %v1252, %v1340
        %v1342 = vpop.f32.mrf.mxu0
        %v1343 = vadd.f32 %v1254, %v1342
        %1344 = vmatmul.bf16.gmra.mxu0 %v920
        %v1345 = vpop.f32.mrf.mxu0
        %v1346 = vadd.f32 %v1257, %v1345
        %v1347 = vpop.f32.mrf.mxu0
        %v1348 = vadd.f32 %v1259, %v1347
        %1349 = vmatmul.bf16.gmra.mxu0 %v924
        %v1350 = vpop.f32.mrf.mxu0
        %v1351 = vadd.f32 %v1262, %v1350
        %v1352 = vpop.f32.mrf.mxu0
        %v1353 = vadd.f32 %v1264, %v1352
        %1354 = vmatmul.bf16.gmra.mxu0 %v928
        %v1355 = vpop.f32.mrf.mxu0
        %v1356 = vadd.f32 %v1267, %v1355
        %v1357 = vpop.f32.mrf.mxu0
        %v1358 = vadd.f32 %v1269, %v1357
        %1359 = vmatmul.bf16.gmra.mxu0 %v932
        %v1360 = vpop.f32.mrf.mxu0
        %v1361 = vadd.f32 %v1272, %v1360
        %v1362 = vpop.f32.mrf.mxu0
        %v1363 = vadd.f32 %v1274, %v1362
        %1364 = vmatmul.bf16.gmra.mxu0 %v936
        %v1365 = vpop.f32.mrf.mxu0
        %v1366 = vadd.f32 %v1277, %v1365
        %v1367 = vpop.f32.mrf.mxu0
        %v1368 = vadd.f32 %v1279, %v1367
        %1369 = vmatmul.bf16.gmra.mxu0 %v940
        %v1370 = vpop.f32.mrf.mxu0
        %v1371 = vadd.f32 %v1282, %v1370
        %v1372 = vpop.f32.mrf.mxu0
        %v1373 = vadd.f32 %v1284, %v1372
        %1374 = vmatmul.bf16.gmra.mxu0 %v944
        %v1375 = vpop.f32.mrf.mxu0
        %v1376 = vadd.f32 %v1287, %v1375
        %v1377 = vpop.f32.mrf.mxu0
        %v1378 = vadd.f32 %v1289, %v1377
        %1379 = vmatmul.bf16.gmra.mxu0 %v948
        %v1380 = vpop.f32.mrf.mxu0
        %v1381 = vadd.f32 %v1292, %v1380
        %v1382 = vpop.f32.mrf.mxu0
        %v1383 = vadd.f32 %v1294, %v1382
        %1384 = vdwg.mxu0
        %1385 = vmatpush.bf16.msra.mxu0 %v1166
        %1386 = vmatpush.bf16.msra.mxu0 %v1165
        %1387 = vmatpush.bf16.msra.mxu0 %v1164
        %1388 = vmatpush.bf16.msra.mxu0 %v1163
        %1389 = vmatpush.bf16.msra.mxu0 %v1162
        %1390 = vmatpush.bf16.msra.mxu0 %v1161
        %1391 = vmatpush.bf16.msra.mxu0 %v1160
        %1392 = vmatpush.bf16.msra.mxu0 %v1159
        %1393 = vmatmul.bf16.gmra.mxu0 %v889
        %v1394 = vpop.f32.mrf.mxu0
        %v1395 = vadd.f32 %v1306, %v1394
        %v1396 = vpop.f32.mrf.mxu0
        %v1397 = vadd.f32 %v1308, %v1396
        %1398 = vmatmul.bf16.gmra.mxu0 %v893
        %v1399 = vpop.f32.mrf.mxu0
        %v1400 = vadd.f32 %v1311, %v1399
        %v1401 = vpop.f32.mrf.mxu0
        %v1402 = vadd.f32 %v1313, %v1401
        %1403 = vmatmul.bf16.gmra.mxu0 %v897
        %v1404 = vpop.f32.mrf.mxu0
        %v1405 = vadd.f32 %v1316, %v1404
        %v1406 = vpop.f32.mrf.mxu0
        %v1407 = vadd.f32 %v1318, %v1406
        %1408 = vmatmul.bf16.gmra.mxu0 %v901
        %v1409 = vpop.f32.mrf.mxu0
        %v1410 = vadd.f32 %v1321, %v1409
        %v1411 = vpop.f32.mrf.mxu0
        %v1412 = vadd.f32 %v1323, %v1411
        %1413 = vmatmul.bf16.gmra.mxu0 %v905
        %v1414 = vpop.f32.mrf.mxu0
        %v1415 = vadd.f32 %v1326, %v1414
        %v1416 = vpop.f32.mrf.mxu0
        %v1417 = vadd.f32 %v1328, %v1416
        %1418 = vmatmul.bf16.gmra.mxu0 %v909
        %v1419 = vpop.f32.mrf.mxu0
        %v1420 = vadd.f32 %v1331, %v1419
        %v1421 = vpop.f32.mrf.mxu0
        %v1422 = vadd.f32 %v1333, %v1421
        %1423 = vmatmul.bf16.gmra.mxu0 %v913
        %v1424 = vpop.f32.mrf.mxu0
        %v1425 = vadd.f32 %v1336, %v1424
        %v1426 = vpop.f32.mrf.mxu0
        %v1427 = vadd.f32 %v1338, %v1426
        %1428 = vmatmul.bf16.gmra.mxu0 %v917
        %v1429 = vpop.f32.mrf.mxu0
        %v1430 = vadd.f32 %v1341, %v1429
        %v1431 = vpop.f32.mrf.mxu0
        %v1432 = vadd.f32 %v1343, %v1431
        %1433 = vmatmul.bf16.gmra.mxu0 %v921
        %v1434 = vpop.f32.mrf.mxu0
        %v1435 = vadd.f32 %v1346, %v1434
        %v1436 = vpop.f32.mrf.mxu0
        %v1437 = vadd.f32 %v1348, %v1436
        %1438 = vmatmul.bf16.gmra.mxu0 %v925
        %v1439 = vpop.f32.mrf.mxu0
        %v1440 = vadd.f32 %v1351, %v1439
        %v1441 = vpop.f32.mrf.mxu0
        %v1442 = vadd.f32 %v1353, %v1441
        %1443 = vmatmul.bf16.gmra.mxu0 %v929
        %v1444 = vpop.f32.mrf.mxu0
        %v1445 = vadd.f32 %v1356, %v1444
        %v1446 = vpop.f32.mrf.mxu0
        %v1447 = vadd.f32 %v1358, %v1446
        %1448 = vmatmul.bf16.gmra.mxu0 %v933
        %v1449 = vpop.f32.mrf.mxu0
        %v1450 = vadd.f32 %v1361, %v1449
        %v1451 = vpop.f32.mrf.mxu0
        %v1452 = vadd.f32 %v1363, %v1451
        %1453 = vmatmul.bf16.gmra.mxu0 %v937
        %v1454 = vpop.f32.mrf.mxu0
        %v1455 = vadd.f32 %v1366, %v1454
        %v1456 = vpop.f32.mrf.mxu0
        %v1457 = vadd.f32 %v1368, %v1456
        %1458 = vmatmul.bf16.gmra.mxu0 %v941
        %v1459 = vpop.f32.mrf.mxu0
        %v1460 = vadd.f32 %v1371, %v1459
        %v1461 = vpop.f32.mrf.mxu0
        %v1462 = vadd.f32 %v1373, %v1461
        %1463 = vmatmul.bf16.gmra.mxu0 %v945
        %v1464 = vpop.f32.mrf.mxu0
        %v1465 = vadd.f32 %v1376, %v1464
        %v1466 = vpop.f32.mrf.mxu0
        %v1467 = vadd.f32 %v1378, %v1466
        %1468 = vmatmul.bf16.gmra.mxu0 %v949
        %v1469 = vpop.f32.mrf.mxu0
        %v1470 = vadd.f32 %v1381, %v1469
        %v1471 = vpop.f32.mrf.mxu0
        %v1472 = vadd.f32 %v1383, %v1471
        %1473 = vdwg.mxu0
        %1474 = vmatpush.bf16.msra.mxu0 %v1174
        %1475 = vmatpush.bf16.msra.mxu0 %v1173
        %1476 = vmatpush.bf16.msra.mxu0 %v1172
        %1477 = vmatpush.bf16.msra.mxu0 %v1171
        %1478 = vmatpush.bf16.msra.mxu0 %v1170
        %1479 = vmatpush.bf16.msra.mxu0 %v1169
        %1480 = vmatpush.bf16.msra.mxu0 %v1168
        %1481 = vmatpush.bf16.msra.mxu0 %v1167
        %1482 = vmatmul.bf16.gmra.mxu0 %v890
        %v1483 = vpop.f32.mrf.mxu0
        %v1484 = vadd.f32 %v1395, %v1483
        %v1485 = vpop.f32.mrf.mxu0
        %v1486 = vadd.f32 %v1397, %v1485
        %1487 = vmatmul.bf16.gmra.mxu0 %v894
        %v1488 = vpop.f32.mrf.mxu0
        %v1489 = vadd.f32 %v1400, %v1488
        %v1490 = vpop.f32.mrf.mxu0
        %v1491 = vadd.f32 %v1402, %v1490
        %1492 = vmatmul.bf16.gmra.mxu0 %v898
        %v1493 = vpop.f32.mrf.mxu0
        %v1494 = vadd.f32 %v1405, %v1493
        %v1495 = vpop.f32.mrf.mxu0
        %v1496 = vadd.f32 %v1407, %v1495
        %1497 = vmatmul.bf16.gmra.mxu0 %v902
        %v1498 = vpop.f32.mrf.mxu0
        %v1499 = vadd.f32 %v1410, %v1498
        %v1500 = vpop.f32.mrf.mxu0
        %v1501 = vadd.f32 %v1412, %v1500
        %1502 = vmatmul.bf16.gmra.mxu0 %v906
        %v1503 = vpop.f32.mrf.mxu0
        %v1504 = vadd.f32 %v1415, %v1503
        %v1505 = vpop.f32.mrf.mxu0
        %v1506 = vadd.f32 %v1417, %v1505
        %1507 = vmatmul.bf16.gmra.mxu0 %v910
        %v1508 = vpop.f32.mrf.mxu0
        %v1509 = vadd.f32 %v1420, %v1508
        %v1510 = vpop.f32.mrf.mxu0
        %v1511 = vadd.f32 %v1422, %v1510
        %1512 = vmatmul.bf16.gmra.mxu0 %v914
        %v1513 = vpop.f32.mrf.mxu0
        %v1514 = vadd.f32 %v1425, %v1513
        %v1515 = vpop.f32.mrf.mxu0
        %v1516 = vadd.f32 %v1427, %v1515
        %1517 = vmatmul.bf16.gmra.mxu0 %v918
        %v1518 = vpop.f32.mrf.mxu0
        %v1519 = vadd.f32 %v1430, %v1518
        %v1520 = vpop.f32.mrf.mxu0
        %v1521 = vadd.f32 %v1432, %v1520
        %1522 = vmatmul.bf16.gmra.mxu0 %v922
        %v1523 = vpop.f32.mrf.mxu0
        %v1524 = vadd.f32 %v1435, %v1523
        %v1525 = vpop.f32.mrf.mxu0
        %v1526 = vadd.f32 %v1437, %v1525
        %1527 = vmatmul.bf16.gmra.mxu0 %v926
        %v1528 = vpop.f32.mrf.mxu0
        %v1529 = vadd.f32 %v1440, %v1528
        %v1530 = vpop.f32.mrf.mxu0
        %v1531 = vadd.f32 %v1442, %v1530
        %1532 = vmatmul.bf16.gmra.mxu0 %v930
        %v1533 = vpop.f32.mrf.mxu0
        %v1534 = vadd.f32 %v1445, %v1533
        %v1535 = vpop.f32.mrf.mxu0
        %v1536 = vadd.f32 %v1447, %v1535
        %1537 = vmatmul.bf16.gmra.mxu0 %v934
        %v1538 = vpop.f32.mrf.mxu0
        %v1539 = vadd.f32 %v1450, %v1538
        %v1540 = vpop.f32.mrf.mxu0
        %v1541 = vadd.f32 %v1452, %v1540
        %1542 = vmatmul.bf16.gmra.mxu0 %v938
        %v1543 = vpop.f32.mrf.mxu0
        %v1544 = vadd.f32 %v1455, %v1543
        %v1545 = vpop.f32.mrf.mxu0
        %v1546 = vadd.f32 %v1457, %v1545
        %1547 = vmatmul.bf16.gmra.mxu0 %v942
        %v1548 = vpop.f32.mrf.mxu0
        %v1549 = vadd.f32 %v1460, %v1548
        %v1550 = vpop.f32.mrf.mxu0
        %v1551 = vadd.f32 %v1462, %v1550
        %1552 = vmatmul.bf16.gmra.mxu0 %v946
        %v1553 = vpop.f32.mrf.mxu0
        %v1554 = vadd.f32 %v1465, %v1553
        %v1555 = vpop.f32.mrf.mxu0
        %v1556 = vadd.f32 %v1467, %v1555
        %1557 = vmatmul.bf16.gmra.mxu0 %v950
        %v1558 = vpop.f32.mrf.mxu0
        %v1559 = vadd.f32 %v1470, %v1558
        %v1560 = vpop.f32.mrf.mxu0
        %v1561 = vadd.f32 %v1472, %v1560
        %1562 = vdwg.mxu0
        %v1563 = vmax.f32 %v1484, 0.0
        %v1564 = vmax.f32 %v1486, 0.0
        %v1565 = vmax.f32 %v1489, 0.0
        %v1566 = vmax.f32 %v1491, 0.0
        %v1567 = vmax.f32 %v1494, 0.0
        %v1568 = vmax.f32 %v1496, 0.0
        %v1569 = vmax.f32 %v1499, 0.0
        %v1570 = vmax.f32 %v1501, 0.0
        %v1571 = vmax.f32 %v1504, 0.0
        %v1572 = vmax.f32 %v1506, 0.0
        %v1573 = vmax.f32 %v1509, 0.0
        %v1574 = vmax.f32 %v1511, 0.0
        %v1575 = vmax.f32 %v1514, 0.0
        %v1576 = vmax.f32 %v1516, 0.0
        %v1577 = vmax.f32 %v1519, 0.0
        %v1578 = vmax.f32 %v1521, 0.0
        %v1579 = vmax.f32 %v1524, 0.0
        %v1580 = vmax.f32 %v1526, 0.0
        %v1581 = vmax.f32 %v1529, 0.0
        %v1582 = vmax.f32 %v1531, 0.0
        %v1583 = vmax.f32 %v1534, 0.0
        %v1584 = vmax.f32 %v1536, 0.0
        %v1585 = vmax.f32 %v1539, 0.0
        %v1586 = vmax.f32 %v1541, 0.0
        %v1587 = vmax.f32 %v1544, 0.0
        %v1588 = vmax.f32 %v1546, 0.0
        %v1589 = vmax.f32 %v1549, 0.0
        %v1590 = vmax.f32 %v1551, 0.0
        %v1591 = vmax.f32 %v1554, 0.0
        %v1592 = vmax.f32 %v1556, 0.0
        %v1593 = vmax.f32 %v1559, 0.0
        %v1594 = vmax.f32 %v1561, 0.0
        %s1595 = scalar_lea.vmem [#allocation2], 32
        %1596 = vst [vmem:[%s1595 + $0x8] sm:$0xff] %v1563
        %1597 = vst [vmem:[%s1595 + $0x10] sm:$0xff] %v1564
        %1598 = vst [vmem:[%s1595 + $0x28] sm:$0xff] %v1565
        %1599 = vst [vmem:[%s1595 + $0x30] sm:$0xff] %v1566
        %1600 = vst [vmem:[%s1595 + $0x48] sm:$0xff] %v1567
        %1601 = vst [vmem:[%s1595 + $0x50] sm:$0xff] %v1568
        %1602 = vst [vmem:[%s1595 + $0x68] sm:$0xff] %v1569
        %1603 = vst [vmem:[%s1595 + $0x70] sm:$0xff] %v1570
        %1604 = vst [vmem:[%s1595 + $0x88] sm:$0xff] %v1571
        %1605 = vst [vmem:[%s1595 + $0x90] sm:$0xff] %v1572
        %1606 = vst [vmem:[%s1595 + $0xa8] sm:$0xff] %v1573
        %1607 = vst [vmem:[%s1595 + $0xb0] sm:$0xff] %v1574
        %1608 = vst [vmem:[%s1595 + $0xc8] sm:$0xff] %v1575
        %1609 = vst [vmem:[%s1595 + $0xd0] sm:$0xff] %v1576
        %1610 = vst [vmem:[%s1595 + $0xe8] sm:$0xff] %v1577
        %1611 = vst [vmem:[%s1595 + $0xf0] sm:$0xff] %v1578
        %1612 = vst [vmem:[%s1595 + $0x108] sm:$0xff] %v1579
        %1613 = vst [vmem:[%s1595 + $0x110] sm:$0xff] %v1580
        %1614 = vst [vmem:[%s1595 + $0x128] sm:$0xff] %v1581
        %1615 = vst [vmem:[%s1595 + $0x130] sm:$0xff] %v1582
        %1616 = vst [vmem:[%s1595 + $0x148] sm:$0xff] %v1583
        %1617 = vst [vmem:[%s1595 + $0x150] sm:$0xff] %v1584
        %1618 = vst [vmem:[%s1595 + $0x168] sm:$0xff] %v1585
        %1619 = vst [vmem:[%s1595 + $0x170] sm:$0xff] %v1586
        %1620 = vst [vmem:[%s1595 + $0x188] sm:$0xff] %v1587
        %1621 = vst [vmem:[%s1595 + $0x190] sm:$0xff] %v1588
        %1622 = vst [vmem:[%s1595 + $0x1a8] sm:$0xff] %v1589
        %1623 = vst [vmem:[%s1595 + $0x1b0] sm:$0xff] %v1590
        %1624 = vst [vmem:[%s1595 + $0x1c8] sm:$0xff] %v1591
        %1625 = vst [vmem:[%s1595 + $0x1d0] sm:$0xff] %v1592
        %1626 = vst [vmem:[%s1595 + $0x1e8] sm:$0xff] %v1593
        %1627 = vst [vmem:[%s1595 + $0x1f0] sm:$0xff] %v1594
        %v1628 = vld [vmem:[#allocation2 + $0x7] sm:$0xff]
        %v1629 = vld [vmem:[#allocation2 + $0xf] sm:$0xff]
        %v1630 = vld [vmem:[#allocation2 + $0x27] sm:$0xff]
        %v1631 = vld [vmem:[#allocation2 + $0x2f] sm:$0xff]
        %v1632 = vld [vmem:[#allocation2 + $0x47] sm:$0xff]
        %v1633 = vld [vmem:[#allocation2 + $0x4f] sm:$0xff]
        %v1634 = vld [vmem:[#allocation2 + $0x67] sm:$0xff]
        %v1635 = vld [vmem:[#allocation2 + $0x6f] sm:$0xff]
        %v1636 = vld [vmem:[#allocation2 + $0x87] sm:$0xff]
        %v1637 = vld [vmem:[#allocation2 + $0x8f] sm:$0xff]
        %v1638 = vld [vmem:[#allocation2 + $0xa7] sm:$0xff]
        %v1639 = vld [vmem:[#allocation2 + $0xaf] sm:$0xff]
        %v1640 = vld [vmem:[#allocation2 + $0xc7] sm:$0xff]
        %v1641 = vld [vmem:[#allocation2 + $0xcf] sm:$0xff]
        %v1642 = vld [vmem:[#allocation2 + $0xe7] sm:$0xff]
        %v1643 = vld [vmem:[#allocation2 + $0xef] sm:$0xff]
        %v1644 = vld [vmem:[#allocation2 + $0x107] sm:$0xff]
        %v1645 = vld [vmem:[#allocation2 + $0x10f] sm:$0xff]
        %v1646 = vld [vmem:[#allocation2 + $0x127] sm:$0xff]
        %v1647 = vld [vmem:[#allocation2 + $0x12f] sm:$0xff]
        %v1648 = vld [vmem:[#allocation2 + $0x147] sm:$0xff]
        %v1649 = vld [vmem:[#allocation2 + $0x14f] sm:$0xff]
        %v1650 = vld [vmem:[#allocation2 + $0x167] sm:$0xff]
        %v1651 = vld [vmem:[#allocation2 + $0x16f] sm:$0xff]
        %v1652 = vld [vmem:[#allocation2 + $0x187] sm:$0xff]
        %v1653 = vld [vmem:[#allocation2 + $0x18f] sm:$0xff]
        %v1654 = vld [vmem:[#allocation2 + $0x1a7] sm:$0xff]
        %v1655 = vld [vmem:[#allocation2 + $0x1af] sm:$0xff]
        %v1656 = vld [vmem:[#allocation2 + $0x1c7] sm:$0xff]
        %v1657 = vld [vmem:[#allocation2 + $0x1cf] sm:$0xff]
        %v1658 = vld [vmem:[#allocation2 + $0x1e7] sm:$0xff]
        %v1659 = vld [vmem:[#allocation2 + $0x1ef] sm:$0xff]
        %v1660 = vpack.c.bf16 %v1628, %v1628
        %v1661 = vpack.c.bf16 %v1629, %v1629
        %v1662 = vpack.c.bf16 %v1630, %v1630
        %v1663 = vpack.c.bf16 %v1631, %v1631
        %v1664 = vpack.c.bf16 %v1632, %v1632
        %v1665 = vpack.c.bf16 %v1633, %v1633
        %v1666 = vpack.c.bf16 %v1634, %v1634
        %v1667 = vpack.c.bf16 %v1635, %v1635
        %v1668 = vpack.c.bf16 %v1636, %v1636
        %v1669 = vpack.c.bf16 %v1637, %v1637
        %v1670 = vpack.c.bf16 %v1638, %v1638
        %v1671 = vpack.c.bf16 %v1639, %v1639
        %v1672 = vpack.c.bf16 %v1640, %v1640
        %v1673 = vpack.c.bf16 %v1641, %v1641
        %v1674 = vpack.c.bf16 %v1642, %v1642
        %v1675 = vpack.c.bf16 %v1643, %v1643
        %v1676 = vpack.c.bf16 %v1644, %v1644
        %v1677 = vpack.c.bf16 %v1645, %v1645
        %v1678 = vpack.c.bf16 %v1646, %v1646
        %v1679 = vpack.c.bf16 %v1647, %v1647
        %v1680 = vpack.c.bf16 %v1648, %v1648
        %v1681 = vpack.c.bf16 %v1649, %v1649
        %v1682 = vpack.c.bf16 %v1650, %v1650
        %v1683 = vpack.c.bf16 %v1651, %v1651
        %v1684 = vpack.c.bf16 %v1652, %v1652
        %v1685 = vpack.c.bf16 %v1653, %v1653
        %v1686 = vpack.c.bf16 %v1654, %v1654
        %v1687 = vpack.c.bf16 %v1655, %v1655
        %v1688 = vpack.c.bf16 %v1656, %v1656
        %v1689 = vpack.c.bf16 %v1657, %v1657
        %v1690 = vpack.c.bf16 %v1658, %v1658
        %v1691 = vpack.c.bf16 %v1659, %v1659
        %1692 = vst [vmem:[#allocation3] sm:$0xf] %v1660
        %1693 = vst [vmem:[#allocation3 + $0x24] sm:$0xf] %v1661
        %1694 = vst [vmem:[#allocation3 + $0x48] sm:$0xf] %v1662
        %1695 = vst [vmem:[#allocation3 + $0x6c] sm:$0xf] %v1663
        %1696 = vst [vmem:[#allocation3 + $0x90] sm:$0xf] %v1664
        %1697 = vst [vmem:[#allocation3 + $0xb4] sm:$0xf] %v1665
        %1698 = vst [vmem:[#allocation3 + $0xd8] sm:$0xf] %v1666
        %1699 = vst [vmem:[#allocation3 + $0xfc] sm:$0xf] %v1667
        %1700 = vst [vmem:[#allocation3 + $0x120] sm:$0xf] %v1668
        %1701 = vst [vmem:[#allocation3 + $0x144] sm:$0xf] %v1669
        %1702 = vst [vmem:[#allocation3 + $0x168] sm:$0xf] %v1670
        %1703 = vst [vmem:[#allocation3 + $0x18c] sm:$0xf] %v1671
        %1704 = vst [vmem:[#allocation3 + $0x1b0] sm:$0xf] %v1672
        %1705 = vst [vmem:[#allocation3 + $0x1d4] sm:$0xf] %v1673
        %1706 = vst [vmem:[#allocation3 + $0x1f8] sm:$0xf] %v1674
        %1707 = vst [vmem:[#allocation3 + $0x21c] sm:$0xf] %v1675
        %1708 = vst [vmem:[#allocation3 + $0x240] sm:$0xf] %v1676
        %1709 = vst [vmem:[#allocation3 + $0x264] sm:$0xf] %v1677
        %1710 = vst [vmem:[#allocation3 + $0x288] sm:$0xf] %v1678
        %1711 = vst [vmem:[#allocation3 + $0x2ac] sm:$0xf] %v1679
        %1712 = vst [vmem:[#allocation3 + $0x2d0] sm:$0xf] %v1680
        %1713 = vst [vmem:[#allocation3 + $0x2f4] sm:$0xf] %v1681
        %1714 = vst [vmem:[#allocation3 + $0x318] sm:$0xf] %v1682
        %1715 = vst [vmem:[#allocation3 + $0x33c] sm:$0xf] %v1683
        %1716 = vst [vmem:[#allocation3 + $0x360] sm:$0xf] %v1684
        %1717 = vst [vmem:[#allocation3 + $0x384] sm:$0xf] %v1685
        %1718 = vst [vmem:[#allocation3 + $0x3a8] sm:$0xf] %v1686
        %1719 = vst [vmem:[#allocation3 + $0x3cc] sm:$0xf] %v1687
        %1720 = vst [vmem:[#allocation3 + $0x3f0] sm:$0xf] %v1688
        %1721 = vst [vmem:[#allocation3 + $0x414] sm:$0xf] %v1689
        %1722 = vst [vmem:[#allocation3 + $0x438] sm:$0xf] %v1690
        %1723 = vst [vmem:[#allocation3 + $0x45c] sm:$0xf] %v1691
        %v1724 = vld [vmem:[#allocation2 + $0x8] sm:$0xff]
        %v1725 = vld [vmem:[#allocation2 + $0x10] sm:$0xff]
        %v1726 = vld [vmem:[#allocation2 + $0x28] sm:$0xff]
        %v1727 = vld [vmem:[#allocation2 + $0x30] sm:$0xff]
        %v1728 = vld [vmem:[#allocation2 + $0x48] sm:$0xff]
        %v1729 = vld [vmem:[#allocation2 + $0x50] sm:$0xff]
        %v1730 = vld [vmem:[#allocation2 + $0x68] sm:$0xff]
        %v1731 = vld [vmem:[#allocation2 + $0x70] sm:$0xff]
        %v1732 = vld [vmem:[#allocation2 + $0x88] sm:$0xff]
        %v1733 = vld [vmem:[#allocation2 + $0x90] sm:$0xff]
        %v1734 = vld [vmem:[#allocation2 + $0xa8] sm:$0xff]
        %v1735 = vld [vmem:[#allocation2 + $0xb0] sm:$0xff]
        %v1736 = vld [vmem:[#allocation2 + $0xc8] sm:$0xff]
        %v1737 = vld [vmem:[#allocation2 + $0xd0] sm:$0xff]
        %v1738 = vld [vmem:[#allocation2 + $0xe8] sm:$0xff]
        %v1739 = vld [vmem:[#allocation2 + $0xf0] sm:$0xff]
        %v1740 = vld [vmem:[#allocation2 + $0x108] sm:$0xff]
        %v1741 = vld [vmem:[#allocation2 + $0x110] sm:$0xff]
        %v1742 = vld [vmem:[#allocation2 + $0x128] sm:$0xff]
        %v1743 = vld [vmem:[#allocation2 + $0x130] sm:$0xff]
        %v1744 = vld [vmem:[#allocation2 + $0x148] sm:$0xff]
        %v1745 = vld [vmem:[#allocation2 + $0x150] sm:$0xff]
        %v1746 = vld [vmem:[#allocation2 + $0x168] sm:$0xff]
        %v1747 = vld [vmem:[#allocation2 + $0x170] sm:$0xff]
        %v1748 = vld [vmem:[#allocation2 + $0x188] sm:$0xff]
        %v1749 = vld [vmem:[#allocation2 + $0x190] sm:$0xff]
        %v1750 = vld [vmem:[#allocation2 + $0x1a8] sm:$0xff]
        %v1751 = vld [vmem:[#allocation2 + $0x1b0] sm:$0xff]
        %v1752 = vld [vmem:[#allocation2 + $0x1c8] sm:$0xff]
        %v1753 = vld [vmem:[#allocation2 + $0x1d0] sm:$0xff]
        %v1754 = vld [vmem:[#allocation2 + $0x1e8] sm:$0xff]
        %v1755 = vld [vmem:[#allocation2 + $0x1f0] sm:$0xff]
        %v1756 = vpack.c.bf16 %v1724, %v1724
        %v1757 = vpack.c.bf16 %v1725, %v1725
        %v1758 = vpack.c.bf16 %v1726, %v1726
        %v1759 = vpack.c.bf16 %v1727, %v1727
        %v1760 = vpack.c.bf16 %v1728, %v1728
        %v1761 = vpack.c.bf16 %v1729, %v1729
        %v1762 = vpack.c.bf16 %v1730, %v1730
        %v1763 = vpack.c.bf16 %v1731, %v1731
        %v1764 = vpack.c.bf16 %v1732, %v1732
        %v1765 = vpack.c.bf16 %v1733, %v1733
        %v1766 = vpack.c.bf16 %v1734, %v1734
        %v1767 = vpack.c.bf16 %v1735, %v1735
        %v1768 = vpack.c.bf16 %v1736, %v1736
        %v1769 = vpack.c.bf16 %v1737, %v1737
        %v1770 = vpack.c.bf16 %v1738, %v1738
        %v1771 = vpack.c.bf16 %v1739, %v1739
        %v1772 = vpack.c.bf16 %v1740, %v1740
        %v1773 = vpack.c.bf16 %v1741, %v1741
        %v1774 = vpack.c.bf16 %v1742, %v1742
        %v1775 = vpack.c.bf16 %v1743, %v1743
        %v1776 = vpack.c.bf16 %v1744, %v1744
        %v1777 = vpack.c.bf16 %v1745, %v1745
        %v1778 = vpack.c.bf16 %v1746, %v1746
        %v1779 = vpack.c.bf16 %v1747, %v1747
        %v1780 = vpack.c.bf16 %v1748, %v1748
        %v1781 = vpack.c.bf16 %v1749, %v1749
        %v1782 = vpack.c.bf16 %v1750, %v1750
        %v1783 = vpack.c.bf16 %v1751, %v1751
        %v1784 = vpack.c.bf16 %v1752, %v1752
        %v1785 = vpack.c.bf16 %v1753, %v1753
        %v1786 = vpack.c.bf16 %v1754, %v1754
        %v1787 = vpack.c.bf16 %v1755, %v1755
        %1788 = vst [vmem:[#allocation3 + $0x4] sm:$0xf] %v1756
        %1789 = vst [vmem:[#allocation3 + $0x28] sm:$0xf] %v1757
        %1790 = vst [vmem:[#allocation3 + $0x4c] sm:$0xf] %v1758
        %1791 = vst [vmem:[#allocation3 + $0x70] sm:$0xf] %v1759
        %1792 = vst [vmem:[#allocation3 + $0x94] sm:$0xf] %v1760
        %1793 = vst [vmem:[#allocation3 + $0xb8] sm:$0xf] %v1761
        %1794 = vst [vmem:[#allocation3 + $0xdc] sm:$0xf] %v1762
        %1795 = vst [vmem:[#allocation3 + $0x100] sm:$0xf] %v1763
        %1796 = vst [vmem:[#allocation3 + $0x124] sm:$0xf] %v1764
        %1797 = vst [vmem:[#allocation3 + $0x148] sm:$0xf] %v1765
        %1798 = vst [vmem:[#allocation3 + $0x16c] sm:$0xf] %v1766
        %1799 = vst [vmem:[#allocation3 + $0x190] sm:$0xf] %v1767
        %1800 = vst [vmem:[#allocation3 + $0x1b4] sm:$0xf] %v1768
        %1801 = vst [vmem:[#allocation3 + $0x1d8] sm:$0xf] %v1769
        %1802 = vst [vmem:[#allocation3 + $0x1fc] sm:$0xf] %v1770
        %1803 = vst [vmem:[#allocation3 + $0x220] sm:$0xf] %v1771
        %1804 = vst [vmem:[#allocation3 + $0x244] sm:$0xf] %v1772
        %1805 = vst [vmem:[#allocation3 + $0x268] sm:$0xf] %v1773
        %1806 = vst [vmem:[#allocation3 + $0x28c] sm:$0xf] %v1774
        %1807 = vst [vmem:[#allocation3 + $0x2b0] sm:$0xf] %v1775
        %1808 = vst [vmem:[#allocation3 + $0x2d4] sm:$0xf] %v1776
        %1809 = vst [vmem:[#allocation3 + $0x2f8] sm:$0xf] %v1777
        %1810 = vst [vmem:[#allocation3 + $0x31c] sm:$0xf] %v1778
        %1811 = vst [vmem:[#allocation3 + $0x340] sm:$0xf] %v1779
        %1812 = vst [vmem:[#allocation3 + $0x364] sm:$0xf] %v1780
        %1813 = vst [vmem:[#allocation3 + $0x388] sm:$0xf] %v1781
        %1814 = vst [vmem:[#allocation3 + $0x3ac] sm:$0xf] %v1782
        %1815 = vst [vmem:[#allocation3 + $0x3d0] sm:$0xf] %v1783
        %1816 = vst [vmem:[#allocation3 + $0x3f4] sm:$0xf] %v1784
        %1817 = vst [vmem:[#allocation3 + $0x418] sm:$0xf] %v1785
        %1818 = vst [vmem:[#allocation3 + $0x43c] sm:$0xf] %v1786
        %1819 = vst [vmem:[#allocation3 + $0x460] sm:$0xf] %v1787
        %v1820 = vld [vmem:[#allocation2 + $0x9] sm:$0xff]
        %v1821 = vld [vmem:[#allocation2 + $0x11] sm:$0xff]
        %v1822 = vld [vmem:[#allocation2 + $0x29] sm:$0xff]
        %v1823 = vld [vmem:[#allocation2 + $0x31] sm:$0xff]
        %v1824 = vld [vmem:[#allocation2 + $0x49] sm:$0xff]
        %v1825 = vld [vmem:[#allocation2 + $0x51] sm:$0xff]
        %v1826 = vld [vmem:[#allocation2 + $0x69] sm:$0xff]
        %v1827 = vld [vmem:[#allocation2 + $0x71] sm:$0xff]
        %v1828 = vld [vmem:[#allocation2 + $0x89] sm:$0xff]
        %v1829 = vld [vmem:[#allocation2 + $0x91] sm:$0xff]
        %v1830 = vld [vmem:[#allocation2 + $0xa9] sm:$0xff]
        %v1831 = vld [vmem:[#allocation2 + $0xb1] sm:$0xff]
        %v1832 = vld [vmem:[#allocation2 + $0xc9] sm:$0xff]
        %v1833 = vld [vmem:[#allocation2 + $0xd1] sm:$0xff]
        %v1834 = vld [vmem:[#allocation2 + $0xe9] sm:$0xff]
        %v1835 = vld [vmem:[#allocation2 + $0xf1] sm:$0xff]
        %v1836 = vld [vmem:[#allocation2 + $0x109] sm:$0xff]
        %v1837 = vld [vmem:[#allocation2 + $0x111] sm:$0xff]
        %v1838 = vld [vmem:[#allocation2 + $0x129] sm:$0xff]
        %v1839 = vld [vmem:[#allocation2 + $0x131] sm:$0xff]
        %v1840 = vld [vmem:[#allocation2 + $0x149] sm:$0xff]
        %v1841 = vld [vmem:[#allocation2 + $0x151] sm:$0xff]
        %v1842 = vld [vmem:[#allocation2 + $0x169] sm:$0xff]
        %v1843 = vld [vmem:[#allocation2 + $0x171] sm:$0xff]
        %v1844 = vld [vmem:[#allocation2 + $0x189] sm:$0xff]
        %v1845 = vld [vmem:[#allocation2 + $0x191] sm:$0xff]
        %v1846 = vld [vmem:[#allocation2 + $0x1a9] sm:$0xff]
        %v1847 = vld [vmem:[#allocation2 + $0x1b1] sm:$0xff]
        %v1848 = vld [vmem:[#allocation2 + $0x1c9] sm:$0xff]
        %v1849 = vld [vmem:[#allocation2 + $0x1d1] sm:$0xff]
        %v1850 = vld [vmem:[#allocation2 + $0x1e9] sm:$0xff]
        %v1851 = vld [vmem:[#allocation2 + $0x1f1] sm:$0xff]
        %v1852 = vpack.c.bf16 %v1820, %v1820
        %v1853 = vpack.c.bf16 %v1821, %v1821
        %v1854 = vpack.c.bf16 %v1822, %v1822
        %v1855 = vpack.c.bf16 %v1823, %v1823
        %v1856 = vpack.c.bf16 %v1824, %v1824
        %v1857 = vpack.c.bf16 %v1825, %v1825
        %v1858 = vpack.c.bf16 %v1826, %v1826
        %v1859 = vpack.c.bf16 %v1827, %v1827
        %v1860 = vpack.c.bf16 %v1828, %v1828
        %v1861 = vpack.c.bf16 %v1829, %v1829
        %v1862 = vpack.c.bf16 %v1830, %v1830
        %v1863 = vpack.c.bf16 %v1831, %v1831
        %v1864 = vpack.c.bf16 %v1832, %v1832
        %v1865 = vpack.c.bf16 %v1833, %v1833
        %v1866 = vpack.c.bf16 %v1834, %v1834
        %v1867 = vpack.c.bf16 %v1835, %v1835
        %v1868 = vpack.c.bf16 %v1836, %v1836
        %v1869 = vpack.c.bf16 %v1837, %v1837
        %v1870 = vpack.c.bf16 %v1838, %v1838
        %v1871 = vpack.c.bf16 %v1839, %v1839
        %v1872 = vpack.c.bf16 %v1840, %v1840
        %v1873 = vpack.c.bf16 %v1841, %v1841
        %v1874 = vpack.c.bf16 %v1842, %v1842
        %v1875 = vpack.c.bf16 %v1843, %v1843
        %v1876 = vpack.c.bf16 %v1844, %v1844
        %v1877 = vpack.c.bf16 %v1845, %v1845
        %v1878 = vpack.c.bf16 %v1846, %v1846
        %v1879 = vpack.c.bf16 %v1847, %v1847
        %v1880 = vpack.c.bf16 %v1848, %v1848
        %v1881 = vpack.c.bf16 %v1849, %v1849
        %v1882 = vpack.c.bf16 %v1850, %v1850
        %v1883 = vpack.c.bf16 %v1851, %v1851
        %1884 = vst [vmem:[#allocation3 + $0x8] sm:$0xf] %v1852
        %1885 = vst [vmem:[#allocation3 + $0x2c] sm:$0xf] %v1853
        %1886 = vst [vmem:[#allocation3 + $0x50] sm:$0xf] %v1854
        %1887 = vst [vmem:[#allocation3 + $0x74] sm:$0xf] %v1855
        %1888 = vst [vmem:[#allocation3 + $0x98] sm:$0xf] %v1856
        %1889 = vst [vmem:[#allocation3 + $0xbc] sm:$0xf] %v1857
        %1890 = vst [vmem:[#allocation3 + $0xe0] sm:$0xf] %v1858
        %1891 = vst [vmem:[#allocation3 + $0x104] sm:$0xf] %v1859
        %1892 = vst [vmem:[#allocation3 + $0x128] sm:$0xf] %v1860
        %1893 = vst [vmem:[#allocation3 + $0x14c] sm:$0xf] %v1861
        %1894 = vst [vmem:[#allocation3 + $0x170] sm:$0xf] %v1862
        %1895 = vst [vmem:[#allocation3 + $0x194] sm:$0xf] %v1863
        %1896 = vst [vmem:[#allocation3 + $0x1b8] sm:$0xf] %v1864
        %1897 = vst [vmem:[#allocation3 + $0x1dc] sm:$0xf] %v1865
        %1898 = vst [vmem:[#allocation3 + $0x200] sm:$0xf] %v1866
        %1899 = vst [vmem:[#allocation3 + $0x224] sm:$0xf] %v1867
        %1900 = vst [vmem:[#allocation3 + $0x248] sm:$0xf] %v1868
        %1901 = vst [vmem:[#allocation3 + $0x26c] sm:$0xf] %v1869
        %1902 = vst [vmem:[#allocation3 + $0x290] sm:$0xf] %v1870
        %1903 = vst [vmem:[#allocation3 + $0x2b4] sm:$0xf] %v1871
        %1904 = vst [vmem:[#allocation3 + $0x2d8] sm:$0xf] %v1872
        %1905 = vst [vmem:[#allocation3 + $0x2fc] sm:$0xf] %v1873
        %1906 = vst [vmem:[#allocation3 + $0x320] sm:$0xf] %v1874
        %1907 = vst [vmem:[#allocation3 + $0x344] sm:$0xf] %v1875
        %1908 = vst [vmem:[#allocation3 + $0x368] sm:$0xf] %v1876
        %1909 = vst [vmem:[#allocation3 + $0x38c] sm:$0xf] %v1877
        %1910 = vst [vmem:[#allocation3 + $0x3b0] sm:$0xf] %v1878
        %1911 = vst [vmem:[#allocation3 + $0x3d4] sm:$0xf] %v1879
        %1912 = vst [vmem:[#allocation3 + $0x3f8] sm:$0xf] %v1880
        %1913 = vst [vmem:[#allocation3 + $0x41c] sm:$0xf] %v1881
        %1914 = vst [vmem:[#allocation3 + $0x440] sm:$0xf] %v1882
        %1915 = vst [vmem:[#allocation3 + $0x464] sm:$0xf] %v1883
        %v1916 = vld [vmem:[%s1595 + $0x7] sm:$0xff]
        %v1917 = vld [vmem:[%s1595 + $0xf] sm:$0xff]
        %v1918 = vld [vmem:[%s1595 + $0x27] sm:$0xff]
        %v1919 = vld [vmem:[%s1595 + $0x2f] sm:$0xff]
        %v1920 = vld [vmem:[%s1595 + $0x47] sm:$0xff]
        %v1921 = vld [vmem:[%s1595 + $0x4f] sm:$0xff]
        %v1922 = vld [vmem:[%s1595 + $0x67] sm:$0xff]
        %v1923 = vld [vmem:[%s1595 + $0x6f] sm:$0xff]
        %v1924 = vld [vmem:[%s1595 + $0x87] sm:$0xff]
        %v1925 = vld [vmem:[%s1595 + $0x8f] sm:$0xff]
        %v1926 = vld [vmem:[%s1595 + $0xa7] sm:$0xff]
        %v1927 = vld [vmem:[%s1595 + $0xaf] sm:$0xff]
        %v1928 = vld [vmem:[%s1595 + $0xc7] sm:$0xff]
        %v1929 = vld [vmem:[%s1595 + $0xcf] sm:$0xff]
        %v1930 = vld [vmem:[%s1595 + $0xe7] sm:$0xff]
        %v1931 = vld [vmem:[%s1595 + $0xef] sm:$0xff]
        %v1932 = vld [vmem:[%s1595 + $0x107] sm:$0xff]
        %v1933 = vld [vmem:[%s1595 + $0x10f] sm:$0xff]
        %v1934 = vld [vmem:[%s1595 + $0x127] sm:$0xff]
        %v1935 = vld [vmem:[%s1595 + $0x12f] sm:$0xff]
        %v1936 = vld [vmem:[%s1595 + $0x147] sm:$0xff]
        %v1937 = vld [vmem:[%s1595 + $0x14f] sm:$0xff]
        %v1938 = vld [vmem:[%s1595 + $0x167] sm:$0xff]
        %v1939 = vld [vmem:[%s1595 + $0x16f] sm:$0xff]
        %v1940 = vld [vmem:[%s1595 + $0x187] sm:$0xff]
        %v1941 = vld [vmem:[%s1595 + $0x18f] sm:$0xff]
        %v1942 = vld [vmem:[%s1595 + $0x1a7] sm:$0xff]
        %v1943 = vld [vmem:[%s1595 + $0x1af] sm:$0xff]
        %v1944 = vld [vmem:[%s1595 + $0x1c7] sm:$0xff]
        %v1945 = vld [vmem:[%s1595 + $0x1cf] sm:$0xff]
        %v1946 = vld [vmem:[%s1595 + $0x1e7] sm:$0xff]
        %v1947 = vld [vmem:[%s1595 + $0x1ef] sm:$0xff]
        %v1948 = vpack.c.bf16 %v1916, %v1916
        %v1949 = vpack.c.bf16 %v1917, %v1917
        %v1950 = vpack.c.bf16 %v1918, %v1918
        %v1951 = vpack.c.bf16 %v1919, %v1919
        %v1952 = vpack.c.bf16 %v1920, %v1920
        %v1953 = vpack.c.bf16 %v1921, %v1921
        %v1954 = vpack.c.bf16 %v1922, %v1922
        %v1955 = vpack.c.bf16 %v1923, %v1923
        %v1956 = vpack.c.bf16 %v1924, %v1924
        %v1957 = vpack.c.bf16 %v1925, %v1925
        %v1958 = vpack.c.bf16 %v1926, %v1926
        %v1959 = vpack.c.bf16 %v1927, %v1927
        %v1960 = vpack.c.bf16 %v1928, %v1928
        %v1961 = vpack.c.bf16 %v1929, %v1929
        %v1962 = vpack.c.bf16 %v1930, %v1930
        %v1963 = vpack.c.bf16 %v1931, %v1931
        %v1964 = vpack.c.bf16 %v1932, %v1932
        %v1965 = vpack.c.bf16 %v1933, %v1933
        %v1966 = vpack.c.bf16 %v1934, %v1934
        %v1967 = vpack.c.bf16 %v1935, %v1935
        %v1968 = vpack.c.bf16 %v1936, %v1936
        %v1969 = vpack.c.bf16 %v1937, %v1937
        %v1970 = vpack.c.bf16 %v1938, %v1938
        %v1971 = vpack.c.bf16 %v1939, %v1939
        %v1972 = vpack.c.bf16 %v1940, %v1940
        %v1973 = vpack.c.bf16 %v1941, %v1941
        %v1974 = vpack.c.bf16 %v1942, %v1942
        %v1975 = vpack.c.bf16 %v1943, %v1943
        %v1976 = vpack.c.bf16 %v1944, %v1944
        %v1977 = vpack.c.bf16 %v1945, %v1945
        %v1978 = vpack.c.bf16 %v1946, %v1946
        %v1979 = vpack.c.bf16 %v1947, %v1947
        %1980 = vst [vmem:[#allocation3 + $0xc] sm:$0xf] %v1948
        %1981 = vst [vmem:[#allocation3 + $0x30] sm:$0xf] %v1949
        %1982 = vst [vmem:[#allocation3 + $0x54] sm:$0xf] %v1950
        %1983 = vst [vmem:[#allocation3 + $0x78] sm:$0xf] %v1951
        %1984 = vst [vmem:[#allocation3 + $0x9c] sm:$0xf] %v1952
        %1985 = vst [vmem:[#allocation3 + $0xc0] sm:$0xf] %v1953
        %1986 = vst [vmem:[#allocation3 + $0xe4] sm:$0xf] %v1954
        %1987 = vst [vmem:[#allocation3 + $0x108] sm:$0xf] %v1955
        %1988 = vst [vmem:[#allocation3 + $0x12c] sm:$0xf] %v1956
        %1989 = vst [vmem:[#allocation3 + $0x150] sm:$0xf] %v1957
        %1990 = vst [vmem:[#allocation3 + $0x174] sm:$0xf] %v1958
        %1991 = vst [vmem:[#allocation3 + $0x198] sm:$0xf] %v1959
        %1992 = vst [vmem:[#allocation3 + $0x1bc] sm:$0xf] %v1960
        %1993 = vst [vmem:[#allocation3 + $0x1e0] sm:$0xf] %v1961
        %1994 = vst [vmem:[#allocation3 + $0x204] sm:$0xf] %v1962
        %1995 = vst [vmem:[#allocation3 + $0x228] sm:$0xf] %v1963
        %1996 = vst [vmem:[#allocation3 + $0x24c] sm:$0xf] %v1964
        %1997 = vst [vmem:[#allocation3 + $0x270] sm:$0xf] %v1965
        %1998 = vst [vmem:[#allocation3 + $0x294] sm:$0xf] %v1966
        %1999 = vst [vmem:[#allocation3 + $0x2b8] sm:$0xf] %v1967
        %2000 = vst [vmem:[#allocation3 + $0x2dc] sm:$0xf] %v1968
        %2001 = vst [vmem:[#allocation3 + $0x300] sm:$0xf] %v1969
        %2002 = vst [vmem:[#allocation3 + $0x324] sm:$0xf] %v1970
        %2003 = vst [vmem:[#allocation3 + $0x348] sm:$0xf] %v1971
        %2004 = vst [vmem:[#allocation3 + $0x36c] sm:$0xf] %v1972
        %2005 = vst [vmem:[#allocation3 + $0x390] sm:$0xf] %v1973
        %2006 = vst [vmem:[#allocation3 + $0x3b4] sm:$0xf] %v1974
        %2007 = vst [vmem:[#allocation3 + $0x3d8] sm:$0xf] %v1975
        %2008 = vst [vmem:[#allocation3 + $0x3fc] sm:$0xf] %v1976
        %2009 = vst [vmem:[#allocation3 + $0x420] sm:$0xf] %v1977
        %2010 = vst [vmem:[#allocation3 + $0x444] sm:$0xf] %v1978
        %2011 = vst [vmem:[#allocation3 + $0x468] sm:$0xf] %v1979
        %v2012 = vld [vmem:[%s1595 + $0x8] sm:$0xff]
        %v2013 = vld [vmem:[%s1595 + $0x10] sm:$0xff]
        %v2014 = vld [vmem:[%s1595 + $0x28] sm:$0xff]
        %v2015 = vld [vmem:[%s1595 + $0x30] sm:$0xff]
        %v2016 = vld [vmem:[%s1595 + $0x48] sm:$0xff]
        %v2017 = vld [vmem:[%s1595 + $0x50] sm:$0xff]
        %v2018 = vld [vmem:[%s1595 + $0x68] sm:$0xff]
        %v2019 = vld [vmem:[%s1595 + $0x70] sm:$0xff]
        %v2020 = vld [vmem:[%s1595 + $0x88] sm:$0xff]
        %v2021 = vld [vmem:[%s1595 + $0x90] sm:$0xff]
        %v2022 = vld [vmem:[%s1595 + $0xa8] sm:$0xff]
        %v2023 = vld [vmem:[%s1595 + $0xb0] sm:$0xff]
        %v2024 = vld [vmem:[%s1595 + $0xc8] sm:$0xff]
        %v2025 = vld [vmem:[%s1595 + $0xd0] sm:$0xff]
        %v2026 = vld [vmem:[%s1595 + $0xe8] sm:$0xff]
        %v2027 = vld [vmem:[%s1595 + $0xf0] sm:$0xff]
        %v2028 = vld [vmem:[%s1595 + $0x108] sm:$0xff]
        %v2029 = vld [vmem:[%s1595 + $0x110] sm:$0xff]
        %v2030 = vld [vmem:[%s1595 + $0x128] sm:$0xff]
        %v2031 = vld [vmem:[%s1595 + $0x130] sm:$0xff]
        %v2032 = vld [vmem:[%s1595 + $0x148] sm:$0xff]
        %v2033 = vld [vmem:[%s1595 + $0x150] sm:$0xff]
        %v2034 = vld [vmem:[%s1595 + $0x168] sm:$0xff]
        %v2035 = vld [vmem:[%s1595 + $0x170] sm:$0xff]
        %v2036 = vld [vmem:[%s1595 + $0x188] sm:$0xff]
        %v2037 = vld [vmem:[%s1595 + $0x190] sm:$0xff]
        %v2038 = vld [vmem:[%s1595 + $0x1a8] sm:$0xff]
        %v2039 = vld [vmem:[%s1595 + $0x1b0] sm:$0xff]
        %v2040 = vld [vmem:[%s1595 + $0x1c8] sm:$0xff]
        %v2041 = vld [vmem:[%s1595 + $0x1d0] sm:$0xff]
        %v2042 = vld [vmem:[%s1595 + $0x1e8] sm:$0xff]
        %v2043 = vld [vmem:[%s1595 + $0x1f0] sm:$0xff]
        %v2044 = vpack.c.bf16 %v2012, %v2012
        %v2045 = vpack.c.bf16 %v2013, %v2013
        %v2046 = vpack.c.bf16 %v2014, %v2014
        %v2047 = vpack.c.bf16 %v2015, %v2015
        %v2048 = vpack.c.bf16 %v2016, %v2016
        %v2049 = vpack.c.bf16 %v2017, %v2017
        %v2050 = vpack.c.bf16 %v2018, %v2018
        %v2051 = vpack.c.bf16 %v2019, %v2019
        %v2052 = vpack.c.bf16 %v2020, %v2020
        %v2053 = vpack.c.bf16 %v2021, %v2021
        %v2054 = vpack.c.bf16 %v2022, %v2022
        %v2055 = vpack.c.bf16 %v2023, %v2023
        %v2056 = vpack.c.bf16 %v2024, %v2024
        %v2057 = vpack.c.bf16 %v2025, %v2025
        %v2058 = vpack.c.bf16 %v2026, %v2026
        %v2059 = vpack.c.bf16 %v2027, %v2027
        %v2060 = vpack.c.bf16 %v2028, %v2028
        %v2061 = vpack.c.bf16 %v2029, %v2029
        %v2062 = vpack.c.bf16 %v2030, %v2030
        %v2063 = vpack.c.bf16 %v2031, %v2031
        %v2064 = vpack.c.bf16 %v2032, %v2032
        %v2065 = vpack.c.bf16 %v2033, %v2033
        %v2066 = vpack.c.bf16 %v2034, %v2034
        %v2067 = vpack.c.bf16 %v2035, %v2035
        %v2068 = vpack.c.bf16 %v2036, %v2036
        %v2069 = vpack.c.bf16 %v2037, %v2037
        %v2070 = vpack.c.bf16 %v2038, %v2038
        %v2071 = vpack.c.bf16 %v2039, %v2039
        %v2072 = vpack.c.bf16 %v2040, %v2040
        %v2073 = vpack.c.bf16 %v2041, %v2041
        %v2074 = vpack.c.bf16 %v2042, %v2042
        %v2075 = vpack.c.bf16 %v2043, %v2043
        %2076 = vst [vmem:[#allocation3 + $0x10] sm:$0xf] %v2044
        %2077 = vst [vmem:[#allocation3 + $0x34] sm:$0xf] %v2045
        %2078 = vst [vmem:[#allocation3 + $0x58] sm:$0xf] %v2046
        %2079 = vst [vmem:[#allocation3 + $0x7c] sm:$0xf] %v2047
        %2080 = vst [vmem:[#allocation3 + $0xa0] sm:$0xf] %v2048
        %2081 = vst [vmem:[#allocation3 + $0xc4] sm:$0xf] %v2049
        %2082 = vst [vmem:[#allocation3 + $0xe8] sm:$0xf] %v2050
        %2083 = vst [vmem:[#allocation3 + $0x10c] sm:$0xf] %v2051
        %2084 = vst [vmem:[#allocation3 + $0x130] sm:$0xf] %v2052
        %2085 = vst [vmem:[#allocation3 + $0x154] sm:$0xf] %v2053
        %2086 = vst [vmem:[#allocation3 + $0x178] sm:$0xf] %v2054
        %2087 = vst [vmem:[#allocation3 + $0x19c] sm:$0xf] %v2055
        %2088 = vst [vmem:[#allocation3 + $0x1c0] sm:$0xf] %v2056
        %2089 = vst [vmem:[#allocation3 + $0x1e4] sm:$0xf] %v2057
        %2090 = vst [vmem:[#allocation3 + $0x208] sm:$0xf] %v2058
        %2091 = vst [vmem:[#allocation3 + $0x22c] sm:$0xf] %v2059
        %2092 = vst [vmem:[#allocation3 + $0x250] sm:$0xf] %v2060
        %2093 = vst [vmem:[#allocation3 + $0x274] sm:$0xf] %v2061
        %2094 = vst [vmem:[#allocation3 + $0x298] sm:$0xf] %v2062
        %2095 = vst [vmem:[#allocation3 + $0x2bc] sm:$0xf] %v2063
        %2096 = vst [vmem:[#allocation3 + $0x2e0] sm:$0xf] %v2064
        %2097 = vst [vmem:[#allocation3 + $0x304] sm:$0xf] %v2065
        %2098 = vst [vmem:[#allocation3 + $0x328] sm:$0xf] %v2066
        %2099 = vst [vmem:[#allocation3 + $0x34c] sm:$0xf] %v2067
        %2100 = vst [vmem:[#allocation3 + $0x370] sm:$0xf] %v2068
        %2101 = vst [vmem:[#allocation3 + $0x394] sm:$0xf] %v2069
        %2102 = vst [vmem:[#allocation3 + $0x3b8] sm:$0xf] %v2070
        %2103 = vst [vmem:[#allocation3 + $0x3dc] sm:$0xf] %v2071
        %2104 = vst [vmem:[#allocation3 + $0x400] sm:$0xf] %v2072
        %2105 = vst [vmem:[#allocation3 + $0x424] sm:$0xf] %v2073
        %2106 = vst [vmem:[#allocation3 + $0x448] sm:$0xf] %v2074
        %2107 = vst [vmem:[#allocation3 + $0x46c] sm:$0xf] %v2075
        %v2108 = vld [vmem:[%s1595 + $0x9] sm:$0xff]
        %v2109 = vld [vmem:[%s1595 + $0x11] sm:$0xff]
        %v2110 = vld [vmem:[%s1595 + $0x29] sm:$0xff]
        %v2111 = vld [vmem:[%s1595 + $0x31] sm:$0xff]
        %v2112 = vld [vmem:[%s1595 + $0x49] sm:$0xff]
        %v2113 = vld [vmem:[%s1595 + $0x51] sm:$0xff]
        %v2114 = vld [vmem:[%s1595 + $0x69] sm:$0xff]
        %v2115 = vld [vmem:[%s1595 + $0x71] sm:$0xff]
        %v2116 = vld [vmem:[%s1595 + $0x89] sm:$0xff]
        %v2117 = vld [vmem:[%s1595 + $0x91] sm:$0xff]
        %v2118 = vld [vmem:[%s1595 + $0xa9] sm:$0xff]
        %v2119 = vld [vmem:[%s1595 + $0xb1] sm:$0xff]
        %v2120 = vld [vmem:[%s1595 + $0xc9] sm:$0xff]
        %v2121 = vld [vmem:[%s1595 + $0xd1] sm:$0xff]
        %v2122 = vld [vmem:[%s1595 + $0xe9] sm:$0xff]
        %v2123 = vld [vmem:[%s1595 + $0xf1] sm:$0xff]
        %v2124 = vld [vmem:[%s1595 + $0x109] sm:$0xff]
        %v2125 = vld [vmem:[%s1595 + $0x111] sm:$0xff]
        %v2126 = vld [vmem:[%s1595 + $0x129] sm:$0xff]
        %v2127 = vld [vmem:[%s1595 + $0x131] sm:$0xff]
        %v2128 = vld [vmem:[%s1595 + $0x149] sm:$0xff]
        %v2129 = vld [vmem:[%s1595 + $0x151] sm:$0xff]
        %v2130 = vld [vmem:[%s1595 + $0x169] sm:$0xff]
        %v2131 = vld [vmem:[%s1595 + $0x171] sm:$0xff]
        %v2132 = vld [vmem:[%s1595 + $0x189] sm:$0xff]
        %v2133 = vld [vmem:[%s1595 + $0x191] sm:$0xff]
        %v2134 = vld [vmem:[%s1595 + $0x1a9] sm:$0xff]
        %v2135 = vld [vmem:[%s1595 + $0x1b1] sm:$0xff]
        %v2136 = vld [vmem:[%s1595 + $0x1c9] sm:$0xff]
        %v2137 = vld [vmem:[%s1595 + $0x1d1] sm:$0xff]
        %v2138 = vld [vmem:[%s1595 + $0x1e9] sm:$0xff]
        %v2139 = vld [vmem:[%s1595 + $0x1f1] sm:$0xff]
        %v2140 = vpack.c.bf16 %v2108, %v2108
        %v2141 = vpack.c.bf16 %v2109, %v2109
        %v2142 = vpack.c.bf16 %v2110, %v2110
        %v2143 = vpack.c.bf16 %v2111, %v2111
        %v2144 = vpack.c.bf16 %v2112, %v2112
        %v2145 = vpack.c.bf16 %v2113, %v2113
        %v2146 = vpack.c.bf16 %v2114, %v2114
        %v2147 = vpack.c.bf16 %v2115, %v2115
        %v2148 = vpack.c.bf16 %v2116, %v2116
        %v2149 = vpack.c.bf16 %v2117, %v2117
        %v2150 = vpack.c.bf16 %v2118, %v2118
        %v2151 = vpack.c.bf16 %v2119, %v2119
        %v2152 = vpack.c.bf16 %v2120, %v2120
        %v2153 = vpack.c.bf16 %v2121, %v2121
        %v2154 = vpack.c.bf16 %v2122, %v2122
        %v2155 = vpack.c.bf16 %v2123, %v2123
        %v2156 = vpack.c.bf16 %v2124, %v2124
        %v2157 = vpack.c.bf16 %v2125, %v2125
        %v2158 = vpack.c.bf16 %v2126, %v2126
        %v2159 = vpack.c.bf16 %v2127, %v2127
        %v2160 = vpack.c.bf16 %v2128, %v2128
        %v2161 = vpack.c.bf16 %v2129, %v2129
        %v2162 = vpack.c.bf16 %v2130, %v2130
        %v2163 = vpack.c.bf16 %v2131, %v2131
        %v2164 = vpack.c.bf16 %v2132, %v2132
        %v2165 = vpack.c.bf16 %v2133, %v2133
        %v2166 = vpack.c.bf16 %v2134, %v2134
        %v2167 = vpack.c.bf16 %v2135, %v2135
        %v2168 = vpack.c.bf16 %v2136, %v2136
        %v2169 = vpack.c.bf16 %v2137, %v2137
        %v2170 = vpack.c.bf16 %v2138, %v2138
        %v2171 = vpack.c.bf16 %v2139, %v2139
        %2172 = vst [vmem:[#allocation3 + $0x14] sm:$0xf] %v2140
        %2173 = vst [vmem:[#allocation3 + $0x38] sm:$0xf] %v2141
        %2174 = vst [vmem:[#allocation3 + $0x5c] sm:$0xf] %v2142
        %2175 = vst [vmem:[#allocation3 + $0x80] sm:$0xf] %v2143
        %2176 = vst [vmem:[#allocation3 + $0xa4] sm:$0xf] %v2144
        %2177 = vst [vmem:[#allocation3 + $0xc8] sm:$0xf] %v2145
        %2178 = vst [vmem:[#allocation3 + $0xec] sm:$0xf] %v2146
        %2179 = vst [vmem:[#allocation3 + $0x110] sm:$0xf] %v2147
        %2180 = vst [vmem:[#allocation3 + $0x134] sm:$0xf] %v2148
        %2181 = vst [vmem:[#allocation3 + $0x158] sm:$0xf] %v2149
        %2182 = vst [vmem:[#allocation3 + $0x17c] sm:$0xf] %v2150
        %2183 = vst [vmem:[#allocation3 + $0x1a0] sm:$0xf] %v2151
        %2184 = vst [vmem:[#allocation3 + $0x1c4] sm:$0xf] %v2152
        %2185 = vst [vmem:[#allocation3 + $0x1e8] sm:$0xf] %v2153
        %2186 = vst [vmem:[#allocation3 + $0x20c] sm:$0xf] %v2154
        %2187 = vst [vmem:[#allocation3 + $0x230] sm:$0xf] %v2155
        %2188 = vst [vmem:[#allocation3 + $0x254] sm:$0xf] %v2156
        %2189 = vst [vmem:[#allocation3 + $0x278] sm:$0xf] %v2157
        %2190 = vst [vmem:[#allocation3 + $0x29c] sm:$0xf] %v2158
        %2191 = vst [vmem:[#allocation3 + $0x2c0] sm:$0xf] %v2159
        %2192 = vst [vmem:[#allocation3 + $0x2e4] sm:$0xf] %v2160
        %2193 = vst [vmem:[#allocation3 + $0x308] sm:$0xf] %v2161
        %2194 = vst [vmem:[#allocation3 + $0x32c] sm:$0xf] %v2162
        %2195 = vst [vmem:[#allocation3 + $0x350] sm:$0xf] %v2163
        %2196 = vst [vmem:[#allocation3 + $0x374] sm:$0xf] %v2164
        %2197 = vst [vmem:[#allocation3 + $0x398] sm:$0xf] %v2165
        %2198 = vst [vmem:[#allocation3 + $0x3bc] sm:$0xf] %v2166
        %2199 = vst [vmem:[#allocation3 + $0x3e0] sm:$0xf] %v2167
        %2200 = vst [vmem:[#allocation3 + $0x404] sm:$0xf] %v2168
        %2201 = vst [vmem:[#allocation3 + $0x428] sm:$0xf] %v2169
        %2202 = vst [vmem:[#allocation3 + $0x44c] sm:$0xf] %v2170
        %2203 = vst [vmem:[#allocation3 + $0x470] sm:$0xf] %v2171
        %s2204 = scalar_lea.vmem [#allocation2], 64
        %v2205 = vld [vmem:[%s2204 + $0x7] sm:$0xff]
        %v2206 = vld [vmem:[%s2204 + $0xf] sm:$0xff]
        %v2207 = vld [vmem:[%s2204 + $0x27] sm:$0xff]
        %v2208 = vld [vmem:[%s2204 + $0x2f] sm:$0xff]
        %v2209 = vld [vmem:[%s2204 + $0x47] sm:$0xff]
        %v2210 = vld [vmem:[%s2204 + $0x4f] sm:$0xff]
        %v2211 = vld [vmem:[%s2204 + $0x67] sm:$0xff]
        %v2212 = vld [vmem:[%s2204 + $0x6f] sm:$0xff]
        %v2213 = vld [vmem:[%s2204 + $0x87] sm:$0xff]
        %v2214 = vld [vmem:[%s2204 + $0x8f] sm:$0xff]
        %v2215 = vld [vmem:[%s2204 + $0xa7] sm:$0xff]
        %v2216 = vld [vmem:[%s2204 + $0xaf] sm:$0xff]
        %v2217 = vld [vmem:[%s2204 + $0xc7] sm:$0xff]
        %v2218 = vld [vmem:[%s2204 + $0xcf] sm:$0xff]
        %v2219 = vld [vmem:[%s2204 + $0xe7] sm:$0xff]
        %v2220 = vld [vmem:[%s2204 + $0xef] sm:$0xff]
        %v2221 = vld [vmem:[%s2204 + $0x107] sm:$0xff]
        %v2222 = vld [vmem:[%s2204 + $0x10f] sm:$0xff]
        %v2223 = vld [vmem:[%s2204 + $0x127] sm:$0xff]
        %v2224 = vld [vmem:[%s2204 + $0x12f] sm:$0xff]
        %v2225 = vld [vmem:[%s2204 + $0x147] sm:$0xff]
        %v2226 = vld [vmem:[%s2204 + $0x14f] sm:$0xff]
        %v2227 = vld [vmem:[%s2204 + $0x167] sm:$0xff]
        %v2228 = vld [vmem:[%s2204 + $0x16f] sm:$0xff]
        %v2229 = vld [vmem:[%s2204 + $0x187] sm:$0xff]
        %v2230 = vld [vmem:[%s2204 + $0x18f] sm:$0xff]
        %v2231 = vld [vmem:[%s2204 + $0x1a7] sm:$0xff]
        %v2232 = vld [vmem:[%s2204 + $0x1af] sm:$0xff]
        %v2233 = vld [vmem:[%s2204 + $0x1c7] sm:$0xff]
        %v2234 = vld [vmem:[%s2204 + $0x1cf] sm:$0xff]
        %v2235 = vld [vmem:[%s2204 + $0x1e7] sm:$0xff]
        %v2236 = vld [vmem:[%s2204 + $0x1ef] sm:$0xff]
        %v2237 = vpack.c.bf16 %v2205, %v2205
        %v2238 = vpack.c.bf16 %v2206, %v2206
        %v2239 = vpack.c.bf16 %v2207, %v2207
        %v2240 = vpack.c.bf16 %v2208, %v2208
        %v2241 = vpack.c.bf16 %v2209, %v2209
        %v2242 = vpack.c.bf16 %v2210, %v2210
        %v2243 = vpack.c.bf16 %v2211, %v2211
        %v2244 = vpack.c.bf16 %v2212, %v2212
        %v2245 = vpack.c.bf16 %v2213, %v2213
        %v2246 = vpack.c.bf16 %v2214, %v2214
        %v2247 = vpack.c.bf16 %v2215, %v2215
        %v2248 = vpack.c.bf16 %v2216, %v2216
        %v2249 = vpack.c.bf16 %v2217, %v2217
        %v2250 = vpack.c.bf16 %v2218, %v2218
        %v2251 = vpack.c.bf16 %v2219, %v2219
        %v2252 = vpack.c.bf16 %v2220, %v2220
        %v2253 = vpack.c.bf16 %v2221, %v2221
        %v2254 = vpack.c.bf16 %v2222, %v2222
        %v2255 = vpack.c.bf16 %v2223, %v2223
        %v2256 = vpack.c.bf16 %v2224, %v2224
        %v2257 = vpack.c.bf16 %v2225, %v2225
        %v2258 = vpack.c.bf16 %v2226, %v2226
        %v2259 = vpack.c.bf16 %v2227, %v2227
        %v2260 = vpack.c.bf16 %v2228, %v2228
        %v2261 = vpack.c.bf16 %v2229, %v2229
        %v2262 = vpack.c.bf16 %v2230, %v2230
        %v2263 = vpack.c.bf16 %v2231, %v2231
        %v2264 = vpack.c.bf16 %v2232, %v2232
        %v2265 = vpack.c.bf16 %v2233, %v2233
        %v2266 = vpack.c.bf16 %v2234, %v2234
        %v2267 = vpack.c.bf16 %v2235, %v2235
        %v2268 = vpack.c.bf16 %v2236, %v2236
        %2269 = vst [vmem:[#allocation3 + $0x18] sm:$0xf] %v2237
        %2270 = vst [vmem:[#allocation3 + $0x3c] sm:$0xf] %v2238
        %2271 = vst [vmem:[#allocation3 + $0x60] sm:$0xf] %v2239
        %2272 = vst [vmem:[#allocation3 + $0x84] sm:$0xf] %v2240
        %2273 = vst [vmem:[#allocation3 + $0xa8] sm:$0xf] %v2241
        %2274 = vst [vmem:[#allocation3 + $0xcc] sm:$0xf] %v2242
        %2275 = vst [vmem:[#allocation3 + $0xf0] sm:$0xf] %v2243
        %2276 = vst [vmem:[#allocation3 + $0x114] sm:$0xf] %v2244
        %2277 = vst [vmem:[#allocation3 + $0x138] sm:$0xf] %v2245
        %2278 = vst [vmem:[#allocation3 + $0x15c] sm:$0xf] %v2246
        %2279 = vst [vmem:[#allocation3 + $0x180] sm:$0xf] %v2247
        %2280 = vst [vmem:[#allocation3 + $0x1a4] sm:$0xf] %v2248
        %2281 = vst [vmem:[#allocation3 + $0x1c8] sm:$0xf] %v2249
        %2282 = vst [vmem:[#allocation3 + $0x1ec] sm:$0xf] %v2250
        %2283 = vst [vmem:[#allocation3 + $0x210] sm:$0xf] %v2251
        %2284 = vst [vmem:[#allocation3 + $0x234] sm:$0xf] %v2252
        %2285 = vst [vmem:[#allocation3 + $0x258] sm:$0xf] %v2253
        %2286 = vst [vmem:[#allocation3 + $0x27c] sm:$0xf] %v2254
        %2287 = vst [vmem:[#allocation3 + $0x2a0] sm:$0xf] %v2255
        %2288 = vst [vmem:[#allocation3 + $0x2c4] sm:$0xf] %v2256
        %2289 = vst [vmem:[#allocation3 + $0x2e8] sm:$0xf] %v2257
        %2290 = vst [vmem:[#allocation3 + $0x30c] sm:$0xf] %v2258
        %2291 = vst [vmem:[#allocation3 + $0x330] sm:$0xf] %v2259
        %2292 = vst [vmem:[#allocation3 + $0x354] sm:$0xf] %v2260
        %2293 = vst [vmem:[#allocation3 + $0x378] sm:$0xf] %v2261
        %2294 = vst [vmem:[#allocation3 + $0x39c] sm:$0xf] %v2262
        %2295 = vst [vmem:[#allocation3 + $0x3c0] sm:$0xf] %v2263
        %2296 = vst [vmem:[#allocation3 + $0x3e4] sm:$0xf] %v2264
        %2297 = vst [vmem:[#allocation3 + $0x408] sm:$0xf] %v2265
        %2298 = vst [vmem:[#allocation3 + $0x42c] sm:$0xf] %v2266
        %2299 = vst [vmem:[#allocation3 + $0x450] sm:$0xf] %v2267
        %2300 = vst [vmem:[#allocation3 + $0x474] sm:$0xf] %v2268
        %v2301 = vld [vmem:[%s2204 + $0x8] sm:$0xff]
        %v2302 = vld [vmem:[%s2204 + $0x10] sm:$0xff]
        %v2303 = vld [vmem:[%s2204 + $0x28] sm:$0xff]
        %v2304 = vld [vmem:[%s2204 + $0x30] sm:$0xff]
        %v2305 = vld [vmem:[%s2204 + $0x48] sm:$0xff]
        %v2306 = vld [vmem:[%s2204 + $0x50] sm:$0xff]
        %v2307 = vld [vmem:[%s2204 + $0x68] sm:$0xff]
        %v2308 = vld [vmem:[%s2204 + $0x70] sm:$0xff]
        %v2309 = vld [vmem:[%s2204 + $0x88] sm:$0xff]
        %v2310 = vld [vmem:[%s2204 + $0x90] sm:$0xff]
        %v2311 = vld [vmem:[%s2204 + $0xa8] sm:$0xff]
        %v2312 = vld [vmem:[%s2204 + $0xb0] sm:$0xff]
        %v2313 = vld [vmem:[%s2204 + $0xc8] sm:$0xff]
        %v2314 = vld [vmem:[%s2204 + $0xd0] sm:$0xff]
        %v2315 = vld [vmem:[%s2204 + $0xe8] sm:$0xff]
        %v2316 = vld [vmem:[%s2204 + $0xf0] sm:$0xff]
        %v2317 = vld [vmem:[%s2204 + $0x108] sm:$0xff]
        %v2318 = vld [vmem:[%s2204 + $0x110] sm:$0xff]
        %v2319 = vld [vmem:[%s2204 + $0x128] sm:$0xff]
        %v2320 = vld [vmem:[%s2204 + $0x130] sm:$0xff]
        %v2321 = vld [vmem:[%s2204 + $0x148] sm:$0xff]
        %v2322 = vld [vmem:[%s2204 + $0x150] sm:$0xff]
        %v2323 = vld [vmem:[%s2204 + $0x168] sm:$0xff]
        %v2324 = vld [vmem:[%s2204 + $0x170] sm:$0xff]
        %v2325 = vld [vmem:[%s2204 + $0x188] sm:$0xff]
        %v2326 = vld [vmem:[%s2204 + $0x190] sm:$0xff]
        %v2327 = vld [vmem:[%s2204 + $0x1a8] sm:$0xff]
        %v2328 = vld [vmem:[%s2204 + $0x1b0] sm:$0xff]
        %v2329 = vld [vmem:[%s2204 + $0x1c8] sm:$0xff]
        %v2330 = vld [vmem:[%s2204 + $0x1d0] sm:$0xff]
        %v2331 = vld [vmem:[%s2204 + $0x1e8] sm:$0xff]
        %v2332 = vld [vmem:[%s2204 + $0x1f0] sm:$0xff]
        %v2333 = vpack.c.bf16 %v2301, %v2301
        %v2334 = vpack.c.bf16 %v2302, %v2302
        %v2335 = vpack.c.bf16 %v2303, %v2303
        %v2336 = vpack.c.bf16 %v2304, %v2304
        %v2337 = vpack.c.bf16 %v2305, %v2305
        %v2338 = vpack.c.bf16 %v2306, %v2306
        %v2339 = vpack.c.bf16 %v2307, %v2307
        %v2340 = vpack.c.bf16 %v2308, %v2308
        %v2341 = vpack.c.bf16 %v2309, %v2309
        %v2342 = vpack.c.bf16 %v2310, %v2310
        %v2343 = vpack.c.bf16 %v2311, %v2311
        %v2344 = vpack.c.bf16 %v2312, %v2312
        %v2345 = vpack.c.bf16 %v2313, %v2313
        %v2346 = vpack.c.bf16 %v2314, %v2314
        %v2347 = vpack.c.bf16 %v2315, %v2315
        %v2348 = vpack.c.bf16 %v2316, %v2316
        %v2349 = vpack.c.bf16 %v2317, %v2317
        %v2350 = vpack.c.bf16 %v2318, %v2318
        %v2351 = vpack.c.bf16 %v2319, %v2319
        %v2352 = vpack.c.bf16 %v2320, %v2320
        %v2353 = vpack.c.bf16 %v2321, %v2321
        %v2354 = vpack.c.bf16 %v2322, %v2322
        %v2355 = vpack.c.bf16 %v2323, %v2323
        %v2356 = vpack.c.bf16 %v2324, %v2324
        %v2357 = vpack.c.bf16 %v2325, %v2325
        %v2358 = vpack.c.bf16 %v2326, %v2326
        %v2359 = vpack.c.bf16 %v2327, %v2327
        %v2360 = vpack.c.bf16 %v2328, %v2328
        %v2361 = vpack.c.bf16 %v2329, %v2329
        %v2362 = vpack.c.bf16 %v2330, %v2330
        %v2363 = vpack.c.bf16 %v2331, %v2331
        %v2364 = vpack.c.bf16 %v2332, %v2332
        %2365 = vst [vmem:[#allocation3 + $0x1c] sm:$0xf] %v2333
        %2366 = vst [vmem:[#allocation3 + $0x40] sm:$0xf] %v2334
        %2367 = vst [vmem:[#allocation3 + $0x64] sm:$0xf] %v2335
        %2368 = vst [vmem:[#allocation3 + $0x88] sm:$0xf] %v2336
        %2369 = vst [vmem:[#allocation3 + $0xac] sm:$0xf] %v2337
        %2370 = vst [vmem:[#allocation3 + $0xd0] sm:$0xf] %v2338
        %2371 = vst [vmem:[#allocation3 + $0xf4] sm:$0xf] %v2339
        %2372 = vst [vmem:[#allocation3 + $0x118] sm:$0xf] %v2340
        %2373 = vst [vmem:[#allocation3 + $0x13c] sm:$0xf] %v2341
        %2374 = vst [vmem:[#allocation3 + $0x160] sm:$0xf] %v2342
        %2375 = vst [vmem:[#allocation3 + $0x184] sm:$0xf] %v2343
        %2376 = vst [vmem:[#allocation3 + $0x1a8] sm:$0xf] %v2344
        %2377 = vst [vmem:[#allocation3 + $0x1cc] sm:$0xf] %v2345
        %2378 = vst [vmem:[#allocation3 + $0x1f0] sm:$0xf] %v2346
        %2379 = vst [vmem:[#allocation3 + $0x214] sm:$0xf] %v2347
        %2380 = vst [vmem:[#allocation3 + $0x238] sm:$0xf] %v2348
        %2381 = vst [vmem:[#allocation3 + $0x25c] sm:$0xf] %v2349
        %2382 = vst [vmem:[#allocation3 + $0x280] sm:$0xf] %v2350
        %2383 = vst [vmem:[#allocation3 + $0x2a4] sm:$0xf] %v2351
        %2384 = vst [vmem:[#allocation3 + $0x2c8] sm:$0xf] %v2352
        %2385 = vst [vmem:[#allocation3 + $0x2ec] sm:$0xf] %v2353
        %2386 = vst [vmem:[#allocation3 + $0x310] sm:$0xf] %v2354
        %2387 = vst [vmem:[#allocation3 + $0x334] sm:$0xf] %v2355
        %2388 = vst [vmem:[#allocation3 + $0x358] sm:$0xf] %v2356
        %2389 = vst [vmem:[#allocation3 + $0x37c] sm:$0xf] %v2357
        %2390 = vst [vmem:[#allocation3 + $0x3a0] sm:$0xf] %v2358
        %2391 = vst [vmem:[#allocation3 + $0x3c4] sm:$0xf] %v2359
        %2392 = vst [vmem:[#allocation3 + $0x3e8] sm:$0xf] %v2360
        %2393 = vst [vmem:[#allocation3 + $0x40c] sm:$0xf] %v2361
        %2394 = vst [vmem:[#allocation3 + $0x430] sm:$0xf] %v2362
        %2395 = vst [vmem:[#allocation3 + $0x454] sm:$0xf] %v2363
        %2396 = vst [vmem:[#allocation3 + $0x478] sm:$0xf] %v2364
        %v2397 = vld [vmem:[%s2204 + $0x9] sm:$0xff]
        %v2398 = vld [vmem:[%s2204 + $0x11] sm:$0xff]
        %v2399 = vld [vmem:[%s2204 + $0x29] sm:$0xff]
        %v2400 = vld [vmem:[%s2204 + $0x31] sm:$0xff]
        %v2401 = vld [vmem:[%s2204 + $0x49] sm:$0xff]
        %v2402 = vld [vmem:[%s2204 + $0x51] sm:$0xff]
        %v2403 = vld [vmem:[%s2204 + $0x69] sm:$0xff]
        %v2404 = vld [vmem:[%s2204 + $0x71] sm:$0xff]
        %v2405 = vld [vmem:[%s2204 + $0x89] sm:$0xff]
        %v2406 = vld [vmem:[%s2204 + $0x91] sm:$0xff]
        %v2407 = vld [vmem:[%s2204 + $0xa9] sm:$0xff]
        %v2408 = vld [vmem:[%s2204 + $0xb1] sm:$0xff]
        %v2409 = vld [vmem:[%s2204 + $0xc9] sm:$0xff]
        %v2410 = vld [vmem:[%s2204 + $0xd1] sm:$0xff]
        %v2411 = vld [vmem:[%s2204 + $0xe9] sm:$0xff]
        %v2412 = vld [vmem:[%s2204 + $0xf1] sm:$0xff]
        %v2413 = vld [vmem:[%s2204 + $0x109] sm:$0xff]
        %v2414 = vld [vmem:[%s2204 + $0x111] sm:$0xff]
        %v2415 = vld [vmem:[%s2204 + $0x129] sm:$0xff]
        %v2416 = vld [vmem:[%s2204 + $0x131] sm:$0xff]
        %v2417 = vld [vmem:[%s2204 + $0x149] sm:$0xff]
        %v2418 = vld [vmem:[%s2204 + $0x151] sm:$0xff]
        %v2419 = vld [vmem:[%s2204 + $0x169] sm:$0xff]
        %v2420 = vld [vmem:[%s2204 + $0x171] sm:$0xff]
        %v2421 = vld [vmem:[%s2204 + $0x189] sm:$0xff]
        %v2422 = vld [vmem:[%s2204 + $0x191] sm:$0xff]
        %v2423 = vld [vmem:[%s2204 + $0x1a9] sm:$0xff]
        %v2424 = vld [vmem:[%s2204 + $0x1b1] sm:$0xff]
        %v2425 = vld [vmem:[%s2204 + $0x1c9] sm:$0xff]
        %v2426 = vld [vmem:[%s2204 + $0x1d1] sm:$0xff]
        %v2427 = vld [vmem:[%s2204 + $0x1e9] sm:$0xff]
        %v2428 = vld [vmem:[%s2204 + $0x1f1] sm:$0xff]
        %v2429 = vpack.c.bf16 %v2397, %v2397
        %v2430 = vpack.c.bf16 %v2398, %v2398
        %v2431 = vpack.c.bf16 %v2399, %v2399
        %v2432 = vpack.c.bf16 %v2400, %v2400
        %v2433 = vpack.c.bf16 %v2401, %v2401
        %v2434 = vpack.c.bf16 %v2402, %v2402
        %v2435 = vpack.c.bf16 %v2403, %v2403
        %v2436 = vpack.c.bf16 %v2404, %v2404
        %v2437 = vpack.c.bf16 %v2405, %v2405
        %v2438 = vpack.c.bf16 %v2406, %v2406
        %v2439 = vpack.c.bf16 %v2407, %v2407
        %v2440 = vpack.c.bf16 %v2408, %v2408
        %v2441 = vpack.c.bf16 %v2409, %v2409
        %v2442 = vpack.c.bf16 %v2410, %v2410
        %v2443 = vpack.c.bf16 %v2411, %v2411
        %v2444 = vpack.c.bf16 %v2412, %v2412
        %v2445 = vpack.c.bf16 %v2413, %v2413
        %v2446 = vpack.c.bf16 %v2414, %v2414
        %v2447 = vpack.c.bf16 %v2415, %v2415
        %v2448 = vpack.c.bf16 %v2416, %v2416
        %v2449 = vpack.c.bf16 %v2417, %v2417
        %v2450 = vpack.c.bf16 %v2418, %v2418
        %v2451 = vpack.c.bf16 %v2419, %v2419
        %v2452 = vpack.c.bf16 %v2420, %v2420
        %v2453 = vpack.c.bf16 %v2421, %v2421
        %v2454 = vpack.c.bf16 %v2422, %v2422
        %v2455 = vpack.c.bf16 %v2423, %v2423
        %v2456 = vpack.c.bf16 %v2424, %v2424
        %v2457 = vpack.c.bf16 %v2425, %v2425
        %v2458 = vpack.c.bf16 %v2426, %v2426
        %v2459 = vpack.c.bf16 %v2427, %v2427
        %v2460 = vpack.c.bf16 %v2428, %v2428
        %2461 = vst [vmem:[#allocation3 + $0x20] sm:$0xf] %v2429
        %2462 = vst [vmem:[#allocation3 + $0x44] sm:$0xf] %v2430
        %2463 = vst [vmem:[#allocation3 + $0x68] sm:$0xf] %v2431
        %2464 = vst [vmem:[#allocation3 + $0x8c] sm:$0xf] %v2432
        %2465 = vst [vmem:[#allocation3 + $0xb0] sm:$0xf] %v2433
        %2466 = vst [vmem:[#allocation3 + $0xd4] sm:$0xf] %v2434
        %2467 = vst [vmem:[#allocation3 + $0xf8] sm:$0xf] %v2435
        %2468 = vst [vmem:[#allocation3 + $0x11c] sm:$0xf] %v2436
        %2469 = vst [vmem:[#allocation3 + $0x140] sm:$0xf] %v2437
        %2470 = vst [vmem:[#allocation3 + $0x164] sm:$0xf] %v2438
        %2471 = vst [vmem:[#allocation3 + $0x188] sm:$0xf] %v2439
        %2472 = vst [vmem:[#allocation3 + $0x1ac] sm:$0xf] %v2440
        %2473 = vst [vmem:[#allocation3 + $0x1d0] sm:$0xf] %v2441
        %2474 = vst [vmem:[#allocation3 + $0x1f4] sm:$0xf] %v2442
        %2475 = vst [vmem:[#allocation3 + $0x218] sm:$0xf] %v2443
        %2476 = vst [vmem:[#allocation3 + $0x23c] sm:$0xf] %v2444
        %2477 = vst [vmem:[#allocation3 + $0x260] sm:$0xf] %v2445
        %2478 = vst [vmem:[#allocation3 + $0x284] sm:$0xf] %v2446
        %2479 = vst [vmem:[#allocation3 + $0x2a8] sm:$0xf] %v2447
        %2480 = vst [vmem:[#allocation3 + $0x2cc] sm:$0xf] %v2448
        %2481 = vst [vmem:[#allocation3 + $0x2f0] sm:$0xf] %v2449
        %2482 = vst [vmem:[#allocation3 + $0x314] sm:$0xf] %v2450
        %2483 = vst [vmem:[#allocation3 + $0x338] sm:$0xf] %v2451
        %2484 = vst [vmem:[#allocation3 + $0x35c] sm:$0xf] %v2452
        %2485 = vst [vmem:[#allocation3 + $0x380] sm:$0xf] %v2453
        %2486 = vst [vmem:[#allocation3 + $0x3a4] sm:$0xf] %v2454
        %2487 = vst [vmem:[#allocation3 + $0x3c8] sm:$0xf] %v2455
        %2488 = vst [vmem:[#allocation3 + $0x3ec] sm:$0xf] %v2456
        %2489 = vst [vmem:[#allocation3 + $0x410] sm:$0xf] %v2457
        %2490 = vst [vmem:[#allocation3 + $0x434] sm:$0xf] %v2458
        %2491 = vst [vmem:[#allocation3 + $0x458] sm:$0xf] %v2459
        %2492 = vst [vmem:[#allocation3 + $0x47c] sm:$0xf] %v2460
        %v2493 = vld [vmem:[#allocation3] sm:$0xff]
        %v2494 = vld [vmem:[#allocation3 + $0x8] sm:$0xff]
        %v2495 = vld [vmem:[#allocation3 + $0x10] sm:$0xff]
        %v2496 = vld [vmem:[#allocation3 + $0x18] sm:$0xff]
        %v2497 = vld [vmem:[#allocation3 + $0x20] sm:$0xf]
        %v2498 = vld [vmem:[#allocation3 + $0x24] sm:$0xff]
        %v2499 = vld [vmem:[#allocation3 + $0x2c] sm:$0xff]
        %v2500 = vld [vmem:[#allocation3 + $0x34] sm:$0xff]
        %v2501 = vld [vmem:[#allocation3 + $0x3c] sm:$0xff]
        %v2502 = vld [vmem:[#allocation3 + $0x44] sm:$0xf]
        %v2503 = vld [vmem:[#allocation3 + $0x48] sm:$0xff]
        %v2504 = vld [vmem:[#allocation3 + $0x50] sm:$0xff]
        %v2505 = vld [vmem:[#allocation3 + $0x58] sm:$0xff]
        %v2506 = vld [vmem:[#allocation3 + $0x60] sm:$0xff]
        %v2507 = vld [vmem:[#allocation3 + $0x68] sm:$0xf]
        %v2508 = vld [vmem:[#allocation3 + $0x6c] sm:$0xff]
        %v2509 = vld [vmem:[#allocation3 + $0x74] sm:$0xff]
        %v2510 = vld [vmem:[#allocation3 + $0x7c] sm:$0xff]
        %v2511 = vld [vmem:[#allocation3 + $0x84] sm:$0xff]
        %v2512 = vld [vmem:[#allocation3 + $0x8c] sm:$0xf]
        %v2513 = vld [vmem:[#allocation3 + $0x90] sm:$0xff]
        %v2514 = vld [vmem:[#allocation3 + $0x98] sm:$0xff]
        %v2515 = vld [vmem:[#allocation3 + $0xa0] sm:$0xff]
        %v2516 = vld [vmem:[#allocation3 + $0xa8] sm:$0xff]
        %v2517 = vld [vmem:[#allocation3 + $0xb0] sm:$0xf]
        %v2518 = vld [vmem:[#allocation3 + $0xb4] sm:$0xff]
        %v2519 = vld [vmem:[#allocation3 + $0xbc] sm:$0xff]
        %v2520 = vld [vmem:[#allocation3 + $0xc4] sm:$0xff]
        %v2521 = vld [vmem:[#allocation3 + $0xcc] sm:$0xff]
        %v2522 = vld [vmem:[#allocation3 + $0xd4] sm:$0xf]
        %v2523 = vld [vmem:[#allocation3 + $0xd8] sm:$0xff]
        %v2524 = vld [vmem:[#allocation3 + $0xe0] sm:$0xff]
        %v2525 = vld [vmem:[#allocation3 + $0xe8] sm:$0xff]
        %v2526 = vld [vmem:[#allocation3 + $0xf0] sm:$0xff]
        %v2527 = vld [vmem:[#allocation3 + $0xf8] sm:$0xf]
        %v2528 = vld [vmem:[#allocation3 + $0xfc] sm:$0xff]
        %v2529 = vld [vmem:[#allocation3 + $0x104] sm:$0xff]
        %v2530 = vld [vmem:[#allocation3 + $0x10c] sm:$0xff]
        %v2531 = vld [vmem:[#allocation3 + $0x114] sm:$0xff]
        %v2532 = vld [vmem:[#allocation3 + $0x11c] sm:$0xf]
        %v2533 = vld [vmem:[#allocation3 + $0x120] sm:$0xff]
        %v2534 = vld [vmem:[#allocation3 + $0x128] sm:$0xff]
        %v2535 = vld [vmem:[#allocation3 + $0x130] sm:$0xff]
        %v2536 = vld [vmem:[#allocation3 + $0x138] sm:$0xff]
        %v2537 = vld [vmem:[#allocation3 + $0x140] sm:$0xf]
        %v2538 = vld [vmem:[#allocation3 + $0x144] sm:$0xff]
        %v2539 = vld [vmem:[#allocation3 + $0x14c] sm:$0xff]
        %v2540 = vld [vmem:[#allocation3 + $0x154] sm:$0xff]
        %v2541 = vld [vmem:[#allocation3 + $0x15c] sm:$0xff]
        %v2542 = vld [vmem:[#allocation3 + $0x164] sm:$0xf]
        %v2543 = vld [vmem:[#allocation3 + $0x168] sm:$0xff]
        %v2544 = vld [vmem:[#allocation3 + $0x170] sm:$0xff]
        %v2545 = vld [vmem:[#allocation3 + $0x178] sm:$0xff]
        %v2546 = vld [vmem:[#allocation3 + $0x180] sm:$0xff]
        %v2547 = vld [vmem:[#allocation3 + $0x188] sm:$0xf]
        %v2548 = vld [vmem:[#allocation3 + $0x18c] sm:$0xff]
        %v2549 = vld [vmem:[#allocation3 + $0x194] sm:$0xff]
        %v2550 = vld [vmem:[#allocation3 + $0x19c] sm:$0xff]
        %v2551 = vld [vmem:[#allocation3 + $0x1a4] sm:$0xff]
        %v2552 = vld [vmem:[#allocation3 + $0x1ac] sm:$0xf]
        %v2553 = vld [vmem:[#allocation3 + $0x1b0] sm:$0xff]
        %v2554 = vld [vmem:[#allocation3 + $0x1b8] sm:$0xff]
        %v2555 = vld [vmem:[#allocation3 + $0x1c0] sm:$0xff]
        %v2556 = vld [vmem:[#allocation3 + $0x1c8] sm:$0xff]
        %v2557 = vld [vmem:[#allocation3 + $0x1d0] sm:$0xf]
        %v2558 = vld [vmem:[#allocation3 + $0x1d4] sm:$0xff]
        %v2559 = vld [vmem:[#allocation3 + $0x1dc] sm:$0xff]
        %v2560 = vld [vmem:[#allocation3 + $0x1e4] sm:$0xff]
        %v2561 = vld [vmem:[#allocation3 + $0x1ec] sm:$0xff]
        %v2562 = vld [vmem:[#allocation3 + $0x1f4] sm:$0xf]
        %v2563 = vld [vmem:[#allocation3 + $0x1f8] sm:$0xff]
        %v2564 = vld [vmem:[#allocation3 + $0x200] sm:$0xff]
        %v2565 = vld [vmem:[#allocation3 + $0x208] sm:$0xff]
        %v2566 = vld [vmem:[#allocation3 + $0x210] sm:$0xff]
        %v2567 = vld [vmem:[#allocation3 + $0x218] sm:$0xf]
        %v2568 = vld [vmem:[#allocation3 + $0x21c] sm:$0xff]
        %v2569 = vld [vmem:[#allocation3 + $0x224] sm:$0xff]
        %v2570 = vld [vmem:[#allocation3 + $0x22c] sm:$0xff]
        %v2571 = vld [vmem:[#allocation3 + $0x234] sm:$0xff]
        %v2572 = vld [vmem:[#allocation3 + $0x23c] sm:$0xf]
        %v2573 = vld [vmem:[#allocation3 + $0x240] sm:$0xff]
        %v2574 = vld [vmem:[#allocation3 + $0x248] sm:$0xff]
        %v2575 = vld [vmem:[#allocation3 + $0x250] sm:$0xff]
        %v2576 = vld [vmem:[#allocation3 + $0x258] sm:$0xff]
        %v2577 = vld [vmem:[#allocation3 + $0x260] sm:$0xf]
        %v2578 = vld [vmem:[#allocation3 + $0x264] sm:$0xff]
        %v2579 = vld [vmem:[#allocation3 + $0x26c] sm:$0xff]
        %v2580 = vld [vmem:[#allocation3 + $0x274] sm:$0xff]
        %v2581 = vld [vmem:[#allocation3 + $0x27c] sm:$0xff]
        %v2582 = vld [vmem:[#allocation3 + $0x284] sm:$0xf]
        %v2583 = vld [vmem:[#allocation3 + $0x288] sm:$0xff]
        %v2584 = vld [vmem:[#allocation3 + $0x290] sm:$0xff]
        %v2585 = vld [vmem:[#allocation3 + $0x298] sm:$0xff]
        %v2586 = vld [vmem:[#allocation3 + $0x2a0] sm:$0xff]
        %v2587 = vld [vmem:[#allocation3 + $0x2a8] sm:$0xf]
        %v2588 = vld [vmem:[#allocation3 + $0x2ac] sm:$0xff]
        %v2589 = vld [vmem:[#allocation3 + $0x2b4] sm:$0xff]
        %v2590 = vld [vmem:[#allocation3 + $0x2bc] sm:$0xff]
        %v2591 = vld [vmem:[#allocation3 + $0x2c4] sm:$0xff]
        %v2592 = vld [vmem:[#allocation3 + $0x2cc] sm:$0xf]
        %v2593 = vld [vmem:[#allocation3 + $0x2d0] sm:$0xff]
        %v2594 = vld [vmem:[#allocation3 + $0x2d8] sm:$0xff]
        %v2595 = vld [vmem:[#allocation3 + $0x2e0] sm:$0xff]
        %v2596 = vld [vmem:[#allocation3 + $0x2e8] sm:$0xff]
        %v2597 = vld [vmem:[#allocation3 + $0x2f0] sm:$0xf]
        %v2598 = vld [vmem:[#allocation3 + $0x2f4] sm:$0xff]
        %v2599 = vld [vmem:[#allocation3 + $0x2fc] sm:$0xff]
        %v2600 = vld [vmem:[#allocation3 + $0x304] sm:$0xff]
        %v2601 = vld [vmem:[#allocation3 + $0x30c] sm:$0xff]
        %v2602 = vld [vmem:[#allocation3 + $0x314] sm:$0xf]
        %v2603 = vld [vmem:[#allocation3 + $0x318] sm:$0xff]
        %v2604 = vld [vmem:[#allocation3 + $0x320] sm:$0xff]
        %v2605 = vld [vmem:[#allocation3 + $0x328] sm:$0xff]
        %v2606 = vld [vmem:[#allocation3 + $0x330] sm:$0xff]
        %v2607 = vld [vmem:[#allocation3 + $0x338] sm:$0xf]
        %v2608 = vld [vmem:[#allocation3 + $0x33c] sm:$0xff]
        %v2609 = vld [vmem:[#allocation3 + $0x344] sm:$0xff]
        %v2610 = vld [vmem:[#allocation3 + $0x34c] sm:$0xff]
        %v2611 = vld [vmem:[#allocation3 + $0x354] sm:$0xff]
        %v2612 = vld [vmem:[#allocation3 + $0x35c] sm:$0xf]
        %v2613 = vld [vmem:[#allocation3 + $0x360] sm:$0xff]
        %v2614 = vld [vmem:[#allocation3 + $0x368] sm:$0xff]
        %v2615 = vld [vmem:[#allocation3 + $0x370] sm:$0xff]
        %v2616 = vld [vmem:[#allocation3 + $0x378] sm:$0xff]
        %v2617 = vld [vmem:[#allocation3 + $0x380] sm:$0xf]
        %v2618 = vld [vmem:[#allocation3 + $0x384] sm:$0xff]
        %v2619 = vld [vmem:[#allocation3 + $0x38c] sm:$0xff]
        %v2620 = vld [vmem:[#allocation3 + $0x394] sm:$0xff]
        %v2621 = vld [vmem:[#allocation3 + $0x39c] sm:$0xff]
        %v2622 = vld [vmem:[#allocation3 + $0x3a4] sm:$0xf]
        %v2623 = vld [vmem:[#allocation3 + $0x3a8] sm:$0xff]
        %v2624 = vld [vmem:[#allocation3 + $0x3b0] sm:$0xff]
        %v2625 = vld [vmem:[#allocation3 + $0x3b8] sm:$0xff]
        %v2626 = vld [vmem:[#allocation3 + $0x3c0] sm:$0xff]
        %v2627 = vld [vmem:[#allocation3 + $0x3c8] sm:$0xf]
        %v2628 = vld [vmem:[#allocation3 + $0x3cc] sm:$0xff]
        %v2629 = vld [vmem:[#allocation3 + $0x3d4] sm:$0xff]
        %v2630 = vld [vmem:[#allocation3 + $0x3dc] sm:$0xff]
        %v2631 = vld [vmem:[#allocation3 + $0x3e4] sm:$0xff]
        %v2632 = vld [vmem:[#allocation3 + $0x3ec] sm:$0xf]
        %v2633 = vld [vmem:[#allocation3 + $0x3f0] sm:$0xff]
        %v2634 = vld [vmem:[#allocation3 + $0x3f8] sm:$0xff]
        %v2635 = vld [vmem:[#allocation3 + $0x400] sm:$0xff]
        %v2636 = vld [vmem:[#allocation3 + $0x408] sm:$0xff]
        %v2637 = vld [vmem:[#allocation3 + $0x410] sm:$0xf]
        %v2638 = vld [vmem:[#allocation3 + $0x414] sm:$0xff]
        %v2639 = vld [vmem:[#allocation3 + $0x41c] sm:$0xff]
        %v2640 = vld [vmem:[#allocation3 + $0x424] sm:$0xff]
        %v2641 = vld [vmem:[#allocation3 + $0x42c] sm:$0xff]
        %v2642 = vld [vmem:[#allocation3 + $0x434] sm:$0xf]
        %v2643 = vld [vmem:[#allocation3 + $0x438] sm:$0xff]
        %v2644 = vld [vmem:[#allocation3 + $0x440] sm:$0xff]
        %v2645 = vld [vmem:[#allocation3 + $0x448] sm:$0xff]
        %v2646 = vld [vmem:[#allocation3 + $0x450] sm:$0xff]
        %v2647 = vld [vmem:[#allocation3 + $0x458] sm:$0xf]
        %v2648 = vld [vmem:[#allocation3 + $0x45c] sm:$0xff]
        %v2649 = vld [vmem:[#allocation3 + $0x464] sm:$0xff]
        %v2650 = vld [vmem:[#allocation3 + $0x46c] sm:$0xff]
        %v2651 = vld [vmem:[#allocation3 + $0x474] sm:$0xff]
        %v2652 = vld [vmem:[#allocation3 + $0x47c] sm:$0xf]
        %v2653 = vld [vmem:[#allocation9] sm:$0xf]
        %v2654 = vld [vmem:[#allocation9 + $0x4] sm:$0xf]
        %v2655 = vld [vmem:[#allocation9 + $0x8] sm:$0xf]
        %v2656 = vld [vmem:[#allocation9 + $0xc] sm:$0xf]
        %v2657 = vld [vmem:[#allocation9 + $0x10] sm:$0xf]
        %v2658 = vld [vmem:[#allocation9 + $0x14] sm:$0xf]
        %v2659 = vld [vmem:[#allocation9 + $0x18] sm:$0xf]
        %v2660 = vld [vmem:[#allocation9 + $0x1c] sm:$0xf]
        %v2661 = vld [vmem:[#allocation9 + $0x20] sm:$0xf]
        %v2662 = vld [vmem:[#allocation9 + $0x24] sm:$0xf]
        %v2663 = vld [vmem:[#allocation9 + $0x28] sm:$0xf]
        %v2664 = vld [vmem:[#allocation9 + $0x2c] sm:$0xf]
        %v2665 = vld [vmem:[#allocation9 + $0x30] sm:$0xf]
        %v2666 = vld [vmem:[#allocation9 + $0x34] sm:$0xf]
        %v2667 = vld [vmem:[#allocation9 + $0x38] sm:$0xf]
        %v2668 = vld [vmem:[#allocation9 + $0x3c] sm:$0xf]
        %v2669 = vld [vmem:[#allocation9 + $0x40] sm:$0xf]
        %v2670 = vld [vmem:[#allocation9 + $0x44] sm:$0xf]
        %v2671 = vld [vmem:[#allocation9 + $0x48] sm:$0xf]
        %v2672 = vld [vmem:[#allocation9 + $0x4c] sm:$0xf]
        %v2673 = vld [vmem:[#allocation9 + $0x50] sm:$0xf]
        %v2674 = vld [vmem:[#allocation9 + $0x54] sm:$0xf]
        %v2675 = vld [vmem:[#allocation9 + $0x58] sm:$0xf]
        %v2676 = vld [vmem:[#allocation9 + $0x5c] sm:$0xf]
        %v2677 = vld [vmem:[#allocation9 + $0x60] sm:$0xf]
        %v2678 = vld [vmem:[#allocation9 + $0x64] sm:$0xf]
        %v2679 = vld [vmem:[#allocation9 + $0x68] sm:$0xf]
        %v2680 = vld [vmem:[#allocation9 + $0x6c] sm:$0xf]
        %v2681 = vld [vmem:[#allocation9 + $0x70] sm:$0xf]
        %v2682 = vld [vmem:[#allocation9 + $0x74] sm:$0xf]
        %v2683 = vld [vmem:[#allocation9 + $0x78] sm:$0xf]
        %v2684 = vld [vmem:[#allocation9 + $0x7c] sm:$0xf]
        %v2685 = vld [vmem:[#allocation9 + $0x80] sm:$0xf]
        %v2686 = vld [vmem:[#allocation9 + $0x84] sm:$0xf]
        %v2687 = vld [vmem:[#allocation9 + $0x88] sm:$0xf]
        %v2688 = vld [vmem:[#allocation9 + $0x8c] sm:$0xf]
        %v2689 = vld [vmem:[#allocation9 + $0x90] sm:$0xf]
        %v2690 = vld [vmem:[#allocation9 + $0x94] sm:$0xf]
        %v2691 = vld [vmem:[#allocation9 + $0x98] sm:$0xf]
        %v2692 = vld [vmem:[#allocation9 + $0x9c] sm:$0xf]
        %v2693 = vld [vmem:[#allocation9 + $0xa0] sm:$0xf]
        %v2694 = vld [vmem:[#allocation9 + $0xa4] sm:$0xf]
        %v2695 = vld [vmem:[#allocation9 + $0xa8] sm:$0xf]
        %v2696 = vld [vmem:[#allocation9 + $0xac] sm:$0xf]
        %v2697 = vld [vmem:[#allocation9 + $0xb0] sm:$0xf]
        %v2698 = vld [vmem:[#allocation9 + $0xb4] sm:$0xf]
        %v2699 = vld [vmem:[#allocation9 + $0xb8] sm:$0xf]
        %v2700 = vld [vmem:[#allocation9 + $0xbc] sm:$0xf]
        %v2701 = vld [vmem:[#allocation9 + $0xc0] sm:$0xf]
        %v2702 = vld [vmem:[#allocation9 + $0xc4] sm:$0xf]
        %v2703 = vld [vmem:[#allocation9 + $0xc8] sm:$0xf]
        %v2704 = vld [vmem:[#allocation9 + $0xcc] sm:$0xf]
        %v2705 = vld [vmem:[#allocation9 + $0xd0] sm:$0xf]
        %v2706 = vld [vmem:[#allocation9 + $0xd4] sm:$0xf]
        %v2707 = vld [vmem:[#allocation9 + $0xd8] sm:$0xf]
        %v2708 = vld [vmem:[#allocation9 + $0xdc] sm:$0xf]
        %v2709 = vld [vmem:[#allocation9 + $0xe0] sm:$0xf]
        %v2710 = vld [vmem:[#allocation9 + $0xe4] sm:$0xf]
        %v2711 = vld [vmem:[#allocation9 + $0xe8] sm:$0xf]
        %v2712 = vld [vmem:[#allocation9 + $0xec] sm:$0xf]
        %v2713 = vld [vmem:[#allocation9 + $0xf0] sm:$0xf]
        %v2714 = vld [vmem:[#allocation9 + $0xf4] sm:$0xf]
        %v2715 = vld [vmem:[#allocation9 + $0xf8] sm:$0xf]
        %v2716 = vld [vmem:[#allocation9 + $0xfc] sm:$0xf]
        %v2717 = vld [vmem:[#allocation9 + $0x100] sm:$0xf]
        %v2718 = vld [vmem:[#allocation9 + $0x104] sm:$0xf]
        %v2719 = vld [vmem:[#allocation9 + $0x108] sm:$0xf]
        %v2720 = vld [vmem:[#allocation9 + $0x10c] sm:$0xf]
        %v2721 = vld [vmem:[#allocation9 + $0x110] sm:$0xf]
        %v2722 = vld [vmem:[#allocation9 + $0x114] sm:$0xf]
        %v2723 = vld [vmem:[#allocation9 + $0x118] sm:$0xf]
        %v2724 = vld [vmem:[#allocation9 + $0x11c] sm:$0xf]
        %v2725 = vld [vmem:[#allocation9 + $0x120] sm:$0xf]
        %v2726 = vld [vmem:[#allocation9 + $0x124] sm:$0xf]
        %v2727 = vld [vmem:[#allocation9 + $0x128] sm:$0xf]
        %v2728 = vld [vmem:[#allocation9 + $0x12c] sm:$0xf]
        %v2729 = vld [vmem:[#allocation9 + $0x130] sm:$0xf]
        %v2730 = vld [vmem:[#allocation9 + $0x134] sm:$0xf]
        %v2731 = vld [vmem:[#allocation9 + $0x138] sm:$0xf]
        %v2732 = vld [vmem:[#allocation9 + $0x13c] sm:$0xf]
        %v2733 = vld [vmem:[#allocation9 + $0x140] sm:$0xf]
        %v2734 = vld [vmem:[#allocation9 + $0x144] sm:$0xf]
        %v2735 = vld [vmem:[#allocation9 + $0x148] sm:$0xf]
        %v2736 = vld [vmem:[#allocation9 + $0x14c] sm:$0xf]
        %v2737 = vld [vmem:[#allocation9 + $0x150] sm:$0xf]
        %v2738 = vld [vmem:[#allocation9 + $0x154] sm:$0xf]
        %v2739 = vld [vmem:[#allocation9 + $0x158] sm:$0xf]
        %v2740 = vld [vmem:[#allocation9 + $0x15c] sm:$0xf]
        %v2741 = vld [vmem:[#allocation9 + $0x160] sm:$0xf]
        %v2742 = vld [vmem:[#allocation9 + $0x164] sm:$0xf]
        %v2743 = vld [vmem:[#allocation9 + $0x168] sm:$0xf]
        %v2744 = vld [vmem:[#allocation9 + $0x16c] sm:$0xf]
        %v2745 = vld [vmem:[#allocation9 + $0x170] sm:$0xf]
        %v2746 = vld [vmem:[#allocation9 + $0x174] sm:$0xf]
        %v2747 = vld [vmem:[#allocation9 + $0x178] sm:$0xf]
        %v2748 = vld [vmem:[#allocation9 + $0x17c] sm:$0xf]
        %v2749 = vld [vmem:[#allocation9 + $0x180] sm:$0xf]
        %v2750 = vld [vmem:[#allocation9 + $0x184] sm:$0xf]
        %v2751 = vld [vmem:[#allocation9 + $0x188] sm:$0xf]
        %v2752 = vld [vmem:[#allocation9 + $0x18c] sm:$0xf]
        %v2753 = vld [vmem:[#allocation9 + $0x190] sm:$0xf]
        %v2754 = vld [vmem:[#allocation9 + $0x194] sm:$0xf]
        %v2755 = vld [vmem:[#allocation9 + $0x198] sm:$0xf]
        %v2756 = vld [vmem:[#allocation9 + $0x19c] sm:$0xf]
        %v2757 = vld [vmem:[#allocation9 + $0x1a0] sm:$0xf]
        %v2758 = vld [vmem:[#allocation9 + $0x1a4] sm:$0xf]
        %v2759 = vld [vmem:[#allocation9 + $0x1a8] sm:$0xf]
        %v2760 = vld [vmem:[#allocation9 + $0x1ac] sm:$0xf]
        %v2761 = vld [vmem:[#allocation9 + $0x1b0] sm:$0xf]
        %v2762 = vld [vmem:[#allocation9 + $0x1b4] sm:$0xf]
        %v2763 = vld [vmem:[#allocation9 + $0x1b8] sm:$0xf]
        %v2764 = vld [vmem:[#allocation9 + $0x1bc] sm:$0xf]
        %v2765 = vld [vmem:[#allocation9 + $0x1c0] sm:$0xf]
        %v2766 = vld [vmem:[#allocation9 + $0x1c4] sm:$0xf]
        %v2767 = vld [vmem:[#allocation9 + $0x1c8] sm:$0xf]
        %v2768 = vld [vmem:[#allocation9 + $0x1cc] sm:$0xf]
        %v2769 = vld [vmem:[#allocation9 + $0x1d0] sm:$0xf]
        %v2770 = vld [vmem:[#allocation9 + $0x1d4] sm:$0xf]
        %v2771 = vld [vmem:[#allocation9 + $0x1d8] sm:$0xf]
        %v2772 = vld [vmem:[#allocation9 + $0x1dc] sm:$0xf]
        %v2773 = vld [vmem:[#allocation9 + $0x1e0] sm:$0xf]
        %v2774 = vld [vmem:[#allocation9 + $0x1e4] sm:$0xf]
        %v2775 = vld [vmem:[#allocation9 + $0x1e8] sm:$0xf]
        %v2776 = vld [vmem:[#allocation9 + $0x1ec] sm:$0xf]
        %v2777 = vld [vmem:[#allocation9 + $0x1f0] sm:$0xf]
        %v2778 = vld [vmem:[#allocation9 + $0x1f4] sm:$0xf]
        %v2779 = vld [vmem:[#allocation9 + $0x1f8] sm:$0xf]
        %v2780 = vld [vmem:[#allocation9 + $0x1fc] sm:$0xf]
        %v2781 = vld [vmem:[#allocation9 + $0x200] sm:$0xf]
        %v2782 = vld [vmem:[#allocation9 + $0x204] sm:$0xf]
        %v2783 = vld [vmem:[#allocation9 + $0x208] sm:$0xf]
        %v2784 = vld [vmem:[#allocation9 + $0x20c] sm:$0xf]
        %v2785 = vld [vmem:[#allocation9 + $0x210] sm:$0xf]
        %v2786 = vld [vmem:[#allocation9 + $0x214] sm:$0xf]
        %v2787 = vld [vmem:[#allocation9 + $0x218] sm:$0xf]
        %v2788 = vld [vmem:[#allocation9 + $0x21c] sm:$0xf]
        %v2789 = vld [vmem:[#allocation9 + $0x220] sm:$0xf]
        %v2790 = vld [vmem:[#allocation9 + $0x224] sm:$0xf]
        %v2791 = vld [vmem:[#allocation9 + $0x228] sm:$0xf]
        %v2792 = vld [vmem:[#allocation9 + $0x22c] sm:$0xf]
        %v2793 = vld [vmem:[#allocation9 + $0x230] sm:$0xf]
        %v2794 = vld [vmem:[#allocation9 + $0x234] sm:$0xf]
        %v2795 = vld [vmem:[#allocation9 + $0x238] sm:$0xf]
        %v2796 = vld [vmem:[#allocation9 + $0x23c] sm:$0xf]
        %v2797 = vld [vmem:[#allocation10] sm:$0x1]
        %v2799 = vperm.slane %v2797, 0
        %v2961 = vunpack.c.l.b16 %v2493
        %v2962 = vunpack.c.h.b16 %v2493
        %v2963 = vunpack.c.l.b16 %v2494
        %v2964 = vunpack.c.h.b16 %v2494
        %v2965 = vunpack.c.l.b16 %v2495
        %v2966 = vunpack.c.h.b16 %v2495
        %v2967 = vunpack.c.l.b16 %v2496
        %v2968 = vunpack.c.h.b16 %v2496
        %v2969 = vunpack.c.l.b16 %v2497
        %v2970 = vunpack.c.l.b16 %v2498
        %v2971 = vunpack.c.h.b16 %v2498
        %v2972 = vunpack.c.l.b16 %v2499
        %v2973 = vunpack.c.h.b16 %v2499
        %v2974 = vunpack.c.l.b16 %v2500
        %v2975 = vunpack.c.h.b16 %v2500
        %v2976 = vunpack.c.l.b16 %v2501
        %v2977 = vunpack.c.h.b16 %v2501
        %v2978 = vunpack.c.l.b16 %v2502
        %v2979 = vunpack.c.l.b16 %v2503
        %v2980 = vunpack.c.h.b16 %v2503
        %v2981 = vunpack.c.l.b16 %v2504
        %v2982 = vunpack.c.h.b16 %v2504
        %v2983 = vunpack.c.l.b16 %v2505
        %v2984 = vunpack.c.h.b16 %v2505
        %v2985 = vunpack.c.l.b16 %v2506
        %v2986 = vunpack.c.h.b16 %v2506
        %v2987 = vunpack.c.l.b16 %v2507
        %v2988 = vunpack.c.l.b16 %v2508
        %v2989 = vunpack.c.h.b16 %v2508
        %v2990 = vunpack.c.l.b16 %v2509
        %v2991 = vunpack.c.h.b16 %v2509
        %v2992 = vunpack.c.l.b16 %v2510
        %v2993 = vunpack.c.h.b16 %v2510
        %v2994 = vunpack.c.l.b16 %v2511
        %v2995 = vunpack.c.h.b16 %v2511
        %v2996 = vunpack.c.l.b16 %v2512
        %v2997 = vunpack.c.l.b16 %v2513
        %v2998 = vunpack.c.h.b16 %v2513
        %v2999 = vunpack.c.l.b16 %v2514
        %v3000 = vunpack.c.h.b16 %v2514
        %v3001 = vunpack.c.l.b16 %v2515
        %v3002 = vunpack.c.h.b16 %v2515
        %v3003 = vunpack.c.l.b16 %v2516
        %v3004 = vunpack.c.h.b16 %v2516
        %v3005 = vunpack.c.l.b16 %v2517
        %v3006 = vunpack.c.l.b16 %v2518
        %v3007 = vunpack.c.h.b16 %v2518
        %v3008 = vunpack.c.l.b16 %v2519
        %v3009 = vunpack.c.h.b16 %v2519
        %v3010 = vunpack.c.l.b16 %v2520
        %v3011 = vunpack.c.h.b16 %v2520
        %v3012 = vunpack.c.l.b16 %v2521
        %v3013 = vunpack.c.h.b16 %v2521
        %v3014 = vunpack.c.l.b16 %v2522
        %v3015 = vunpack.c.l.b16 %v2523
        %v3016 = vunpack.c.h.b16 %v2523
        %v3017 = vunpack.c.l.b16 %v2524
        %v3018 = vunpack.c.h.b16 %v2524
        %v3019 = vunpack.c.l.b16 %v2525
        %v3020 = vunpack.c.h.b16 %v2525
        %v3021 = vunpack.c.l.b16 %v2526
        %v3022 = vunpack.c.h.b16 %v2526
        %v3023 = vunpack.c.l.b16 %v2527
        %v3024 = vunpack.c.l.b16 %v2528
        %v3025 = vunpack.c.h.b16 %v2528
        %v3026 = vunpack.c.l.b16 %v2529
        %v3027 = vunpack.c.h.b16 %v2529
        %v3028 = vunpack.c.l.b16 %v2530
        %v3029 = vunpack.c.h.b16 %v2530
        %v3030 = vunpack.c.l.b16 %v2531
        %v3031 = vunpack.c.h.b16 %v2531
        %v3032 = vunpack.c.l.b16 %v2532
        %v3033 = vunpack.c.l.b16 %v2533
        %v3034 = vunpack.c.h.b16 %v2533
        %v3035 = vunpack.c.l.b16 %v2534
        %v3036 = vunpack.c.h.b16 %v2534
        %v3037 = vunpack.c.l.b16 %v2535
        %v3038 = vunpack.c.h.b16 %v2535
        %v3039 = vunpack.c.l.b16 %v2536
        %v3040 = vunpack.c.h.b16 %v2536
        %v3041 = vunpack.c.l.b16 %v2537
        %v3042 = vunpack.c.l.b16 %v2538
        %v3043 = vunpack.c.h.b16 %v2538
        %v3044 = vunpack.c.l.b16 %v2539
        %v3045 = vunpack.c.h.b16 %v2539
        %v3046 = vunpack.c.l.b16 %v2540
        %v3047 = vunpack.c.h.b16 %v2540
        %v3048 = vunpack.c.l.b16 %v2541
        %v3049 = vunpack.c.h.b16 %v2541
        %v3050 = vunpack.c.l.b16 %v2542
        %v3051 = vunpack.c.l.b16 %v2543
        %v3052 = vunpack.c.h.b16 %v2543
        %v3053 = vunpack.c.l.b16 %v2544
        %v3054 = vunpack.c.h.b16 %v2544
        %v3055 = vunpack.c.l.b16 %v2545
        %v3056 = vunpack.c.h.b16 %v2545
        %v3057 = vunpack.c.l.b16 %v2546
        %v3058 = vunpack.c.h.b16 %v2546
        %v3059 = vunpack.c.l.b16 %v2547
        %v3060 = vunpack.c.l.b16 %v2548
        %v3061 = vunpack.c.h.b16 %v2548
        %v3062 = vunpack.c.l.b16 %v2549
        %v3063 = vunpack.c.h.b16 %v2549
        %v3064 = vunpack.c.l.b16 %v2550
        %v3065 = vunpack.c.h.b16 %v2550
        %v3066 = vunpack.c.l.b16 %v2551
        %v3067 = vunpack.c.h.b16 %v2551
        %v3068 = vunpack.c.l.b16 %v2552
        %v3069 = vunpack.c.l.b16 %v2553
        %v3070 = vunpack.c.h.b16 %v2553
        %v3071 = vunpack.c.l.b16 %v2554
        %v3072 = vunpack.c.h.b16 %v2554
        %v3073 = vunpack.c.l.b16 %v2555
        %v3074 = vunpack.c.h.b16 %v2555
        %v3075 = vunpack.c.l.b16 %v2556
        %v3076 = vunpack.c.h.b16 %v2556
        %v3077 = vunpack.c.l.b16 %v2557
        %v3078 = vunpack.c.l.b16 %v2558
        %v3079 = vunpack.c.h.b16 %v2558
        %v3080 = vunpack.c.l.b16 %v2559
        %v3081 = vunpack.c.h.b16 %v2559
        %v3082 = vunpack.c.l.b16 %v2560
        %v3083 = vunpack.c.h.b16 %v2560
        %v3084 = vunpack.c.l.b16 %v2561
        %v3085 = vunpack.c.h.b16 %v2561
        %v3086 = vunpack.c.l.b16 %v2562
        %v3087 = vunpack.c.l.b16 %v2563
        %v3088 = vunpack.c.h.b16 %v2563
        %v3089 = vunpack.c.l.b16 %v2564
        %v3090 = vunpack.c.h.b16 %v2564
        %v3091 = vunpack.c.l.b16 %v2565
        %v3092 = vunpack.c.h.b16 %v2565
        %v3093 = vunpack.c.l.b16 %v2566
        %v3094 = vunpack.c.h.b16 %v2566
        %v3095 = vunpack.c.l.b16 %v2567
        %v3096 = vunpack.c.l.b16 %v2568
        %v3097 = vunpack.c.h.b16 %v2568
        %v3098 = vunpack.c.l.b16 %v2569
        %v3099 = vunpack.c.h.b16 %v2569
        %v3100 = vunpack.c.l.b16 %v2570
        %v3101 = vunpack.c.h.b16 %v2570
        %v3102 = vunpack.c.l.b16 %v2571
        %v3103 = vunpack.c.h.b16 %v2571
        %v3104 = vunpack.c.l.b16 %v2572
        %v3105 = vunpack.c.l.b16 %v2573
        %v3106 = vunpack.c.h.b16 %v2573
        %v3107 = vunpack.c.l.b16 %v2574
        %v3108 = vunpack.c.h.b16 %v2574
        %v3109 = vunpack.c.l.b16 %v2575
        %v3110 = vunpack.c.h.b16 %v2575
        %v3111 = vunpack.c.l.b16 %v2576
        %v3112 = vunpack.c.h.b16 %v2576
        %v3113 = vunpack.c.l.b16 %v2577
        %v3114 = vunpack.c.l.b16 %v2578
        %v3115 = vunpack.c.h.b16 %v2578
        %v3116 = vunpack.c.l.b16 %v2579
        %v3117 = vunpack.c.h.b16 %v2579
        %v3118 = vunpack.c.l.b16 %v2580
        %v3119 = vunpack.c.h.b16 %v2580
        %v3120 = vunpack.c.l.b16 %v2581
        %v3121 = vunpack.c.h.b16 %v2581
        %v3122 = vunpack.c.l.b16 %v2582
        %v3123 = vunpack.c.l.b16 %v2583
        %v3124 = vunpack.c.h.b16 %v2583
        %v3125 = vunpack.c.l.b16 %v2584
        %v3126 = vunpack.c.h.b16 %v2584
        %v3127 = vunpack.c.l.b16 %v2585
        %v3128 = vunpack.c.h.b16 %v2585
        %v3129 = vunpack.c.l.b16 %v2586
        %v3130 = vunpack.c.h.b16 %v2586
        %v3131 = vunpack.c.l.b16 %v2587
        %v3132 = vunpack.c.l.b16 %v2588
        %v3133 = vunpack.c.h.b16 %v2588
        %v3134 = vunpack.c.l.b16 %v2589
        %v3135 = vunpack.c.h.b16 %v2589
        %v3136 = vunpack.c.l.b16 %v2590
        %v3137 = vunpack.c.h.b16 %v2590
        %v3138 = vunpack.c.l.b16 %v2591
        %v3139 = vunpack.c.h.b16 %v2591
        %v3140 = vunpack.c.l.b16 %v2592
        %v3141 = vunpack.c.l.b16 %v2593
        %v3142 = vunpack.c.h.b16 %v2593
        %v3143 = vunpack.c.l.b16 %v2594
        %v3144 = vunpack.c.h.b16 %v2594
        %v3145 = vunpack.c.l.b16 %v2595
        %v3146 = vunpack.c.h.b16 %v2595
        %v3147 = vunpack.c.l.b16 %v2596
        %v3148 = vunpack.c.h.b16 %v2596
        %v3149 = vunpack.c.l.b16 %v2597
        %v3150 = vunpack.c.l.b16 %v2598
        %v3151 = vunpack.c.h.b16 %v2598
        %v3152 = vunpack.c.l.b16 %v2599
        %v3153 = vunpack.c.h.b16 %v2599
        %v3154 = vunpack.c.l.b16 %v2600
        %v3155 = vunpack.c.h.b16 %v2600
        %v3156 = vunpack.c.l.b16 %v2601
        %v3157 = vunpack.c.h.b16 %v2601
        %v3158 = vunpack.c.l.b16 %v2602
        %v3159 = vunpack.c.l.b16 %v2603
        %v3160 = vunpack.c.h.b16 %v2603
        %v3161 = vunpack.c.l.b16 %v2604
        %v3162 = vunpack.c.h.b16 %v2604
        %v3163 = vunpack.c.l.b16 %v2605
        %v3164 = vunpack.c.h.b16 %v2605
        %v3165 = vunpack.c.l.b16 %v2606
        %v3166 = vunpack.c.h.b16 %v2606
        %v3167 = vunpack.c.l.b16 %v2607
        %v3168 = vunpack.c.l.b16 %v2608
        %v3169 = vunpack.c.h.b16 %v2608
        %v3170 = vunpack.c.l.b16 %v2609
        %v3171 = vunpack.c.h.b16 %v2609
        %v3172 = vunpack.c.l.b16 %v2610
        %v3173 = vunpack.c.h.b16 %v2610
        %v3174 = vunpack.c.l.b16 %v2611
        %v3175 = vunpack.c.h.b16 %v2611
        %v3176 = vunpack.c.l.b16 %v2612
        %v3177 = vunpack.c.l.b16 %v2613
        %v3178 = vunpack.c.h.b16 %v2613
        %v3179 = vunpack.c.l.b16 %v2614
        %v3180 = vunpack.c.h.b16 %v2614
        %v3181 = vunpack.c.l.b16 %v2615
        %v3182 = vunpack.c.h.b16 %v2615
        %v3183 = vunpack.c.l.b16 %v2616
        %v3184 = vunpack.c.h.b16 %v2616
        %v3185 = vunpack.c.l.b16 %v2617
        %v3186 = vunpack.c.l.b16 %v2618
        %v3187 = vunpack.c.h.b16 %v2618
        %v3188 = vunpack.c.l.b16 %v2619
        %v3189 = vunpack.c.h.b16 %v2619
        %v3190 = vunpack.c.l.b16 %v2620
        %v3191 = vunpack.c.h.b16 %v2620
        %v3192 = vunpack.c.l.b16 %v2621
        %v3193 = vunpack.c.h.b16 %v2621
        %v3194 = vunpack.c.l.b16 %v2622
        %v3195 = vunpack.c.l.b16 %v2623
        %v3196 = vunpack.c.h.b16 %v2623
        %v3197 = vunpack.c.l.b16 %v2624
        %v3198 = vunpack.c.h.b16 %v2624
        %v3199 = vunpack.c.l.b16 %v2625
        %v3200 = vunpack.c.h.b16 %v2625
        %v3201 = vunpack.c.l.b16 %v2626
        %v3202 = vunpack.c.h.b16 %v2626
        %v3203 = vunpack.c.l.b16 %v2627
        %v3204 = vunpack.c.l.b16 %v2628
        %v3205 = vunpack.c.h.b16 %v2628
        %v3206 = vunpack.c.l.b16 %v2629
        %v3207 = vunpack.c.h.b16 %v2629
        %v3208 = vunpack.c.l.b16 %v2630
        %v3209 = vunpack.c.h.b16 %v2630
        %v3210 = vunpack.c.l.b16 %v2631
        %v3211 = vunpack.c.h.b16 %v2631
        %v3212 = vunpack.c.l.b16 %v2632
        %v3213 = vunpack.c.l.b16 %v2633
        %v3214 = vunpack.c.h.b16 %v2633
        %v3215 = vunpack.c.l.b16 %v2634
        %v3216 = vunpack.c.h.b16 %v2634
        %v3217 = vunpack.c.l.b16 %v2635
        %v3218 = vunpack.c.h.b16 %v2635
        %v3219 = vunpack.c.l.b16 %v2636
        %v3220 = vunpack.c.h.b16 %v2636
        %v3221 = vunpack.c.l.b16 %v2637
        %v3222 = vunpack.c.l.b16 %v2638
        %v3223 = vunpack.c.h.b16 %v2638
        %v3224 = vunpack.c.l.b16 %v2639
        %v3225 = vunpack.c.h.b16 %v2639
        %v3226 = vunpack.c.l.b16 %v2640
        %v3227 = vunpack.c.h.b16 %v2640
        %v3228 = vunpack.c.l.b16 %v2641
        %v3229 = vunpack.c.h.b16 %v2641
        %v3230 = vunpack.c.l.b16 %v2642
        %v3231 = vunpack.c.l.b16 %v2643
        %v3232 = vunpack.c.h.b16 %v2643
        %v3233 = vunpack.c.l.b16 %v2644
        %v3234 = vunpack.c.h.b16 %v2644
        %v3235 = vunpack.c.l.b16 %v2645
        %v3236 = vunpack.c.h.b16 %v2645
        %v3237 = vunpack.c.l.b16 %v2646
        %v3238 = vunpack.c.h.b16 %v2646
        %v3239 = vunpack.c.l.b16 %v2647
        %v3240 = vunpack.c.l.b16 %v2648
        %v3241 = vunpack.c.h.b16 %v2648
        %v3242 = vunpack.c.l.b16 %v2649
        %v3243 = vunpack.c.h.b16 %v2649
        %v3244 = vunpack.c.l.b16 %v2650
        %v3245 = vunpack.c.h.b16 %v2650
        %v3246 = vunpack.c.l.b16 %v2651
        %v3247 = vunpack.c.h.b16 %v2651
        %v3248 = vunpack.c.l.b16 %v2652
        %v3249 = vpack.c.b16 %v2970, %v2961
        %v3250 = vpack.c.b16 %v2971, %v2962
        %v3251 = vpack.c.b16 %v2972, %v2963
        %v3252 = vpack.c.b16 %v2973, %v2964
        %v3253 = vpack.c.b16 %v2974, %v2965
        %v3254 = vpack.c.b16 %v2975, %v2966
        %v3255 = vpack.c.b16 %v2976, %v2967
        %v3256 = vpack.c.b16 %v2977, %v2968
        %v3257 = vpack.c.b16 %v2978, %v2969
        %v3258 = vpack.c.b16 %v2988, %v2979
        %v3259 = vpack.c.b16 %v2989, %v2980
        %v3260 = vpack.c.b16 %v2990, %v2981
        %v3261 = vpack.c.b16 %v2991, %v2982
        %v3262 = vpack.c.b16 %v2992, %v2983
        %v3263 = vpack.c.b16 %v2993, %v2984
        %v3264 = vpack.c.b16 %v2994, %v2985
        %v3265 = vpack.c.b16 %v2995, %v2986
        %v3266 = vpack.c.b16 %v2996, %v2987
        %v3267 = vpack.c.b16 %v3006, %v2997
        %v3268 = vpack.c.b16 %v3007, %v2998
        %v3269 = vpack.c.b16 %v3008, %v2999
        %v3270 = vpack.c.b16 %v3009, %v3000
        %v3271 = vpack.c.b16 %v3010, %v3001
        %v3272 = vpack.c.b16 %v3011, %v3002
        %v3273 = vpack.c.b16 %v3012, %v3003
        %v3274 = vpack.c.b16 %v3013, %v3004
        %v3275 = vpack.c.b16 %v3014, %v3005
        %v3276 = vpack.c.b16 %v3024, %v3015
        %v3277 = vpack.c.b16 %v3025, %v3016
        %v3278 = vpack.c.b16 %v3026, %v3017
        %v3279 = vpack.c.b16 %v3027, %v3018
        %v3280 = vpack.c.b16 %v3028, %v3019
        %v3281 = vpack.c.b16 %v3029, %v3020
        %v3282 = vpack.c.b16 %v3030, %v3021
        %v3283 = vpack.c.b16 %v3031, %v3022
        %v3284 = vpack.c.b16 %v3032, %v3023
        %v3285 = vpack.c.b16 %v3042, %v3033
        %v3286 = vpack.c.b16 %v3043, %v3034
        %v3287 = vpack.c.b16 %v3044, %v3035
        %v3288 = vpack.c.b16 %v3045, %v3036
        %v3289 = vpack.c.b16 %v3046, %v3037
        %v3290 = vpack.c.b16 %v3047, %v3038
        %v3291 = vpack.c.b16 %v3048, %v3039
        %v3292 = vpack.c.b16 %v3049, %v3040
        %v3293 = vpack.c.b16 %v3050, %v3041
        %v3294 = vpack.c.b16 %v3060, %v3051
        %v3295 = vpack.c.b16 %v3061, %v3052
        %v3296 = vpack.c.b16 %v3062, %v3053
        %v3297 = vpack.c.b16 %v3063, %v3054
        %v3298 = vpack.c.b16 %v3064, %v3055
        %v3299 = vpack.c.b16 %v3065, %v3056
        %v3300 = vpack.c.b16 %v3066, %v3057
        %v3301 = vpack.c.b16 %v3067, %v3058
        %v3302 = vpack.c.b16 %v3068, %v3059
        %v3303 = vpack.c.b16 %v3078, %v3069
        %v3304 = vpack.c.b16 %v3079, %v3070
        %v3305 = vpack.c.b16 %v3080, %v3071
        %v3306 = vpack.c.b16 %v3081, %v3072
        %v3307 = vpack.c.b16 %v3082, %v3073
        %v3308 = vpack.c.b16 %v3083, %v3074
        %v3309 = vpack.c.b16 %v3084, %v3075
        %v3310 = vpack.c.b16 %v3085, %v3076
        %v3311 = vpack.c.b16 %v3086, %v3077
        %v3312 = vpack.c.b16 %v3096, %v3087
        %v3313 = vpack.c.b16 %v3097, %v3088
        %v3314 = vpack.c.b16 %v3098, %v3089
        %v3315 = vpack.c.b16 %v3099, %v3090
        %v3316 = vpack.c.b16 %v3100, %v3091
        %v3317 = vpack.c.b16 %v3101, %v3092
        %v3318 = vpack.c.b16 %v3102, %v3093
        %v3319 = vpack.c.b16 %v3103, %v3094
        %v3320 = vpack.c.b16 %v3104, %v3095
        %v3321 = vpack.c.b16 %v3114, %v3105
        %v3322 = vpack.c.b16 %v3115, %v3106
        %v3323 = vpack.c.b16 %v3116, %v3107
        %v3324 = vpack.c.b16 %v3117, %v3108
        %v3325 = vpack.c.b16 %v3118, %v3109
        %v3326 = vpack.c.b16 %v3119, %v3110
        %v3327 = vpack.c.b16 %v3120, %v3111
        %v3328 = vpack.c.b16 %v3121, %v3112
        %v3329 = vpack.c.b16 %v3122, %v3113
        %v3330 = vpack.c.b16 %v3132, %v3123
        %v3331 = vpack.c.b16 %v3133, %v3124
        %v3332 = vpack.c.b16 %v3134, %v3125
        %v3333 = vpack.c.b16 %v3135, %v3126
        %v3334 = vpack.c.b16 %v3136, %v3127
        %v3335 = vpack.c.b16 %v3137, %v3128
        %v3336 = vpack.c.b16 %v3138, %v3129
        %v3337 = vpack.c.b16 %v3139, %v3130
        %v3338 = vpack.c.b16 %v3140, %v3131
        %v3339 = vpack.c.b16 %v3150, %v3141
        %v3340 = vpack.c.b16 %v3151, %v3142
        %v3341 = vpack.c.b16 %v3152, %v3143
        %v3342 = vpack.c.b16 %v3153, %v3144
        %v3343 = vpack.c.b16 %v3154, %v3145
        %v3344 = vpack.c.b16 %v3155, %v3146
        %v3345 = vpack.c.b16 %v3156, %v3147
        %v3346 = vpack.c.b16 %v3157, %v3148
        %v3347 = vpack.c.b16 %v3158, %v3149
        %v3348 = vpack.c.b16 %v3168, %v3159
        %v3349 = vpack.c.b16 %v3169, %v3160
        %v3350 = vpack.c.b16 %v3170, %v3161
        %v3351 = vpack.c.b16 %v3171, %v3162
        %v3352 = vpack.c.b16 %v3172, %v3163
        %v3353 = vpack.c.b16 %v3173, %v3164
        %v3354 = vpack.c.b16 %v3174, %v3165
        %v3355 = vpack.c.b16 %v3175, %v3166
        %v3356 = vpack.c.b16 %v3176, %v3167
        %v3357 = vpack.c.b16 %v3186, %v3177
        %v3358 = vpack.c.b16 %v3187, %v3178
        %v3359 = vpack.c.b16 %v3188, %v3179
        %v3360 = vpack.c.b16 %v3189, %v3180
        %v3361 = vpack.c.b16 %v3190, %v3181
        %v3362 = vpack.c.b16 %v3191, %v3182
        %v3363 = vpack.c.b16 %v3192, %v3183
        %v3364 = vpack.c.b16 %v3193, %v3184
        %v3365 = vpack.c.b16 %v3194, %v3185
        %v3366 = vpack.c.b16 %v3204, %v3195
        %v3367 = vpack.c.b16 %v3205, %v3196
        %v3368 = vpack.c.b16 %v3206, %v3197
        %v3369 = vpack.c.b16 %v3207, %v3198
        %v3370 = vpack.c.b16 %v3208, %v3199
        %v3371 = vpack.c.b16 %v3209, %v3200
        %v3372 = vpack.c.b16 %v3210, %v3201
        %v3373 = vpack.c.b16 %v3211, %v3202
        %v3374 = vpack.c.b16 %v3212, %v3203
        %v3375 = vpack.c.b16 %v3222, %v3213
        %v3376 = vpack.c.b16 %v3223, %v3214
        %v3377 = vpack.c.b16 %v3224, %v3215
        %v3378 = vpack.c.b16 %v3225, %v3216
        %v3379 = vpack.c.b16 %v3226, %v3217
        %v3380 = vpack.c.b16 %v3227, %v3218
        %v3381 = vpack.c.b16 %v3228, %v3219
        %v3382 = vpack.c.b16 %v3229, %v3220
        %v3383 = vpack.c.b16 %v3230, %v3221
        %v3384 = vpack.c.b16 %v3240, %v3231
        %v3385 = vpack.c.b16 %v3241, %v3232
        %v3386 = vpack.c.b16 %v3242, %v3233
        %v3387 = vpack.c.b16 %v3243, %v3234
        %v3388 = vpack.c.b16 %v3244, %v3235
        %v3389 = vpack.c.b16 %v3245, %v3236
        %v3390 = vpack.c.b16 %v3246, %v3237
        %v3391 = vpack.c.b16 %v3247, %v3238
        %v3392 = vpack.c.b16 %v3248, %v3239
        %v3681 = vunpack.c.l.b16 %v2653
        %v3682 = vunpack.c.l.b16 %v2654
        %v3683 = vunpack.c.l.b16 %v2655
        %v3684 = vunpack.c.l.b16 %v2656
        %v3685 = vunpack.c.l.b16 %v2657
        %v3686 = vunpack.c.l.b16 %v2658
        %v3687 = vunpack.c.l.b16 %v2659
        %v3688 = vunpack.c.l.b16 %v2660
        %v3689 = vunpack.c.l.b16 %v2661
        %v3690 = vunpack.c.l.b16 %v2662
        %v3691 = vunpack.c.l.b16 %v2663
        %v3692 = vunpack.c.l.b16 %v2664
        %v3693 = vunpack.c.l.b16 %v2665
        %v3694 = vunpack.c.l.b16 %v2666
        %v3695 = vunpack.c.l.b16 %v2667
        %v3696 = vunpack.c.l.b16 %v2668
        %v3697 = vunpack.c.l.b16 %v2669
        %v3698 = vunpack.c.l.b16 %v2670
        %v3699 = vunpack.c.l.b16 %v2671
        %v3700 = vunpack.c.l.b16 %v2672
        %v3701 = vunpack.c.l.b16 %v2673
        %v3702 = vunpack.c.l.b16 %v2674
        %v3703 = vunpack.c.l.b16 %v2675
        %v3704 = vunpack.c.l.b16 %v2676
        %v3705 = vunpack.c.l.b16 %v2677
        %v3706 = vunpack.c.l.b16 %v2678
        %v3707 = vunpack.c.l.b16 %v2679
        %v3708 = vunpack.c.l.b16 %v2680
        %v3709 = vunpack.c.l.b16 %v2681
        %v3710 = vunpack.c.l.b16 %v2682
        %v3711 = vunpack.c.l.b16 %v2683
        %v3712 = vunpack.c.l.b16 %v2684
        %v3713 = vunpack.c.l.b16 %v2685
        %v3714 = vunpack.c.l.b16 %v2686
        %v3715 = vunpack.c.l.b16 %v2687
        %v3716 = vunpack.c.l.b16 %v2688
        %v3717 = vunpack.c.l.b16 %v2689
        %v3718 = vunpack.c.l.b16 %v2690
        %v3719 = vunpack.c.l.b16 %v2691
        %v3720 = vunpack.c.l.b16 %v2692
        %v3721 = vunpack.c.l.b16 %v2693
        %v3722 = vunpack.c.l.b16 %v2694
        %v3723 = vunpack.c.l.b16 %v2695
        %v3724 = vunpack.c.l.b16 %v2696
        %v3725 = vunpack.c.l.b16 %v2697
        %v3726 = vunpack.c.l.b16 %v2698
        %v3727 = vunpack.c.l.b16 %v2699
        %v3728 = vunpack.c.l.b16 %v2700
        %v3729 = vunpack.c.l.b16 %v2701
        %v3730 = vunpack.c.l.b16 %v2702
        %v3731 = vunpack.c.l.b16 %v2703
        %v3732 = vunpack.c.l.b16 %v2704
        %v3733 = vunpack.c.l.b16 %v2705
        %v3734 = vunpack.c.l.b16 %v2706
        %v3735 = vunpack.c.l.b16 %v2707
        %v3736 = vunpack.c.l.b16 %v2708
        %v3737 = vunpack.c.l.b16 %v2709
        %v3738 = vunpack.c.l.b16 %v2710
        %v3739 = vunpack.c.l.b16 %v2711
        %v3740 = vunpack.c.l.b16 %v2712
        %v3741 = vunpack.c.l.b16 %v2713
        %v3742 = vunpack.c.l.b16 %v2714
        %v3743 = vunpack.c.l.b16 %v2715
        %v3744 = vunpack.c.l.b16 %v2716
        %v3745 = vunpack.c.l.b16 %v2717
        %v3746 = vunpack.c.l.b16 %v2718
        %v3747 = vunpack.c.l.b16 %v2719
        %v3748 = vunpack.c.l.b16 %v2720
        %v3749 = vunpack.c.l.b16 %v2721
        %v3750 = vunpack.c.l.b16 %v2722
        %v3751 = vunpack.c.l.b16 %v2723
        %v3752 = vunpack.c.l.b16 %v2724
        %v3753 = vunpack.c.l.b16 %v2725
        %v3754 = vunpack.c.l.b16 %v2726
        %v3755 = vunpack.c.l.b16 %v2727
        %v3756 = vunpack.c.l.b16 %v2728
        %v3757 = vunpack.c.l.b16 %v2729
        %v3758 = vunpack.c.l.b16 %v2730
        %v3759 = vunpack.c.l.b16 %v2731
        %v3760 = vunpack.c.l.b16 %v2732
        %v3761 = vunpack.c.l.b16 %v2733
        %v3762 = vunpack.c.l.b16 %v2734
        %v3763 = vunpack.c.l.b16 %v2735
        %v3764 = vunpack.c.l.b16 %v2736
        %v3765 = vunpack.c.l.b16 %v2737
        %v3766 = vunpack.c.l.b16 %v2738
        %v3767 = vunpack.c.l.b16 %v2739
        %v3768 = vunpack.c.l.b16 %v2740
        %v3769 = vunpack.c.l.b16 %v2741
        %v3770 = vunpack.c.l.b16 %v2742
        %v3771 = vunpack.c.l.b16 %v2743
        %v3772 = vunpack.c.l.b16 %v2744
        %v3773 = vunpack.c.l.b16 %v2745
        %v3774 = vunpack.c.l.b16 %v2746
        %v3775 = vunpack.c.l.b16 %v2747
        %v3776 = vunpack.c.l.b16 %v2748
        %v3777 = vunpack.c.l.b16 %v2749
        %v3778 = vunpack.c.l.b16 %v2750
        %v3779 = vunpack.c.l.b16 %v2751
        %v3780 = vunpack.c.l.b16 %v2752
        %v3781 = vunpack.c.l.b16 %v2753
        %v3782 = vunpack.c.l.b16 %v2754
        %v3783 = vunpack.c.l.b16 %v2755
        %v3784 = vunpack.c.l.b16 %v2756
        %v3785 = vunpack.c.l.b16 %v2757
        %v3786 = vunpack.c.l.b16 %v2758
        %v3787 = vunpack.c.l.b16 %v2759
        %v3788 = vunpack.c.l.b16 %v2760
        %v3789 = vunpack.c.l.b16 %v2761
        %v3790 = vunpack.c.l.b16 %v2762
        %v3791 = vunpack.c.l.b16 %v2763
        %v3792 = vunpack.c.l.b16 %v2764
        %v3793 = vunpack.c.l.b16 %v2765
        %v3794 = vunpack.c.l.b16 %v2766
        %v3795 = vunpack.c.l.b16 %v2767
        %v3796 = vunpack.c.l.b16 %v2768
        %v3797 = vunpack.c.l.b16 %v2769
        %v3798 = vunpack.c.l.b16 %v2770
        %v3799 = vunpack.c.l.b16 %v2771
        %v3800 = vunpack.c.l.b16 %v2772
        %v3801 = vunpack.c.l.b16 %v2773
        %v3802 = vunpack.c.l.b16 %v2774
        %v3803 = vunpack.c.l.b16 %v2775
        %v3804 = vunpack.c.l.b16 %v2776
        %v3805 = vunpack.c.l.b16 %v2777
        %v3806 = vunpack.c.l.b16 %v2778
        %v3807 = vunpack.c.l.b16 %v2779
        %v3808 = vunpack.c.l.b16 %v2780
        %v3809 = vunpack.c.l.b16 %v2781
        %v3810 = vunpack.c.l.b16 %v2782
        %v3811 = vunpack.c.l.b16 %v2783
        %v3812 = vunpack.c.l.b16 %v2784
        %v3813 = vunpack.c.l.b16 %v2785
        %v3814 = vunpack.c.l.b16 %v2786
        %v3815 = vunpack.c.l.b16 %v2787
        %v3816 = vunpack.c.l.b16 %v2788
        %v3817 = vunpack.c.l.b16 %v2789
        %v3818 = vunpack.c.l.b16 %v2790
        %v3819 = vunpack.c.l.b16 %v2791
        %v3820 = vunpack.c.l.b16 %v2792
        %v3821 = vunpack.c.l.b16 %v2793
        %v3822 = vunpack.c.l.b16 %v2794
        %v3823 = vunpack.c.l.b16 %v2795
        %v3824 = vunpack.c.l.b16 %v2796
        %v3825 = vpack.c.b16 %v3682, %v3681
        %v3826 = vpack.c.b16 %v3684, %v3683
        %v3827 = vpack.c.b16 %v3686, %v3685
        %v3828 = vpack.c.b16 %v3688, %v3687
        %v3829 = vpack.c.b16 %v3690, %v3689
        %v3830 = vpack.c.b16 %v3692, %v3691
        %v3831 = vpack.c.b16 %v3694, %v3693
        %v3832 = vpack.c.b16 %v3696, %v3695
        %v3833 = vpack.c.b16 %v3698, %v3697
        %v3834 = vpack.c.b16 %v3700, %v3699
        %v3835 = vpack.c.b16 %v3702, %v3701
        %v3836 = vpack.c.b16 %v3704, %v3703
        %v3837 = vpack.c.b16 %v3706, %v3705
        %v3838 = vpack.c.b16 %v3708, %v3707
        %v3839 = vpack.c.b16 %v3710, %v3709
        %v3840 = vpack.c.b16 %v3712, %v3711
        %v3841 = vpack.c.b16 %v3714, %v3713
        %v3842 = vpack.c.b16 %v3716, %v3715
        %v3843 = vpack.c.b16 %v3718, %v3717
        %v3844 = vpack.c.b16 %v3720, %v3719
        %v3845 = vpack.c.b16 %v3722, %v3721
        %v3846 = vpack.c.b16 %v3724, %v3723
        %v3847 = vpack.c.b16 %v3726, %v3725
        %v3848 = vpack.c.b16 %v3728, %v3727
        %v3849 = vpack.c.b16 %v3730, %v3729
        %v3850 = vpack.c.b16 %v3732, %v3731
        %v3851 = vpack.c.b16 %v3734, %v3733
        %v3852 = vpack.c.b16 %v3736, %v3735
        %v3853 = vpack.c.b16 %v3738, %v3737
        %v3854 = vpack.c.b16 %v3740, %v3739
        %v3855 = vpack.c.b16 %v3742, %v3741
        %v3856 = vpack.c.b16 %v3744, %v3743
        %v3857 = vpack.c.b16 %v3746, %v3745
        %v3858 = vpack.c.b16 %v3748, %v3747
        %v3859 = vpack.c.b16 %v3750, %v3749
        %v3860 = vpack.c.b16 %v3752, %v3751
        %v3861 = vpack.c.b16 %v3754, %v3753
        %v3862 = vpack.c.b16 %v3756, %v3755
        %v3863 = vpack.c.b16 %v3758, %v3757
        %v3864 = vpack.c.b16 %v3760, %v3759
        %v3865 = vpack.c.b16 %v3762, %v3761
        %v3866 = vpack.c.b16 %v3764, %v3763
        %v3867 = vpack.c.b16 %v3766, %v3765
        %v3868 = vpack.c.b16 %v3768, %v3767
        %v3869 = vpack.c.b16 %v3770, %v3769
        %v3870 = vpack.c.b16 %v3772, %v3771
        %v3871 = vpack.c.b16 %v3774, %v3773
        %v3872 = vpack.c.b16 %v3776, %v3775
        %v3873 = vpack.c.b16 %v3778, %v3777
        %v3874 = vpack.c.b16 %v3780, %v3779
        %v3875 = vpack.c.b16 %v3782, %v3781
        %v3876 = vpack.c.b16 %v3784, %v3783
        %v3877 = vpack.c.b16 %v3786, %v3785
        %v3878 = vpack.c.b16 %v3788, %v3787
        %v3879 = vpack.c.b16 %v3790, %v3789
        %v3880 = vpack.c.b16 %v3792, %v3791
        %v3881 = vpack.c.b16 %v3794, %v3793
        %v3882 = vpack.c.b16 %v3796, %v3795
        %v3883 = vpack.c.b16 %v3798, %v3797
        %v3884 = vpack.c.b16 %v3800, %v3799
        %v3885 = vpack.c.b16 %v3802, %v3801
        %v3886 = vpack.c.b16 %v3804, %v3803
        %v3887 = vpack.c.b16 %v3806, %v3805
        %v3888 = vpack.c.b16 %v3808, %v3807
        %v3889 = vpack.c.b16 %v3810, %v3809
        %v3890 = vpack.c.b16 %v3812, %v3811
        %v3891 = vpack.c.b16 %v3814, %v3813
        %v3892 = vpack.c.b16 %v3816, %v3815
        %v3893 = vpack.c.b16 %v3818, %v3817
        %v3894 = vpack.c.b16 %v3820, %v3819
        %v3895 = vpack.c.b16 %v3822, %v3821
        %v3896 = vpack.c.b16 %v3824, %v3823
        %3969 = vmatpush.bf16.msra.mxu0 %v3832
        %3970 = vmatpush.bf16.msra.mxu0 %v3831
        %3971 = vmatpush.bf16.msra.mxu0 %v3830
        %3972 = vmatpush.bf16.msra.mxu0 %v3829
        %3973 = vmatpush.bf16.msra.mxu0 %v3828
        %3974 = vmatpush.bf16.msra.mxu0 %v3827
        %3975 = vmatpush.bf16.msra.mxu0 %v3826
        %3976 = vmatpush.bf16.msra.mxu0 %v3825
        %3977 = vmatmul.bf16.gmra.mxu0 %v3249
        %v3978 = vpop.f32.mrf.mxu0
        %v3979 = vadd.f32 %v2799, %v3978
        %v3980 = vpop.f32.mrf.mxu0
        %v3981 = vadd.f32 %v2799, %v3980
        %3982 = vmatmul.bf16.gmra.mxu0 %v3258
        %v3983 = vpop.f32.mrf.mxu0
        %v3984 = vadd.f32 %v2799, %v3983
        %v3985 = vpop.f32.mrf.mxu0
        %v3986 = vadd.f32 %v2799, %v3985
        %3987 = vmatmul.bf16.gmra.mxu0 %v3267
        %v3988 = vpop.f32.mrf.mxu0
        %v3989 = vadd.f32 %v2799, %v3988
        %v3990 = vpop.f32.mrf.mxu0
        %v3991 = vadd.f32 %v2799, %v3990
        %3992 = vmatmul.bf16.gmra.mxu0 %v3276
        %v3993 = vpop.f32.mrf.mxu0
        %v3994 = vadd.f32 %v2799, %v3993
        %v3995 = vpop.f32.mrf.mxu0
        %v3996 = vadd.f32 %v2799, %v3995
        %3997 = vmatmul.bf16.gmra.mxu0 %v3285
        %v3998 = vpop.f32.mrf.mxu0
        %v3999 = vadd.f32 %v2799, %v3998
        %v4000 = vpop.f32.mrf.mxu0
        %v4001 = vadd.f32 %v2799, %v4000
        %4002 = vmatmul.bf16.gmra.mxu0 %v3294
        %v4003 = vpop.f32.mrf.mxu0
        %v4004 = vadd.f32 %v2799, %v4003
        %v4005 = vpop.f32.mrf.mxu0
        %v4006 = vadd.f32 %v2799, %v4005
        %4007 = vmatmul.bf16.gmra.mxu0 %v3303
        %v4008 = vpop.f32.mrf.mxu0
        %v4009 = vadd.f32 %v2799, %v4008
        %v4010 = vpop.f32.mrf.mxu0
        %v4011 = vadd.f32 %v2799, %v4010
        %4012 = vmatmul.bf16.gmra.mxu0 %v3312
        %v4013 = vpop.f32.mrf.mxu0
        %v4014 = vadd.f32 %v2799, %v4013
        %v4015 = vpop.f32.mrf.mxu0
        %v4016 = vadd.f32 %v2799, %v4015
        %4017 = vmatmul.bf16.gmra.mxu0 %v3321
        %v4018 = vpop.f32.mrf.mxu0
        %v4019 = vadd.f32 %v2799, %v4018
        %v4020 = vpop.f32.mrf.mxu0
        %v4021 = vadd.f32 %v2799, %v4020
        %4022 = vmatmul.bf16.gmra.mxu0 %v3330
        %v4023 = vpop.f32.mrf.mxu0
        %v4024 = vadd.f32 %v2799, %v4023
        %v4025 = vpop.f32.mrf.mxu0
        %v4026 = vadd.f32 %v2799, %v4025
        %4027 = vmatmul.bf16.gmra.mxu0 %v3339
        %v4028 = vpop.f32.mrf.mxu0
        %v4029 = vadd.f32 %v2799, %v4028
        %v4030 = vpop.f32.mrf.mxu0
        %v4031 = vadd.f32 %v2799, %v4030
        %4032 = vmatmul.bf16.gmra.mxu0 %v3348
        %v4033 = vpop.f32.mrf.mxu0
        %v4034 = vadd.f32 %v2799, %v4033
        %v4035 = vpop.f32.mrf.mxu0
        %v4036 = vadd.f32 %v2799, %v4035
        %4037 = vmatmul.bf16.gmra.mxu0 %v3357
        %v4038 = vpop.f32.mrf.mxu0
        %v4039 = vadd.f32 %v2799, %v4038
        %v4040 = vpop.f32.mrf.mxu0
        %v4041 = vadd.f32 %v2799, %v4040
        %4042 = vmatmul.bf16.gmra.mxu0 %v3366
        %v4043 = vpop.f32.mrf.mxu0
        %v4044 = vadd.f32 %v2799, %v4043
        %v4045 = vpop.f32.mrf.mxu0
        %v4046 = vadd.f32 %v2799, %v4045
        %4047 = vmatmul.bf16.gmra.mxu0 %v3375
        %v4048 = vpop.f32.mrf.mxu0
        %v4049 = vadd.f32 %v2799, %v4048
        %v4050 = vpop.f32.mrf.mxu0
        %v4051 = vadd.f32 %v2799, %v4050
        %4052 = vmatmul.bf16.gmra.mxu0 %v3384
        %v4053 = vpop.f32.mrf.mxu0
        %v4054 = vadd.f32 %v2799, %v4053
        %v4055 = vpop.f32.mrf.mxu0
        %v4056 = vadd.f32 %v2799, %v4055
        %4057 = vdwg.mxu0
        %4058 = vmatpush.bf16.msra.mxu0 %v3840
        %4059 = vmatpush.bf16.msra.mxu0 %v3839
        %4060 = vmatpush.bf16.msra.mxu0 %v3838
        %4061 = vmatpush.bf16.msra.mxu0 %v3837
        %4062 = vmatpush.bf16.msra.mxu0 %v3836
        %4063 = vmatpush.bf16.msra.mxu0 %v3835
        %4064 = vmatpush.bf16.msra.mxu0 %v3834
        %4065 = vmatpush.bf16.msra.mxu0 %v3833
        %4066 = vmatmul.bf16.gmra.mxu0 %v3250
        %v4067 = vpop.f32.mrf.mxu0
        %v4068 = vadd.f32 %v3979, %v4067
        %v4069 = vpop.f32.mrf.mxu0
        %v4070 = vadd.f32 %v3981, %v4069
        %4071 = vmatmul.bf16.gmra.mxu0 %v3259
        %v4072 = vpop.f32.mrf.mxu0
        %v4073 = vadd.f32 %v3984, %v4072
        %v4074 = vpop.f32.mrf.mxu0
        %v4075 = vadd.f32 %v3986, %v4074
        %4076 = vmatmul.bf16.gmra.mxu0 %v3268
        %v4077 = vpop.f32.mrf.mxu0
        %v4078 = vadd.f32 %v3989, %v4077
        %v4079 = vpop.f32.mrf.mxu0
        %v4080 = vadd.f32 %v3991, %v4079
        %4081 = vmatmul.bf16.gmra.mxu0 %v3277
        %v4082 = vpop.f32.mrf.mxu0
        %v4083 = vadd.f32 %v3994, %v4082
        %v4084 = vpop.f32.mrf.mxu0
        %v4085 = vadd.f32 %v3996, %v4084
        %4086 = vmatmul.bf16.gmra.mxu0 %v3286
        %v4087 = vpop.f32.mrf.mxu0
        %v4088 = vadd.f32 %v3999, %v4087
        %v4089 = vpop.f32.mrf.mxu0
        %v4090 = vadd.f32 %v4001, %v4089
        %4091 = vmatmul.bf16.gmra.mxu0 %v3295
        %v4092 = vpop.f32.mrf.mxu0
        %v4093 = vadd.f32 %v4004, %v4092
        %v4094 = vpop.f32.mrf.mxu0
        %v4095 = vadd.f32 %v4006, %v4094
        %4096 = vmatmul.bf16.gmra.mxu0 %v3304
        %v4097 = vpop.f32.mrf.mxu0
        %v4098 = vadd.f32 %v4009, %v4097
        %v4099 = vpop.f32.mrf.mxu0
        %v4100 = vadd.f32 %v4011, %v4099
        %4101 = vmatmul.bf16.gmra.mxu0 %v3313
        %v4102 = vpop.f32.mrf.mxu0
        %v4103 = vadd.f32 %v4014, %v4102
        %v4104 = vpop.f32.mrf.mxu0
        %v4105 = vadd.f32 %v4016, %v4104
        %4106 = vmatmul.bf16.gmra.mxu0 %v3322
        %v4107 = vpop.f32.mrf.mxu0
        %v4108 = vadd.f32 %v4019, %v4107
        %v4109 = vpop.f32.mrf.mxu0
        %v4110 = vadd.f32 %v4021, %v4109
        %4111 = vmatmul.bf16.gmra.mxu0 %v3331
        %v4112 = vpop.f32.mrf.mxu0
        %v4113 = vadd.f32 %v4024, %v4112
        %v4114 = vpop.f32.mrf.mxu0
        %v4115 = vadd.f32 %v4026, %v4114
        %4116 = vmatmul.bf16.gmra.mxu0 %v3340
        %v4117 = vpop.f32.mrf.mxu0
        %v4118 = vadd.f32 %v4029, %v4117
        %v4119 = vpop.f32.mrf.mxu0
        %v4120 = vadd.f32 %v4031, %v4119
        %4121 = vmatmul.bf16.gmra.mxu0 %v3349
        %v4122 = vpop.f32.mrf.mxu0
        %v4123 = vadd.f32 %v4034, %v4122
        %v4124 = vpop.f32.mrf.mxu0
        %v4125 = vadd.f32 %v4036, %v4124
        %4126 = vmatmul.bf16.gmra.mxu0 %v3358
        %v4127 = vpop.f32.mrf.mxu0
        %v4128 = vadd.f32 %v4039, %v4127
        %v4129 = vpop.f32.mrf.mxu0
        %v4130 = vadd.f32 %v4041, %v4129
        %4131 = vmatmul.bf16.gmra.mxu0 %v3367
        %v4132 = vpop.f32.mrf.mxu0
        %v4133 = vadd.f32 %v4044, %v4132
        %v4134 = vpop.f32.mrf.mxu0
        %v4135 = vadd.f32 %v4046, %v4134
        %4136 = vmatmul.bf16.gmra.mxu0 %v3376
        %v4137 = vpop.f32.mrf.mxu0
        %v4138 = vadd.f32 %v4049, %v4137
        %v4139 = vpop.f32.mrf.mxu0
        %v4140 = vadd.f32 %v4051, %v4139
        %4141 = vmatmul.bf16.gmra.mxu0 %v3385
        %v4142 = vpop.f32.mrf.mxu0
        %v4143 = vadd.f32 %v4054, %v4142
        %v4144 = vpop.f32.mrf.mxu0
        %v4145 = vadd.f32 %v4056, %v4144
        %4146 = vdwg.mxu0
        %4147 = vmatpush.bf16.msra.mxu0 %v3848
        %4148 = vmatpush.bf16.msra.mxu0 %v3847
        %4149 = vmatpush.bf16.msra.mxu0 %v3846
        %4150 = vmatpush.bf16.msra.mxu0 %v3845
        %4151 = vmatpush.bf16.msra.mxu0 %v3844
        %4152 = vmatpush.bf16.msra.mxu0 %v3843
        %4153 = vmatpush.bf16.msra.mxu0 %v3842
        %4154 = vmatpush.bf16.msra.mxu0 %v3841
        %4155 = vmatmul.bf16.gmra.mxu0 %v3251
        %v4156 = vpop.f32.mrf.mxu0
        %v4157 = vadd.f32 %v4068, %v4156
        %v4158 = vpop.f32.mrf.mxu0
        %v4159 = vadd.f32 %v4070, %v4158
        %4160 = vmatmul.bf16.gmra.mxu0 %v3260
        %v4161 = vpop.f32.mrf.mxu0
        %v4162 = vadd.f32 %v4073, %v4161
        %v4163 = vpop.f32.mrf.mxu0
        %v4164 = vadd.f32 %v4075, %v4163
        %4165 = vmatmul.bf16.gmra.mxu0 %v3269
        %v4166 = vpop.f32.mrf.mxu0
        %v4167 = vadd.f32 %v4078, %v4166
        %v4168 = vpop.f32.mrf.mxu0
        %v4169 = vadd.f32 %v4080, %v4168
        %4170 = vmatmul.bf16.gmra.mxu0 %v3278
        %v4171 = vpop.f32.mrf.mxu0
        %v4172 = vadd.f32 %v4083, %v4171
        %v4173 = vpop.f32.mrf.mxu0
        %v4174 = vadd.f32 %v4085, %v4173
        %4175 = vmatmul.bf16.gmra.mxu0 %v3287
        %v4176 = vpop.f32.mrf.mxu0
        %v4177 = vadd.f32 %v4088, %v4176
        %v4178 = vpop.f32.mrf.mxu0
        %v4179 = vadd.f32 %v4090, %v4178
        %4180 = vmatmul.bf16.gmra.mxu0 %v3296
        %v4181 = vpop.f32.mrf.mxu0
        %v4182 = vadd.f32 %v4093, %v4181
        %v4183 = vpop.f32.mrf.mxu0
        %v4184 = vadd.f32 %v4095, %v4183
        %4185 = vmatmul.bf16.gmra.mxu0 %v3305
        %v4186 = vpop.f32.mrf.mxu0
        %v4187 = vadd.f32 %v4098, %v4186
        %v4188 = vpop.f32.mrf.mxu0
        %v4189 = vadd.f32 %v4100, %v4188
        %4190 = vmatmul.bf16.gmra.mxu0 %v3314
        %v4191 = vpop.f32.mrf.mxu0
        %v4192 = vadd.f32 %v4103, %v4191
        %v4193 = vpop.f32.mrf.mxu0
        %v4194 = vadd.f32 %v4105, %v4193
        %4195 = vmatmul.bf16.gmra.mxu0 %v3323
        %v4196 = vpop.f32.mrf.mxu0
        %v4197 = vadd.f32 %v4108, %v4196
        %v4198 = vpop.f32.mrf.mxu0
        %v4199 = vadd.f32 %v4110, %v4198
        %4200 = vmatmul.bf16.gmra.mxu0 %v3332
        %v4201 = vpop.f32.mrf.mxu0
        %v4202 = vadd.f32 %v4113, %v4201
        %v4203 = vpop.f32.mrf.mxu0
        %v4204 = vadd.f32 %v4115, %v4203
        %4205 = vmatmul.bf16.gmra.mxu0 %v3341
        %v4206 = vpop.f32.mrf.mxu0
        %v4207 = vadd.f32 %v4118, %v4206
        %v4208 = vpop.f32.mrf.mxu0
        %v4209 = vadd.f32 %v4120, %v4208
        %4210 = vmatmul.bf16.gmra.mxu0 %v3350
        %v4211 = vpop.f32.mrf.mxu0
        %v4212 = vadd.f32 %v4123, %v4211
        %v4213 = vpop.f32.mrf.mxu0
        %v4214 = vadd.f32 %v4125, %v4213
        %4215 = vmatmul.bf16.gmra.mxu0 %v3359
        %v4216 = vpop.f32.mrf.mxu0
        %v4217 = vadd.f32 %v4128, %v4216
        %v4218 = vpop.f32.mrf.mxu0
        %v4219 = vadd.f32 %v4130, %v4218
        %4220 = vmatmul.bf16.gmra.mxu0 %v3368
        %v4221 = vpop.f32.mrf.mxu0
        %v4222 = vadd.f32 %v4133, %v4221
        %v4223 = vpop.f32.mrf.mxu0
        %v4224 = vadd.f32 %v4135, %v4223
        %4225 = vmatmul.bf16.gmra.mxu0 %v3377
        %v4226 = vpop.f32.mrf.mxu0
        %v4227 = vadd.f32 %v4138, %v4226
        %v4228 = vpop.f32.mrf.mxu0
        %v4229 = vadd.f32 %v4140, %v4228
        %4230 = vmatmul.bf16.gmra.mxu0 %v3386
        %v4231 = vpop.f32.mrf.mxu0
        %v4232 = vadd.f32 %v4143, %v4231
        %v4233 = vpop.f32.mrf.mxu0
        %v4234 = vadd.f32 %v4145, %v4233
        %4235 = vdwg.mxu0
        %4236 = vmatpush.bf16.msra.mxu0 %v3856
        %4237 = vmatpush.bf16.msra.mxu0 %v3855
        %4238 = vmatpush.bf16.msra.mxu0 %v3854
        %4239 = vmatpush.bf16.msra.mxu0 %v3853
        %4240 = vmatpush.bf16.msra.mxu0 %v3852
        %4241 = vmatpush.bf16.msra.mxu0 %v3851
        %4242 = vmatpush.bf16.msra.mxu0 %v3850
        %4243 = vmatpush.bf16.msra.mxu0 %v3849
        %4244 = vmatmul.bf16.gmra.mxu0 %v3252
        %v4245 = vpop.f32.mrf.mxu0
        %v4246 = vadd.f32 %v4157, %v4245
        %v4247 = vpop.f32.mrf.mxu0
        %v4248 = vadd.f32 %v4159, %v4247
        %4249 = vmatmul.bf16.gmra.mxu0 %v3261
        %v4250 = vpop.f32.mrf.mxu0
        %v4251 = vadd.f32 %v4162, %v4250
        %v4252 = vpop.f32.mrf.mxu0
        %v4253 = vadd.f32 %v4164, %v4252
        %4254 = vmatmul.bf16.gmra.mxu0 %v3270
        %v4255 = vpop.f32.mrf.mxu0
        %v4256 = vadd.f32 %v4167, %v4255
        %v4257 = vpop.f32.mrf.mxu0
        %v4258 = vadd.f32 %v4169, %v4257
        %4259 = vmatmul.bf16.gmra.mxu0 %v3279
        %v4260 = vpop.f32.mrf.mxu0
        %v4261 = vadd.f32 %v4172, %v4260
        %v4262 = vpop.f32.mrf.mxu0
        %v4263 = vadd.f32 %v4174, %v4262
        %4264 = vmatmul.bf16.gmra.mxu0 %v3288
        %v4265 = vpop.f32.mrf.mxu0
        %v4266 = vadd.f32 %v4177, %v4265
        %v4267 = vpop.f32.mrf.mxu0
        %v4268 = vadd.f32 %v4179, %v4267
        %4269 = vmatmul.bf16.gmra.mxu0 %v3297
        %v4270 = vpop.f32.mrf.mxu0
        %v4271 = vadd.f32 %v4182, %v4270
        %v4272 = vpop.f32.mrf.mxu0
        %v4273 = vadd.f32 %v4184, %v4272
        %4274 = vmatmul.bf16.gmra.mxu0 %v3306
        %v4275 = vpop.f32.mrf.mxu0
        %v4276 = vadd.f32 %v4187, %v4275
        %v4277 = vpop.f32.mrf.mxu0
        %v4278 = vadd.f32 %v4189, %v4277
        %4279 = vmatmul.bf16.gmra.mxu0 %v3315
        %v4280 = vpop.f32.mrf.mxu0
        %v4281 = vadd.f32 %v4192, %v4280
        %v4282 = vpop.f32.mrf.mxu0
        %v4283 = vadd.f32 %v4194, %v4282
        %4284 = vmatmul.bf16.gmra.mxu0 %v3324
        %v4285 = vpop.f32.mrf.mxu0
        %v4286 = vadd.f32 %v4197, %v4285
        %v4287 = vpop.f32.mrf.mxu0
        %v4288 = vadd.f32 %v4199, %v4287
        %4289 = vmatmul.bf16.gmra.mxu0 %v3333
        %v4290 = vpop.f32.mrf.mxu0
        %v4291 = vadd.f32 %v4202, %v4290
        %v4292 = vpop.f32.mrf.mxu0
        %v4293 = vadd.f32 %v4204, %v4292
        %4294 = vmatmul.bf16.gmra.mxu0 %v3342
        %v4295 = vpop.f32.mrf.mxu0
        %v4296 = vadd.f32 %v4207, %v4295
        %v4297 = vpop.f32.mrf.mxu0
        %v4298 = vadd.f32 %v4209, %v4297
        %4299 = vmatmul.bf16.gmra.mxu0 %v3351
        %v4300 = vpop.f32.mrf.mxu0
        %v4301 = vadd.f32 %v4212, %v4300
        %v4302 = vpop.f32.mrf.mxu0
        %v4303 = vadd.f32 %v4214, %v4302
        %4304 = vmatmul.bf16.gmra.mxu0 %v3360
        %v4305 = vpop.f32.mrf.mxu0
        %v4306 = vadd.f32 %v4217, %v4305
        %v4307 = vpop.f32.mrf.mxu0
        %v4308 = vadd.f32 %v4219, %v4307
        %4309 = vmatmul.bf16.gmra.mxu0 %v3369
        %v4310 = vpop.f32.mrf.mxu0
        %v4311 = vadd.f32 %v4222, %v4310
        %v4312 = vpop.f32.mrf.mxu0
        %v4313 = vadd.f32 %v4224, %v4312
        %4314 = vmatmul.bf16.gmra.mxu0 %v3378
        %v4315 = vpop.f32.mrf.mxu0
        %v4316 = vadd.f32 %v4227, %v4315
        %v4317 = vpop.f32.mrf.mxu0
        %v4318 = vadd.f32 %v4229, %v4317
        %4319 = vmatmul.bf16.gmra.mxu0 %v3387
        %v4320 = vpop.f32.mrf.mxu0
        %v4321 = vadd.f32 %v4232, %v4320
        %v4322 = vpop.f32.mrf.mxu0
        %v4323 = vadd.f32 %v4234, %v4322
        %4324 = vdwg.mxu0
        %4325 = vmatpush.bf16.msra.mxu0 %v3864
        %4326 = vmatpush.bf16.msra.mxu0 %v3863
        %4327 = vmatpush.bf16.msra.mxu0 %v3862
        %4328 = vmatpush.bf16.msra.mxu0 %v3861
        %4329 = vmatpush.bf16.msra.mxu0 %v3860
        %4330 = vmatpush.bf16.msra.mxu0 %v3859
        %4331 = vmatpush.bf16.msra.mxu0 %v3858
        %4332 = vmatpush.bf16.msra.mxu0 %v3857
        %4333 = vmatmul.bf16.gmra.mxu0 %v3253
        %v4334 = vpop.f32.mrf.mxu0
        %v4335 = vadd.f32 %v4246, %v4334
        %v4336 = vpop.f32.mrf.mxu0
        %v4337 = vadd.f32 %v4248, %v4336
        %4338 = vmatmul.bf16.gmra.mxu0 %v3262
        %v4339 = vpop.f32.mrf.mxu0
        %v4340 = vadd.f32 %v4251, %v4339
        %v4341 = vpop.f32.mrf.mxu0
        %v4342 = vadd.f32 %v4253, %v4341
        %4343 = vmatmul.bf16.gmra.mxu0 %v3271
        %v4344 = vpop.f32.mrf.mxu0
        %v4345 = vadd.f32 %v4256, %v4344
        %v4346 = vpop.f32.mrf.mxu0
        %v4347 = vadd.f32 %v4258, %v4346
        %4348 = vmatmul.bf16.gmra.mxu0 %v3280
        %v4349 = vpop.f32.mrf.mxu0
        %v4350 = vadd.f32 %v4261, %v4349
        %v4351 = vpop.f32.mrf.mxu0
        %v4352 = vadd.f32 %v4263, %v4351
        %4353 = vmatmul.bf16.gmra.mxu0 %v3289
        %v4354 = vpop.f32.mrf.mxu0
        %v4355 = vadd.f32 %v4266, %v4354
        %v4356 = vpop.f32.mrf.mxu0
        %v4357 = vadd.f32 %v4268, %v4356
        %4358 = vmatmul.bf16.gmra.mxu0 %v3298
        %v4359 = vpop.f32.mrf.mxu0
        %v4360 = vadd.f32 %v4271, %v4359
        %v4361 = vpop.f32.mrf.mxu0
        %v4362 = vadd.f32 %v4273, %v4361
        %4363 = vmatmul.bf16.gmra.mxu0 %v3307
        %v4364 = vpop.f32.mrf.mxu0
        %v4365 = vadd.f32 %v4276, %v4364
        %v4366 = vpop.f32.mrf.mxu0
        %v4367 = vadd.f32 %v4278, %v4366
        %4368 = vmatmul.bf16.gmra.mxu0 %v3316
        %v4369 = vpop.f32.mrf.mxu0
        %v4370 = vadd.f32 %v4281, %v4369
        %v4371 = vpop.f32.mrf.mxu0
        %v4372 = vadd.f32 %v4283, %v4371
        %4373 = vmatmul.bf16.gmra.mxu0 %v3325
        %v4374 = vpop.f32.mrf.mxu0
        %v4375 = vadd.f32 %v4286, %v4374
        %v4376 = vpop.f32.mrf.mxu0
        %v4377 = vadd.f32 %v4288, %v4376
        %4378 = vmatmul.bf16.gmra.mxu0 %v3334
        %v4379 = vpop.f32.mrf.mxu0
        %v4380 = vadd.f32 %v4291, %v4379
        %v4381 = vpop.f32.mrf.mxu0
        %v4382 = vadd.f32 %v4293, %v4381
        %4383 = vmatmul.bf16.gmra.mxu0 %v3343
        %v4384 = vpop.f32.mrf.mxu0
        %v4385 = vadd.f32 %v4296, %v4384
        %v4386 = vpop.f32.mrf.mxu0
        %v4387 = vadd.f32 %v4298, %v4386
        %4388 = vmatmul.bf16.gmra.mxu0 %v3352
        %v4389 = vpop.f32.mrf.mxu0
        %v4390 = vadd.f32 %v4301, %v4389
        %v4391 = vpop.f32.mrf.mxu0
        %v4392 = vadd.f32 %v4303, %v4391
        %4393 = vmatmul.bf16.gmra.mxu0 %v3361
        %v4394 = vpop.f32.mrf.mxu0
        %v4395 = vadd.f32 %v4306, %v4394
        %v4396 = vpop.f32.mrf.mxu0
        %v4397 = vadd.f32 %v4308, %v4396
        %4398 = vmatmul.bf16.gmra.mxu0 %v3370
        %v4399 = vpop.f32.mrf.mxu0
        %v4400 = vadd.f32 %v4311, %v4399
        %v4401 = vpop.f32.mrf.mxu0
        %v4402 = vadd.f32 %v4313, %v4401
        %4403 = vmatmul.bf16.gmra.mxu0 %v3379
        %v4404 = vpop.f32.mrf.mxu0
        %v4405 = vadd.f32 %v4316, %v4404
        %v4406 = vpop.f32.mrf.mxu0
        %v4407 = vadd.f32 %v4318, %v4406
        %4408 = vmatmul.bf16.gmra.mxu0 %v3388
        %v4409 = vpop.f32.mrf.mxu0
        %v4410 = vadd.f32 %v4321, %v4409
        %v4411 = vpop.f32.mrf.mxu0
        %v4412 = vadd.f32 %v4323, %v4411
        %4413 = vdwg.mxu0
        %4414 = vmatpush.bf16.msra.mxu0 %v3872
        %4415 = vmatpush.bf16.msra.mxu0 %v3871
        %4416 = vmatpush.bf16.msra.mxu0 %v3870
        %4417 = vmatpush.bf16.msra.mxu0 %v3869
        %4418 = vmatpush.bf16.msra.mxu0 %v3868
        %4419 = vmatpush.bf16.msra.mxu0 %v3867
        %4420 = vmatpush.bf16.msra.mxu0 %v3866
        %4421 = vmatpush.bf16.msra.mxu0 %v3865
        %4422 = vmatmul.bf16.gmra.mxu0 %v3254
        %v4423 = vpop.f32.mrf.mxu0
        %v4424 = vadd.f32 %v4335, %v4423
        %v4425 = vpop.f32.mrf.mxu0
        %v4426 = vadd.f32 %v4337, %v4425
        %4427 = vmatmul.bf16.gmra.mxu0 %v3263
        %v4428 = vpop.f32.mrf.mxu0
        %v4429 = vadd.f32 %v4340, %v4428
        %v4430 = vpop.f32.mrf.mxu0
        %v4431 = vadd.f32 %v4342, %v4430
        %4432 = vmatmul.bf16.gmra.mxu0 %v3272
        %v4433 = vpop.f32.mrf.mxu0
        %v4434 = vadd.f32 %v4345, %v4433
        %v4435 = vpop.f32.mrf.mxu0
        %v4436 = vadd.f32 %v4347, %v4435
        %4437 = vmatmul.bf16.gmra.mxu0 %v3281
        %v4438 = vpop.f32.mrf.mxu0
        %v4439 = vadd.f32 %v4350, %v4438
        %v4440 = vpop.f32.mrf.mxu0
        %v4441 = vadd.f32 %v4352, %v4440
        %4442 = vmatmul.bf16.gmra.mxu0 %v3290
        %v4443 = vpop.f32.mrf.mxu0
        %v4444 = vadd.f32 %v4355, %v4443
        %v4445 = vpop.f32.mrf.mxu0
        %v4446 = vadd.f32 %v4357, %v4445
        %4447 = vmatmul.bf16.gmra.mxu0 %v3299
        %v4448 = vpop.f32.mrf.mxu0
        %v4449 = vadd.f32 %v4360, %v4448
        %v4450 = vpop.f32.mrf.mxu0
        %v4451 = vadd.f32 %v4362, %v4450
        %4452 = vmatmul.bf16.gmra.mxu0 %v3308
        %v4453 = vpop.f32.mrf.mxu0
        %v4454 = vadd.f32 %v4365, %v4453
        %v4455 = vpop.f32.mrf.mxu0
        %v4456 = vadd.f32 %v4367, %v4455
        %4457 = vmatmul.bf16.gmra.mxu0 %v3317
        %v4458 = vpop.f32.mrf.mxu0
        %v4459 = vadd.f32 %v4370, %v4458
        %v4460 = vpop.f32.mrf.mxu0
        %v4461 = vadd.f32 %v4372, %v4460
        %4462 = vmatmul.bf16.gmra.mxu0 %v3326
        %v4463 = vpop.f32.mrf.mxu0
        %v4464 = vadd.f32 %v4375, %v4463
        %v4465 = vpop.f32.mrf.mxu0
        %v4466 = vadd.f32 %v4377, %v4465
        %4467 = vmatmul.bf16.gmra.mxu0 %v3335
        %v4468 = vpop.f32.mrf.mxu0
        %v4469 = vadd.f32 %v4380, %v4468
        %v4470 = vpop.f32.mrf.mxu0
        %v4471 = vadd.f32 %v4382, %v4470
        %4472 = vmatmul.bf16.gmra.mxu0 %v3344
        %v4473 = vpop.f32.mrf.mxu0
        %v4474 = vadd.f32 %v4385, %v4473
        %v4475 = vpop.f32.mrf.mxu0
        %v4476 = vadd.f32 %v4387, %v4475
        %4477 = vmatmul.bf16.gmra.mxu0 %v3353
        %v4478 = vpop.f32.mrf.mxu0
        %v4479 = vadd.f32 %v4390, %v4478
        %v4480 = vpop.f32.mrf.mxu0
        %v4481 = vadd.f32 %v4392, %v4480
        %4482 = vmatmul.bf16.gmra.mxu0 %v3362
        %v4483 = vpop.f32.mrf.mxu0
        %v4484 = vadd.f32 %v4395, %v4483
        %v4485 = vpop.f32.mrf.mxu0
        %v4486 = vadd.f32 %v4397, %v4485
        %4487 = vmatmul.bf16.gmra.mxu0 %v3371
        %v4488 = vpop.f32.mrf.mxu0
        %v4489 = vadd.f32 %v4400, %v4488
        %v4490 = vpop.f32.mrf.mxu0
        %v4491 = vadd.f32 %v4402, %v4490
        %4492 = vmatmul.bf16.gmra.mxu0 %v3380
        %v4493 = vpop.f32.mrf.mxu0
        %v4494 = vadd.f32 %v4405, %v4493
        %v4495 = vpop.f32.mrf.mxu0
        %v4496 = vadd.f32 %v4407, %v4495
        %4497 = vmatmul.bf16.gmra.mxu0 %v3389
        %v4498 = vpop.f32.mrf.mxu0
        %v4499 = vadd.f32 %v4410, %v4498
        %v4500 = vpop.f32.mrf.mxu0
        %v4501 = vadd.f32 %v4412, %v4500
        %4502 = vdwg.mxu0
        %4503 = vmatpush.bf16.msra.mxu0 %v3880
        %4504 = vmatpush.bf16.msra.mxu0 %v3879
        %4505 = vmatpush.bf16.msra.mxu0 %v3878
        %4506 = vmatpush.bf16.msra.mxu0 %v3877
        %4507 = vmatpush.bf16.msra.mxu0 %v3876
        %4508 = vmatpush.bf16.msra.mxu0 %v3875
        %4509 = vmatpush.bf16.msra.mxu0 %v3874
        %4510 = vmatpush.bf16.msra.mxu0 %v3873
        %4511 = vmatmul.bf16.gmra.mxu0 %v3255
        %v4512 = vpop.f32.mrf.mxu0
        %v4513 = vadd.f32 %v4424, %v4512
        %v4514 = vpop.f32.mrf.mxu0
        %v4515 = vadd.f32 %v4426, %v4514
        %4516 = vmatmul.bf16.gmra.mxu0 %v3264
        %v4517 = vpop.f32.mrf.mxu0
        %v4518 = vadd.f32 %v4429, %v4517
        %v4519 = vpop.f32.mrf.mxu0
        %v4520 = vadd.f32 %v4431, %v4519
        %4521 = vmatmul.bf16.gmra.mxu0 %v3273
        %v4522 = vpop.f32.mrf.mxu0
        %v4523 = vadd.f32 %v4434, %v4522
        %v4524 = vpop.f32.mrf.mxu0
        %v4525 = vadd.f32 %v4436, %v4524
        %4526 = vmatmul.bf16.gmra.mxu0 %v3282
        %v4527 = vpop.f32.mrf.mxu0
        %v4528 = vadd.f32 %v4439, %v4527
        %v4529 = vpop.f32.mrf.mxu0
        %v4530 = vadd.f32 %v4441, %v4529
        %4531 = vmatmul.bf16.gmra.mxu0 %v3291
        %v4532 = vpop.f32.mrf.mxu0
        %v4533 = vadd.f32 %v4444, %v4532
        %v4534 = vpop.f32.mrf.mxu0
        %v4535 = vadd.f32 %v4446, %v4534
        %4536 = vmatmul.bf16.gmra.mxu0 %v3300
        %v4537 = vpop.f32.mrf.mxu0
        %v4538 = vadd.f32 %v4449, %v4537
        %v4539 = vpop.f32.mrf.mxu0
        %v4540 = vadd.f32 %v4451, %v4539
        %4541 = vmatmul.bf16.gmra.mxu0 %v3309
        %v4542 = vpop.f32.mrf.mxu0
        %v4543 = vadd.f32 %v4454, %v4542
        %v4544 = vpop.f32.mrf.mxu0
        %v4545 = vadd.f32 %v4456, %v4544
        %4546 = vmatmul.bf16.gmra.mxu0 %v3318
        %v4547 = vpop.f32.mrf.mxu0
        %v4548 = vadd.f32 %v4459, %v4547
        %v4549 = vpop.f32.mrf.mxu0
        %v4550 = vadd.f32 %v4461, %v4549
        %4551 = vmatmul.bf16.gmra.mxu0 %v3327
        %v4552 = vpop.f32.mrf.mxu0
        %v4553 = vadd.f32 %v4464, %v4552
        %v4554 = vpop.f32.mrf.mxu0
        %v4555 = vadd.f32 %v4466, %v4554
        %4556 = vmatmul.bf16.gmra.mxu0 %v3336
        %v4557 = vpop.f32.mrf.mxu0
        %v4558 = vadd.f32 %v4469, %v4557
        %v4559 = vpop.f32.mrf.mxu0
        %v4560 = vadd.f32 %v4471, %v4559
        %4561 = vmatmul.bf16.gmra.mxu0 %v3345
        %v4562 = vpop.f32.mrf.mxu0
        %v4563 = vadd.f32 %v4474, %v4562
        %v4564 = vpop.f32.mrf.mxu0
        %v4565 = vadd.f32 %v4476, %v4564
        %4566 = vmatmul.bf16.gmra.mxu0 %v3354
        %v4567 = vpop.f32.mrf.mxu0
        %v4568 = vadd.f32 %v4479, %v4567
        %v4569 = vpop.f32.mrf.mxu0
        %v4570 = vadd.f32 %v4481, %v4569
        %4571 = vmatmul.bf16.gmra.mxu0 %v3363
        %v4572 = vpop.f32.mrf.mxu0
        %v4573 = vadd.f32 %v4484, %v4572
        %v4574 = vpop.f32.mrf.mxu0
        %v4575 = vadd.f32 %v4486, %v4574
        %4576 = vmatmul.bf16.gmra.mxu0 %v3372
        %v4577 = vpop.f32.mrf.mxu0
        %v4578 = vadd.f32 %v4489, %v4577
        %v4579 = vpop.f32.mrf.mxu0
        %v4580 = vadd.f32 %v4491, %v4579
        %4581 = vmatmul.bf16.gmra.mxu0 %v3381
        %v4582 = vpop.f32.mrf.mxu0
        %v4583 = vadd.f32 %v4494, %v4582
        %v4584 = vpop.f32.mrf.mxu0
        %v4585 = vadd.f32 %v4496, %v4584
        %4586 = vmatmul.bf16.gmra.mxu0 %v3390
        %v4587 = vpop.f32.mrf.mxu0
        %v4588 = vadd.f32 %v4499, %v4587
        %v4589 = vpop.f32.mrf.mxu0
        %v4590 = vadd.f32 %v4501, %v4589
        %4591 = vdwg.mxu0
        %4592 = vmatpush.bf16.msra.mxu0 %v3888
        %4593 = vmatpush.bf16.msra.mxu0 %v3887
        %4594 = vmatpush.bf16.msra.mxu0 %v3886
        %4595 = vmatpush.bf16.msra.mxu0 %v3885
        %4596 = vmatpush.bf16.msra.mxu0 %v3884
        %4597 = vmatpush.bf16.msra.mxu0 %v3883
        %4598 = vmatpush.bf16.msra.mxu0 %v3882
        %4599 = vmatpush.bf16.msra.mxu0 %v3881
        %4600 = vmatmul.bf16.gmra.mxu0 %v3256
        %v4601 = vpop.f32.mrf.mxu0
        %v4602 = vadd.f32 %v4513, %v4601
        %v4603 = vpop.f32.mrf.mxu0
        %v4604 = vadd.f32 %v4515, %v4603
        %4605 = vmatmul.bf16.gmra.mxu0 %v3265
        %v4606 = vpop.f32.mrf.mxu0
        %v4607 = vadd.f32 %v4518, %v4606
        %v4608 = vpop.f32.mrf.mxu0
        %v4609 = vadd.f32 %v4520, %v4608
        %4610 = vmatmul.bf16.gmra.mxu0 %v3274
        %v4611 = vpop.f32.mrf.mxu0
        %v4612 = vadd.f32 %v4523, %v4611
        %v4613 = vpop.f32.mrf.mxu0
        %v4614 = vadd.f32 %v4525, %v4613
        %4615 = vmatmul.bf16.gmra.mxu0 %v3283
        %v4616 = vpop.f32.mrf.mxu0
        %v4617 = vadd.f32 %v4528, %v4616
        %v4618 = vpop.f32.mrf.mxu0
        %v4619 = vadd.f32 %v4530, %v4618
        %4620 = vmatmul.bf16.gmra.mxu0 %v3292
        %v4621 = vpop.f32.mrf.mxu0
        %v4622 = vadd.f32 %v4533, %v4621
        %v4623 = vpop.f32.mrf.mxu0
        %v4624 = vadd.f32 %v4535, %v4623
        %4625 = vmatmul.bf16.gmra.mxu0 %v3301
        %v4626 = vpop.f32.mrf.mxu0
        %v4627 = vadd.f32 %v4538, %v4626
        %v4628 = vpop.f32.mrf.mxu0
        %v4629 = vadd.f32 %v4540, %v4628
        %4630 = vmatmul.bf16.gmra.mxu0 %v3310
        %v4631 = vpop.f32.mrf.mxu0
        %v4632 = vadd.f32 %v4543, %v4631
        %v4633 = vpop.f32.mrf.mxu0
        %v4634 = vadd.f32 %v4545, %v4633
        %4635 = vmatmul.bf16.gmra.mxu0 %v3319
        %v4636 = vpop.f32.mrf.mxu0
        %v4637 = vadd.f32 %v4548, %v4636
        %v4638 = vpop.f32.mrf.mxu0
        %v4639 = vadd.f32 %v4550, %v4638
        %4640 = vmatmul.bf16.gmra.mxu0 %v3328
        %v4641 = vpop.f32.mrf.mxu0
        %v4642 = vadd.f32 %v4553, %v4641
        %v4643 = vpop.f32.mrf.mxu0
        %v4644 = vadd.f32 %v4555, %v4643
        %4645 = vmatmul.bf16.gmra.mxu0 %v3337
        %v4646 = vpop.f32.mrf.mxu0
        %v4647 = vadd.f32 %v4558, %v4646
        %v4648 = vpop.f32.mrf.mxu0
        %v4649 = vadd.f32 %v4560, %v4648
        %4650 = vmatmul.bf16.gmra.mxu0 %v3346
        %v4651 = vpop.f32.mrf.mxu0
        %v4652 = vadd.f32 %v4563, %v4651
        %v4653 = vpop.f32.mrf.mxu0
        %v4654 = vadd.f32 %v4565, %v4653
        %4655 = vmatmul.bf16.gmra.mxu0 %v3355
        %v4656 = vpop.f32.mrf.mxu0
        %v4657 = vadd.f32 %v4568, %v4656
        %v4658 = vpop.f32.mrf.mxu0
        %v4659 = vadd.f32 %v4570, %v4658
        %4660 = vmatmul.bf16.gmra.mxu0 %v3364
        %v4661 = vpop.f32.mrf.mxu0
        %v4662 = vadd.f32 %v4573, %v4661
        %v4663 = vpop.f32.mrf.mxu0
        %v4664 = vadd.f32 %v4575, %v4663
        %4665 = vmatmul.bf16.gmra.mxu0 %v3373
        %v4666 = vpop.f32.mrf.mxu0
        %v4667 = vadd.f32 %v4578, %v4666
        %v4668 = vpop.f32.mrf.mxu0
        %v4669 = vadd.f32 %v4580, %v4668
        %4670 = vmatmul.bf16.gmra.mxu0 %v3382
        %v4671 = vpop.f32.mrf.mxu0
        %v4672 = vadd.f32 %v4583, %v4671
        %v4673 = vpop.f32.mrf.mxu0
        %v4674 = vadd.f32 %v4585, %v4673
        %4675 = vmatmul.bf16.gmra.mxu0 %v3391
        %v4676 = vpop.f32.mrf.mxu0
        %v4677 = vadd.f32 %v4588, %v4676
        %v4678 = vpop.f32.mrf.mxu0
        %v4679 = vadd.f32 %v4590, %v4678
        %4680 = vdwg.mxu0
        %4681 = vmatpush.bf16.msra.mxu0 %v3896
        %4682 = vmatpush.bf16.msra.mxu0 %v3895
        %4683 = vmatpush.bf16.msra.mxu0 %v3894
        %4684 = vmatpush.bf16.msra.mxu0 %v3893
        %4685 = vmatpush.bf16.msra.mxu0 %v3892
        %4686 = vmatpush.bf16.msra.mxu0 %v3891
        %4687 = vmatpush.bf16.msra.mxu0 %v3890
        %4688 = vmatpush.bf16.msra.mxu0 %v3889
        %4689 = vmatmul.bf16.gmra.mxu0 %v3257
        %v4690 = vpop.f32.mrf.mxu0
        %v4691 = vadd.f32 %v4602, %v4690
        %v4692 = vpop.f32.mrf.mxu0
        %v4693 = vadd.f32 %v4604, %v4692
        %4694 = vmatmul.bf16.gmra.mxu0 %v3266
        %v4695 = vpop.f32.mrf.mxu0
        %v4696 = vadd.f32 %v4607, %v4695
        %v4697 = vpop.f32.mrf.mxu0
        %v4698 = vadd.f32 %v4609, %v4697
        %4699 = vmatmul.bf16.gmra.mxu0 %v3275
        %v4700 = vpop.f32.mrf.mxu0
        %v4701 = vadd.f32 %v4612, %v4700
        %v4702 = vpop.f32.mrf.mxu0
        %v4703 = vadd.f32 %v4614, %v4702
        %4704 = vmatmul.bf16.gmra.mxu0 %v3284
        %v4705 = vpop.f32.mrf.mxu0
        %v4706 = vadd.f32 %v4617, %v4705
        %v4707 = vpop.f32.mrf.mxu0
        %v4708 = vadd.f32 %v4619, %v4707
        %4709 = vmatmul.bf16.gmra.mxu0 %v3293
        %v4710 = vpop.f32.mrf.mxu0
        %v4711 = vadd.f32 %v4622, %v4710
        %v4712 = vpop.f32.mrf.mxu0
        %v4713 = vadd.f32 %v4624, %v4712
        %4714 = vmatmul.bf16.gmra.mxu0 %v3302
        %v4715 = vpop.f32.mrf.mxu0
        %v4716 = vadd.f32 %v4627, %v4715
        %v4717 = vpop.f32.mrf.mxu0
        %v4718 = vadd.f32 %v4629, %v4717
        %4719 = vmatmul.bf16.gmra.mxu0 %v3311
        %v4720 = vpop.f32.mrf.mxu0
        %v4721 = vadd.f32 %v4632, %v4720
        %v4722 = vpop.f32.mrf.mxu0
        %v4723 = vadd.f32 %v4634, %v4722
        %4724 = vmatmul.bf16.gmra.mxu0 %v3320
        %v4725 = vpop.f32.mrf.mxu0
        %v4726 = vadd.f32 %v4637, %v4725
        %v4727 = vpop.f32.mrf.mxu0
        %v4728 = vadd.f32 %v4639, %v4727
        %4729 = vmatmul.bf16.gmra.mxu0 %v3329
        %v4730 = vpop.f32.mrf.mxu0
        %v4731 = vadd.f32 %v4642, %v4730
        %v4732 = vpop.f32.mrf.mxu0
        %v4733 = vadd.f32 %v4644, %v4732
        %4734 = vmatmul.bf16.gmra.mxu0 %v3338
        %v4735 = vpop.f32.mrf.mxu0
        %v4736 = vadd.f32 %v4647, %v4735
        %v4737 = vpop.f32.mrf.mxu0
        %v4738 = vadd.f32 %v4649, %v4737
        %4739 = vmatmul.bf16.gmra.mxu0 %v3347
        %v4740 = vpop.f32.mrf.mxu0
        %v4741 = vadd.f32 %v4652, %v4740
        %v4742 = vpop.f32.mrf.mxu0
        %v4743 = vadd.f32 %v4654, %v4742
        %4744 = vmatmul.bf16.gmra.mxu0 %v3356
        %v4745 = vpop.f32.mrf.mxu0
        %v4746 = vadd.f32 %v4657, %v4745
        %v4747 = vpop.f32.mrf.mxu0
        %v4748 = vadd.f32 %v4659, %v4747
        %4749 = vmatmul.bf16.gmra.mxu0 %v3365
        %v4750 = vpop.f32.mrf.mxu0
        %v4751 = vadd.f32 %v4662, %v4750
        %v4752 = vpop.f32.mrf.mxu0
        %v4753 = vadd.f32 %v4664, %v4752
        %4754 = vmatmul.bf16.gmra.mxu0 %v3374
        %v4755 = vpop.f32.mrf.mxu0
        %v4756 = vadd.f32 %v4667, %v4755
        %v4757 = vpop.f32.mrf.mxu0
        %v4758 = vadd.f32 %v4669, %v4757
        %4759 = vmatmul.bf16.gmra.mxu0 %v3383
        %v4760 = vpop.f32.mrf.mxu0
        %v4761 = vadd.f32 %v4672, %v4760
        %v4762 = vpop.f32.mrf.mxu0
        %v4763 = vadd.f32 %v4674, %v4762
        %4764 = vmatmul.bf16.gmra.mxu0 %v3392
        %v4765 = vpop.f32.mrf.mxu0
        %v4766 = vadd.f32 %v4677, %v4765
        %v4767 = vpop.f32.mrf.mxu0
        %v4768 = vadd.f32 %v4679, %v4767
        %4769 = vdwg.mxu0
        %v4770 = vmax.f32 %v4691, 0.0
        %v4771 = vmax.f32 %v4693, 0.0
        %v4772 = vmax.f32 %v4696, 0.0
        %v4773 = vmax.f32 %v4698, 0.0
        %v4774 = vmax.f32 %v4701, 0.0
        %v4775 = vmax.f32 %v4703, 0.0
        %v4776 = vmax.f32 %v4706, 0.0
        %v4777 = vmax.f32 %v4708, 0.0
        %v4778 = vmax.f32 %v4711, 0.0
        %v4779 = vmax.f32 %v4713, 0.0
        %v4780 = vmax.f32 %v4716, 0.0
        %v4781 = vmax.f32 %v4718, 0.0
        %v4782 = vmax.f32 %v4721, 0.0
        %v4783 = vmax.f32 %v4723, 0.0
        %v4784 = vmax.f32 %v4726, 0.0
        %v4785 = vmax.f32 %v4728, 0.0
        %v4786 = vmax.f32 %v4731, 0.0
        %v4787 = vmax.f32 %v4733, 0.0
        %v4788 = vmax.f32 %v4736, 0.0
        %v4789 = vmax.f32 %v4738, 0.0
        %v4790 = vmax.f32 %v4741, 0.0
        %v4791 = vmax.f32 %v4743, 0.0
        %v4792 = vmax.f32 %v4746, 0.0
        %v4793 = vmax.f32 %v4748, 0.0
        %v4794 = vmax.f32 %v4751, 0.0
        %v4795 = vmax.f32 %v4753, 0.0
        %v4796 = vmax.f32 %v4756, 0.0
        %v4797 = vmax.f32 %v4758, 0.0
        %v4798 = vmax.f32 %v4761, 0.0
        %v4799 = vmax.f32 %v4763, 0.0
        %v4800 = vmax.f32 %v4766, 0.0
        %v4801 = vmax.f32 %v4768, 0.0
        %v4802 = vpack.c.bf16 %v4771, %v4770
        %v4803 = vpack.c.bf16 %v4773, %v4772
        %v4804 = vpack.c.bf16 %v4775, %v4774
        %v4805 = vpack.c.bf16 %v4777, %v4776
        %v4806 = vpack.c.bf16 %v4779, %v4778
        %v4807 = vpack.c.bf16 %v4781, %v4780
        %v4808 = vpack.c.bf16 %v4783, %v4782
        %v4809 = vpack.c.bf16 %v4785, %v4784
        %v4810 = vpack.c.bf16 %v4787, %v4786
        %v4811 = vpack.c.bf16 %v4789, %v4788
        %v4812 = vpack.c.bf16 %v4791, %v4790
        %v4813 = vpack.c.bf16 %v4793, %v4792
        %v4814 = vpack.c.bf16 %v4795, %v4794
        %v4815 = vpack.c.bf16 %v4797, %v4796
        %v4816 = vpack.c.bf16 %v4799, %v4798
        %v4817 = vpack.c.bf16 %v4801, %v4800
        %v4818 = vld [vmem:[#allocation12] sm:$0xff]
        %v4819 = vld [vmem:[#allocation12 + $0x8] sm:$0xff]
        %v4820 = vld [vmem:[#allocation12 + $0x10] sm:$0xff]
        %v4821 = vld [vmem:[#allocation12 + $0x18] sm:$0xff]
        %v4822 = vld [vmem:[#allocation12 + $0x20] sm:$0xff]
        %v4823 = vld [vmem:[#allocation12 + $0x28] sm:$0xff]
        %v4824 = vld [vmem:[#allocation12 + $0x30] sm:$0xff]
        %v4825 = vld [vmem:[#allocation12 + $0x38] sm:$0xff]
        %v4826 = vld [vmem:[#allocation12 + $0x40] sm:$0xff]
        %v4827 = vld [vmem:[#allocation12 + $0x48] sm:$0xff]
        %v4828 = vld [vmem:[#allocation12 + $0x50] sm:$0xff]
        %v4829 = vld [vmem:[#allocation12 + $0x58] sm:$0xff]
        %v4830 = vld [vmem:[#allocation12 + $0x60] sm:$0xff]
        %v4831 = vld [vmem:[#allocation12 + $0x68] sm:$0xff]
        %v4832 = vld [vmem:[#allocation12 + $0x70] sm:$0xff]
        %v4833 = vld [vmem:[#allocation12 + $0x78] sm:$0xff]
        %v4834 = vld [vmem:[#allocation12 + $0x80] sm:$0xff]
        %v4835 = vld [vmem:[#allocation12 + $0x88] sm:$0xff]
        %v4836 = vld [vmem:[#allocation12 + $0x90] sm:$0xff]
        %v4837 = vld [vmem:[#allocation12 + $0x98] sm:$0xff]
        %v4838 = vld [vmem:[#allocation12 + $0xa0] sm:$0xff]
        %v4839 = vld [vmem:[#allocation12 + $0xa8] sm:$0xff]
        %v4840 = vld [vmem:[#allocation12 + $0xb0] sm:$0xff]
        %v4841 = vld [vmem:[#allocation12 + $0xb8] sm:$0xff]
        %v4842 = vld [vmem:[#allocation12 + $0xc0] sm:$0xff]
        %v4843 = vld [vmem:[#allocation12 + $0xc8] sm:$0xff]
        %v4844 = vld [vmem:[#allocation12 + $0xd0] sm:$0xff]
        %v4845 = vld [vmem:[#allocation12 + $0xd8] sm:$0xff]
        %v4846 = vld [vmem:[#allocation12 + $0xe0] sm:$0xff]
        %v4847 = vld [vmem:[#allocation12 + $0xe8] sm:$0xff]
        %v4848 = vld [vmem:[#allocation12 + $0xf0] sm:$0xff]
        %v4849 = vld [vmem:[#allocation12 + $0xf8] sm:$0xff]
        %v4850 = vld [vmem:[%s6] sm:$0xf]
        %v4852 = vperm.slane %v4850, 0
        %v4853 = vperm.slane %v4850, 1
        %v4854 = vperm.slane %v4850, 2
        %v4855 = vperm.slane %v4850, 3
        %v4892 = vunpack.c.l.b16 %v4818
        %v4893 = vunpack.c.h.b16 %v4818
        %v4894 = vunpack.c.l.b16 %v4819
        %v4895 = vunpack.c.h.b16 %v4819
        %v4896 = vunpack.c.l.b16 %v4820
        %v4897 = vunpack.c.h.b16 %v4820
        %v4898 = vunpack.c.l.b16 %v4821
        %v4899 = vunpack.c.h.b16 %v4821
        %v4900 = vunpack.c.l.b16 %v4822
        %v4901 = vunpack.c.h.b16 %v4822
        %v4902 = vunpack.c.l.b16 %v4823
        %v4903 = vunpack.c.h.b16 %v4823
        %v4904 = vunpack.c.l.b16 %v4824
        %v4905 = vunpack.c.h.b16 %v4824
        %v4906 = vunpack.c.l.b16 %v4825
        %v4907 = vunpack.c.h.b16 %v4825
        %v4908 = vunpack.c.l.b16 %v4826
        %v4909 = vunpack.c.h.b16 %v4826
        %v4910 = vunpack.c.l.b16 %v4827
        %v4911 = vunpack.c.h.b16 %v4827
        %v4912 = vunpack.c.l.b16 %v4828
        %v4913 = vunpack.c.h.b16 %v4828
        %v4914 = vunpack.c.l.b16 %v4829
        %v4915 = vunpack.c.h.b16 %v4829
        %v4916 = vunpack.c.l.b16 %v4830
        %v4917 = vunpack.c.h.b16 %v4830
        %v4918 = vunpack.c.l.b16 %v4831
        %v4919 = vunpack.c.h.b16 %v4831
        %v4920 = vunpack.c.l.b16 %v4832
        %v4921 = vunpack.c.h.b16 %v4832
        %v4922 = vunpack.c.l.b16 %v4833
        %v4923 = vunpack.c.h.b16 %v4833
        %v4924 = vunpack.c.l.b16 %v4834
        %v4925 = vunpack.c.h.b16 %v4834
        %v4926 = vunpack.c.l.b16 %v4835
        %v4927 = vunpack.c.h.b16 %v4835
        %v4928 = vunpack.c.l.b16 %v4836
        %v4929 = vunpack.c.h.b16 %v4836
        %v4930 = vunpack.c.l.b16 %v4837
        %v4931 = vunpack.c.h.b16 %v4837
        %v4932 = vunpack.c.l.b16 %v4838
        %v4933 = vunpack.c.h.b16 %v4838
        %v4934 = vunpack.c.l.b16 %v4839
        %v4935 = vunpack.c.h.b16 %v4839
        %v4936 = vunpack.c.l.b16 %v4840
        %v4937 = vunpack.c.h.b16 %v4840
        %v4938 = vunpack.c.l.b16 %v4841
        %v4939 = vunpack.c.h.b16 %v4841
        %v4940 = vunpack.c.l.b16 %v4842
        %v4941 = vunpack.c.h.b16 %v4842
        %v4942 = vunpack.c.l.b16 %v4843
        %v4943 = vunpack.c.h.b16 %v4843
        %v4944 = vunpack.c.l.b16 %v4844
        %v4945 = vunpack.c.h.b16 %v4844
        %v4946 = vunpack.c.l.b16 %v4845
        %v4947 = vunpack.c.h.b16 %v4845
        %v4948 = vunpack.c.l.b16 %v4846
        %v4949 = vunpack.c.h.b16 %v4846
        %v4950 = vunpack.c.l.b16 %v4847
        %v4951 = vunpack.c.h.b16 %v4847
        %v4952 = vunpack.c.l.b16 %v4848
        %v4953 = vunpack.c.h.b16 %v4848
        %v4954 = vunpack.c.l.b16 %v4849
        %v4955 = vunpack.c.h.b16 %v4849
        %v4956 = vpack.c.b16 %v4896, %v4892
        %v4957 = vpack.c.b16 %v4897, %v4893
        %v4958 = vpack.c.b16 %v4898, %v4894
        %v4959 = vpack.c.b16 %v4899, %v4895
        %v4960 = vpack.c.b16 %v4904, %v4900
        %v4961 = vpack.c.b16 %v4905, %v4901
        %v4962 = vpack.c.b16 %v4906, %v4902
        %v4963 = vpack.c.b16 %v4907, %v4903
        %v4964 = vpack.c.b16 %v4912, %v4908
        %v4965 = vpack.c.b16 %v4913, %v4909
        %v4966 = vpack.c.b16 %v4914, %v4910
        %v4967 = vpack.c.b16 %v4915, %v4911
        %v4968 = vpack.c.b16 %v4920, %v4916
        %v4969 = vpack.c.b16 %v4921, %v4917
        %v4970 = vpack.c.b16 %v4922, %v4918
        %v4971 = vpack.c.b16 %v4923, %v4919
        %v4972 = vpack.c.b16 %v4928, %v4924
        %v4973 = vpack.c.b16 %v4929, %v4925
        %v4974 = vpack.c.b16 %v4930, %v4926
        %v4975 = vpack.c.b16 %v4931, %v4927
        %v4976 = vpack.c.b16 %v4936, %v4932
        %v4977 = vpack.c.b16 %v4937, %v4933
        %v4978 = vpack.c.b16 %v4938, %v4934
        %v4979 = vpack.c.b16 %v4939, %v4935
        %v4980 = vpack.c.b16 %v4944, %v4940
        %v4981 = vpack.c.b16 %v4945, %v4941
        %v4982 = vpack.c.b16 %v4946, %v4942
        %v4983 = vpack.c.b16 %v4947, %v4943
        %v4984 = vpack.c.b16 %v4952, %v4948
        %v4985 = vpack.c.b16 %v4953, %v4949
        %v4986 = vpack.c.b16 %v4954, %v4950
        %v4987 = vpack.c.b16 %v4955, %v4951
        %5020 = vmatpush.bf16.msra.mxu0 %v4984
        %5021 = vmatpush.bf16.msra.mxu0 %v4980
        %5022 = vmatpush.bf16.msra.mxu0 %v4976
        %5023 = vmatpush.bf16.msra.mxu0 %v4972
        %5024 = vmatpush.bf16.msra.mxu0 %v4968
        %5025 = vmatpush.bf16.msra.mxu0 %v4964
        %5026 = vmatpush.bf16.msra.mxu0 %v4960
        %5027 = vmatpush.bf16.msra.mxu0 %v4956
        %5028 = vmatmul.bf16.gmra.mxu0 %v4802
        %v5029 = vpop.f32.mrf.mxu0
        %v5030 = vadd.f32 %v4852, %v5029
        %v5031 = vpop.f32.mrf.mxu0
        %v5032 = vadd.f32 %v4852, %v5031
        %5033 = vmatmul.bf16.gmra.mxu0 %v4803
        %v5034 = vpop.f32.mrf.mxu0
        %v5035 = vadd.f32 %v4852, %v5034
        %v5036 = vpop.f32.mrf.mxu0
        %v5037 = vadd.f32 %v4852, %v5036
        %5038 = vmatmul.bf16.gmra.mxu0 %v4804
        %v5039 = vpop.f32.mrf.mxu0
        %v5040 = vadd.f32 %v4852, %v5039
        %v5041 = vpop.f32.mrf.mxu0
        %v5042 = vadd.f32 %v4852, %v5041
        %5043 = vmatmul.bf16.gmra.mxu0 %v4805
        %v5044 = vpop.f32.mrf.mxu0
        %v5045 = vadd.f32 %v4852, %v5044
        %v5046 = vpop.f32.mrf.mxu0
        %v5047 = vadd.f32 %v4852, %v5046
        %5048 = vmatmul.bf16.gmra.mxu0 %v4806
        %v5049 = vpop.f32.mrf.mxu0
        %v5050 = vadd.f32 %v4852, %v5049
        %v5051 = vpop.f32.mrf.mxu0
        %v5052 = vadd.f32 %v4852, %v5051
        %5053 = vmatmul.bf16.gmra.mxu0 %v4807
        %v5054 = vpop.f32.mrf.mxu0
        %v5055 = vadd.f32 %v4852, %v5054
        %v5056 = vpop.f32.mrf.mxu0
        %v5057 = vadd.f32 %v4852, %v5056
        %5058 = vmatmul.bf16.gmra.mxu0 %v4808
        %v5059 = vpop.f32.mrf.mxu0
        %v5060 = vadd.f32 %v4852, %v5059
        %v5061 = vpop.f32.mrf.mxu0
        %v5062 = vadd.f32 %v4852, %v5061
        %5063 = vmatmul.bf16.gmra.mxu0 %v4809
        %v5064 = vpop.f32.mrf.mxu0
        %v5065 = vadd.f32 %v4852, %v5064
        %v5066 = vpop.f32.mrf.mxu0
        %v5067 = vadd.f32 %v4852, %v5066
        %5068 = vmatmul.bf16.gmra.mxu0 %v4810
        %v5069 = vpop.f32.mrf.mxu0
        %v5070 = vadd.f32 %v4852, %v5069
        %v5071 = vpop.f32.mrf.mxu0
        %v5072 = vadd.f32 %v4852, %v5071
        %5073 = vmatmul.bf16.gmra.mxu0 %v4811
        %v5074 = vpop.f32.mrf.mxu0
        %v5075 = vadd.f32 %v4852, %v5074
        %v5076 = vpop.f32.mrf.mxu0
        %v5077 = vadd.f32 %v4852, %v5076
        %5078 = vmatmul.bf16.gmra.mxu0 %v4812
        %v5079 = vpop.f32.mrf.mxu0
        %v5080 = vadd.f32 %v4852, %v5079
        %v5081 = vpop.f32.mrf.mxu0
        %v5082 = vadd.f32 %v4852, %v5081
        %5083 = vmatmul.bf16.gmra.mxu0 %v4813
        %v5084 = vpop.f32.mrf.mxu0
        %v5085 = vadd.f32 %v4852, %v5084
        %v5086 = vpop.f32.mrf.mxu0
        %v5087 = vadd.f32 %v4852, %v5086
        %5088 = vmatmul.bf16.gmra.mxu0 %v4814
        %v5089 = vpop.f32.mrf.mxu0
        %v5090 = vadd.f32 %v4852, %v5089
        %v5091 = vpop.f32.mrf.mxu0
        %v5092 = vadd.f32 %v4852, %v5091
        %5093 = vmatmul.bf16.gmra.mxu0 %v4815
        %v5094 = vpop.f32.mrf.mxu0
        %v5095 = vadd.f32 %v4852, %v5094
        %v5096 = vpop.f32.mrf.mxu0
        %v5097 = vadd.f32 %v4852, %v5096
        %5098 = vmatmul.bf16.gmra.mxu0 %v4816
        %v5099 = vpop.f32.mrf.mxu0
        %v5100 = vadd.f32 %v4852, %v5099
        %v5101 = vpop.f32.mrf.mxu0
        %v5102 = vadd.f32 %v4852, %v5101
        %5103 = vmatmul.bf16.gmra.mxu0 %v4817
        %v5104 = vpop.f32.mrf.mxu0
        %v5105 = vadd.f32 %v4852, %v5104
        %v5106 = vpop.f32.mrf.mxu0
        %v5107 = vadd.f32 %v4852, %v5106
        %5108 = vdwg.mxu0
        %5109 = vmatpush.bf16.msra.mxu0 %v4985
        %5110 = vmatpush.bf16.msra.mxu0 %v4981
        %5111 = vmatpush.bf16.msra.mxu0 %v4977
        %5112 = vmatpush.bf16.msra.mxu0 %v4973
        %5113 = vmatpush.bf16.msra.mxu0 %v4969
        %5114 = vmatpush.bf16.msra.mxu0 %v4965
        %5115 = vmatpush.bf16.msra.mxu0 %v4961
        %5116 = vmatpush.bf16.msra.mxu0 %v4957
        %5117 = vmatmul.bf16.gmra.mxu0 %v4802
        %v5118 = vpop.f32.mrf.mxu0
        %v5119 = vadd.f32 %v4853, %v5118
        %v5120 = vpop.f32.mrf.mxu0
        %v5121 = vadd.f32 %v4853, %v5120
        %5122 = vmatmul.bf16.gmra.mxu0 %v4803
        %v5123 = vpop.f32.mrf.mxu0
        %v5124 = vadd.f32 %v4853, %v5123
        %v5125 = vpop.f32.mrf.mxu0
        %v5126 = vadd.f32 %v4853, %v5125
        %5127 = vmatmul.bf16.gmra.mxu0 %v4804
        %v5128 = vpop.f32.mrf.mxu0
        %v5129 = vadd.f32 %v4853, %v5128
        %v5130 = vpop.f32.mrf.mxu0
        %v5131 = vadd.f32 %v4853, %v5130
        %5132 = vmatmul.bf16.gmra.mxu0 %v4805
        %v5133 = vpop.f32.mrf.mxu0
        %v5134 = vadd.f32 %v4853, %v5133
        %v5135 = vpop.f32.mrf.mxu0
        %v5136 = vadd.f32 %v4853, %v5135
        %5137 = vmatmul.bf16.gmra.mxu0 %v4806
        %v5138 = vpop.f32.mrf.mxu0
        %v5139 = vadd.f32 %v4853, %v5138
        %v5140 = vpop.f32.mrf.mxu0
        %v5141 = vadd.f32 %v4853, %v5140
        %5142 = vmatmul.bf16.gmra.mxu0 %v4807
        %v5143 = vpop.f32.mrf.mxu0
        %v5144 = vadd.f32 %v4853, %v5143
        %v5145 = vpop.f32.mrf.mxu0
        %v5146 = vadd.f32 %v4853, %v5145
        %5147 = vmatmul.bf16.gmra.mxu0 %v4808
        %v5148 = vpop.f32.mrf.mxu0
        %v5149 = vadd.f32 %v4853, %v5148
        %v5150 = vpop.f32.mrf.mxu0
        %v5151 = vadd.f32 %v4853, %v5150
        %5152 = vmatmul.bf16.gmra.mxu0 %v4809
        %v5153 = vpop.f32.mrf.mxu0
        %v5154 = vadd.f32 %v4853, %v5153
        %v5155 = vpop.f32.mrf.mxu0
        %v5156 = vadd.f32 %v4853, %v5155
        %5157 = vmatmul.bf16.gmra.mxu0 %v4810
        %v5158 = vpop.f32.mrf.mxu0
        %v5159 = vadd.f32 %v4853, %v5158
        %v5160 = vpop.f32.mrf.mxu0
        %v5161 = vadd.f32 %v4853, %v5160
        %5162 = vmatmul.bf16.gmra.mxu0 %v4811
        %v5163 = vpop.f32.mrf.mxu0
        %v5164 = vadd.f32 %v4853, %v5163
        %v5165 = vpop.f32.mrf.mxu0
        %v5166 = vadd.f32 %v4853, %v5165
        %5167 = vmatmul.bf16.gmra.mxu0 %v4812
        %v5168 = vpop.f32.mrf.mxu0
        %v5169 = vadd.f32 %v4853, %v5168
        %v5170 = vpop.f32.mrf.mxu0
        %v5171 = vadd.f32 %v4853, %v5170
        %5172 = vmatmul.bf16.gmra.mxu0 %v4813
        %v5173 = vpop.f32.mrf.mxu0
        %v5174 = vadd.f32 %v4853, %v5173
        %v5175 = vpop.f32.mrf.mxu0
        %v5176 = vadd.f32 %v4853, %v5175
        %5177 = vmatmul.bf16.gmra.mxu0 %v4814
        %v5178 = vpop.f32.mrf.mxu0
        %v5179 = vadd.f32 %v4853, %v5178
        %v5180 = vpop.f32.mrf.mxu0
        %v5181 = vadd.f32 %v4853, %v5180
        %5182 = vmatmul.bf16.gmra.mxu0 %v4815
        %v5183 = vpop.f32.mrf.mxu0
        %v5184 = vadd.f32 %v4853, %v5183
        %v5185 = vpop.f32.mrf.mxu0
        %v5186 = vadd.f32 %v4853, %v5185
        %5187 = vmatmul.bf16.gmra.mxu0 %v4816
        %v5188 = vpop.f32.mrf.mxu0
        %v5189 = vadd.f32 %v4853, %v5188
        %v5190 = vpop.f32.mrf.mxu0
        %v5191 = vadd.f32 %v4853, %v5190
        %5192 = vmatmul.bf16.gmra.mxu0 %v4817
        %v5193 = vpop.f32.mrf.mxu0
        %v5194 = vadd.f32 %v4853, %v5193
        %v5195 = vpop.f32.mrf.mxu0
        %v5196 = vadd.f32 %v4853, %v5195
        %5197 = vdwg.mxu0
        %5198 = vmatpush.bf16.msra.mxu0 %v4986
        %5199 = vmatpush.bf16.msra.mxu0 %v4982
        %5200 = vmatpush.bf16.msra.mxu0 %v4978
        %5201 = vmatpush.bf16.msra.mxu0 %v4974
        %5202 = vmatpush.bf16.msra.mxu0 %v4970
        %5203 = vmatpush.bf16.msra.mxu0 %v4966
        %5204 = vmatpush.bf16.msra.mxu0 %v4962
        %5205 = vmatpush.bf16.msra.mxu0 %v4958
        %5206 = vmatmul.bf16.gmra.mxu0 %v4802
        %v5207 = vpop.f32.mrf.mxu0
        %v5208 = vadd.f32 %v4854, %v5207
        %v5209 = vpop.f32.mrf.mxu0
        %v5210 = vadd.f32 %v4854, %v5209
        %5211 = vmatmul.bf16.gmra.mxu0 %v4803
        %v5212 = vpop.f32.mrf.mxu0
        %v5213 = vadd.f32 %v4854, %v5212
        %v5214 = vpop.f32.mrf.mxu0
        %v5215 = vadd.f32 %v4854, %v5214
        %5216 = vmatmul.bf16.gmra.mxu0 %v4804
        %v5217 = vpop.f32.mrf.mxu0
        %v5218 = vadd.f32 %v4854, %v5217
        %v5219 = vpop.f32.mrf.mxu0
        %v5220 = vadd.f32 %v4854, %v5219
        %5221 = vmatmul.bf16.gmra.mxu0 %v4805
        %v5222 = vpop.f32.mrf.mxu0
        %v5223 = vadd.f32 %v4854, %v5222
        %v5224 = vpop.f32.mrf.mxu0
        %v5225 = vadd.f32 %v4854, %v5224
        %5226 = vmatmul.bf16.gmra.mxu0 %v4806
        %v5227 = vpop.f32.mrf.mxu0
        %v5228 = vadd.f32 %v4854, %v5227
        %v5229 = vpop.f32.mrf.mxu0
        %v5230 = vadd.f32 %v4854, %v5229
        %5231 = vmatmul.bf16.gmra.mxu0 %v4807
        %v5232 = vpop.f32.mrf.mxu0
        %v5233 = vadd.f32 %v4854, %v5232
        %v5234 = vpop.f32.mrf.mxu0
        %v5235 = vadd.f32 %v4854, %v5234
        %5236 = vmatmul.bf16.gmra.mxu0 %v4808
        %v5237 = vpop.f32.mrf.mxu0
        %v5238 = vadd.f32 %v4854, %v5237
        %v5239 = vpop.f32.mrf.mxu0
        %v5240 = vadd.f32 %v4854, %v5239
        %5241 = vmatmul.bf16.gmra.mxu0 %v4809
        %v5242 = vpop.f32.mrf.mxu0
        %v5243 = vadd.f32 %v4854, %v5242
        %v5244 = vpop.f32.mrf.mxu0
        %v5245 = vadd.f32 %v4854, %v5244
        %5246 = vmatmul.bf16.gmra.mxu0 %v4810
        %v5247 = vpop.f32.mrf.mxu0
        %v5248 = vadd.f32 %v4854, %v5247
        %v5249 = vpop.f32.mrf.mxu0
        %v5250 = vadd.f32 %v4854, %v5249
        %5251 = vmatmul.bf16.gmra.mxu0 %v4811
        %v5252 = vpop.f32.mrf.mxu0
        %v5253 = vadd.f32 %v4854, %v5252
        %v5254 = vpop.f32.mrf.mxu0
        %v5255 = vadd.f32 %v4854, %v5254
        %5256 = vmatmul.bf16.gmra.mxu0 %v4812
        %v5257 = vpop.f32.mrf.mxu0
        %v5258 = vadd.f32 %v4854, %v5257
        %v5259 = vpop.f32.mrf.mxu0
        %v5260 = vadd.f32 %v4854, %v5259
        %5261 = vmatmul.bf16.gmra.mxu0 %v4813
        %v5262 = vpop.f32.mrf.mxu0
        %v5263 = vadd.f32 %v4854, %v5262
        %v5264 = vpop.f32.mrf.mxu0
        %v5265 = vadd.f32 %v4854, %v5264
        %5266 = vmatmul.bf16.gmra.mxu0 %v4814
        %v5267 = vpop.f32.mrf.mxu0
        %v5268 = vadd.f32 %v4854, %v5267
        %v5269 = vpop.f32.mrf.mxu0
        %v5270 = vadd.f32 %v4854, %v5269
        %5271 = vmatmul.bf16.gmra.mxu0 %v4815
        %v5272 = vpop.f32.mrf.mxu0
        %v5273 = vadd.f32 %v4854, %v5272
        %v5274 = vpop.f32.mrf.mxu0
        %v5275 = vadd.f32 %v4854, %v5274
        %5276 = vmatmul.bf16.gmra.mxu0 %v4816
        %v5277 = vpop.f32.mrf.mxu0
        %v5278 = vadd.f32 %v4854, %v5277
        %v5279 = vpop.f32.mrf.mxu0
        %v5280 = vadd.f32 %v4854, %v5279
        %5281 = vmatmul.bf16.gmra.mxu0 %v4817
        %v5282 = vpop.f32.mrf.mxu0
        %v5283 = vadd.f32 %v4854, %v5282
        %v5284 = vpop.f32.mrf.mxu0
        %v5285 = vadd.f32 %v4854, %v5284
        %5286 = vdwg.mxu0
        %5287 = vmatpush.bf16.msra.mxu0 %v4987
        %5288 = vmatpush.bf16.msra.mxu0 %v4983
        %5289 = vmatpush.bf16.msra.mxu0 %v4979
        %5290 = vmatpush.bf16.msra.mxu0 %v4975
        %5291 = vmatpush.bf16.msra.mxu0 %v4971
        %5292 = vmatpush.bf16.msra.mxu0 %v4967
        %5293 = vmatpush.bf16.msra.mxu0 %v4963
        %5294 = vmatpush.bf16.msra.mxu0 %v4959
        %5295 = vmatmul.bf16.gmra.mxu0 %v4802
        %v5296 = vpop.f32.mrf.mxu0
        %v5297 = vadd.f32 %v4855, %v5296
        %v5298 = vpop.f32.mrf.mxu0
        %v5299 = vadd.f32 %v4855, %v5298
        %5300 = vmatmul.bf16.gmra.mxu0 %v4803
        %v5301 = vpop.f32.mrf.mxu0
        %v5302 = vadd.f32 %v4855, %v5301
        %v5303 = vpop.f32.mrf.mxu0
        %v5304 = vadd.f32 %v4855, %v5303
        %5305 = vmatmul.bf16.gmra.mxu0 %v4804
        %v5306 = vpop.f32.mrf.mxu0
        %v5307 = vadd.f32 %v4855, %v5306
        %v5308 = vpop.f32.mrf.mxu0
        %v5309 = vadd.f32 %v4855, %v5308
        %5310 = vmatmul.bf16.gmra.mxu0 %v4805
        %v5311 = vpop.f32.mrf.mxu0
        %v5312 = vadd.f32 %v4855, %v5311
        %v5313 = vpop.f32.mrf.mxu0
        %v5314 = vadd.f32 %v4855, %v5313
        %5315 = vmatmul.bf16.gmra.mxu0 %v4806
        %v5316 = vpop.f32.mrf.mxu0
        %v5317 = vadd.f32 %v4855, %v5316
        %v5318 = vpop.f32.mrf.mxu0
        %v5319 = vadd.f32 %v4855, %v5318
        %5320 = vmatmul.bf16.gmra.mxu0 %v4807
        %v5321 = vpop.f32.mrf.mxu0
        %v5322 = vadd.f32 %v4855, %v5321
        %v5323 = vpop.f32.mrf.mxu0
        %v5324 = vadd.f32 %v4855, %v5323
        %5325 = vmatmul.bf16.gmra.mxu0 %v4808
        %v5326 = vpop.f32.mrf.mxu0
        %v5327 = vadd.f32 %v4855, %v5326
        %v5328 = vpop.f32.mrf.mxu0
        %v5329 = vadd.f32 %v4855, %v5328
        %5330 = vmatmul.bf16.gmra.mxu0 %v4809
        %v5331 = vpop.f32.mrf.mxu0
        %v5332 = vadd.f32 %v4855, %v5331
        %v5333 = vpop.f32.mrf.mxu0
        %v5334 = vadd.f32 %v4855, %v5333
        %5335 = vmatmul.bf16.gmra.mxu0 %v4810
        %v5336 = vpop.f32.mrf.mxu0
        %v5337 = vadd.f32 %v4855, %v5336
        %v5338 = vpop.f32.mrf.mxu0
        %v5339 = vadd.f32 %v4855, %v5338
        %5340 = vmatmul.bf16.gmra.mxu0 %v4811
        %v5341 = vpop.f32.mrf.mxu0
        %v5342 = vadd.f32 %v4855, %v5341
        %v5343 = vpop.f32.mrf.mxu0
        %v5344 = vadd.f32 %v4855, %v5343
        %5345 = vmatmul.bf16.gmra.mxu0 %v4812
        %v5346 = vpop.f32.mrf.mxu0
        %v5347 = vadd.f32 %v4855, %v5346
        %v5348 = vpop.f32.mrf.mxu0
        %v5349 = vadd.f32 %v4855, %v5348
        %5350 = vmatmul.bf16.gmra.mxu0 %v4813
        %v5351 = vpop.f32.mrf.mxu0
        %v5352 = vadd.f32 %v4855, %v5351
        %v5353 = vpop.f32.mrf.mxu0
        %v5354 = vadd.f32 %v4855, %v5353
        %5355 = vmatmul.bf16.gmra.mxu0 %v4814
        %v5356 = vpop.f32.mrf.mxu0
        %v5357 = vadd.f32 %v4855, %v5356
        %v5358 = vpop.f32.mrf.mxu0
        %v5359 = vadd.f32 %v4855, %v5358
        %5360 = vmatmul.bf16.gmra.mxu0 %v4815
        %v5361 = vpop.f32.mrf.mxu0
        %v5362 = vadd.f32 %v4855, %v5361
        %v5363 = vpop.f32.mrf.mxu0
        %v5364 = vadd.f32 %v4855, %v5363
        %5365 = vmatmul.bf16.gmra.mxu0 %v4816
        %v5366 = vpop.f32.mrf.mxu0
        %v5367 = vadd.f32 %v4855, %v5366
        %v5368 = vpop.f32.mrf.mxu0
        %v5369 = vadd.f32 %v4855, %v5368
        %5370 = vmatmul.bf16.gmra.mxu0 %v4817
        %v5371 = vpop.f32.mrf.mxu0
        %v5372 = vadd.f32 %v4855, %v5371
        %v5373 = vpop.f32.mrf.mxu0
        %v5374 = vadd.f32 %v4855, %v5373
        %5375 = vdwg.mxu0
        %v5376 = vld [vmem:[%s311] sm:$0xff]
        %v5377 = vld [vmem:[%s311 + $0x8] sm:$0xff]
        %v5378 = vld [vmem:[%s311 + $0x10] sm:$0xff]
        %v5379 = vld [vmem:[%s311 + $0x18] sm:$0xff]
        %v5380 = vld [vmem:[%s311 + $0x20] sm:$0xff]
        %v5381 = vld [vmem:[%s311 + $0x28] sm:$0xff]
        %v5382 = vld [vmem:[%s311 + $0x30] sm:$0xff]
        %v5383 = vld [vmem:[%s311 + $0x38] sm:$0xff]
        %v5384 = vld [vmem:[%s311 + $0x40] sm:$0xff]
        %v5385 = vld [vmem:[%s311 + $0x48] sm:$0xff]
        %v5386 = vld [vmem:[%s311 + $0x50] sm:$0xff]
        %v5387 = vld [vmem:[%s311 + $0x58] sm:$0xff]
        %v5388 = vld [vmem:[%s311 + $0x60] sm:$0xff]
        %v5389 = vld [vmem:[%s311 + $0x68] sm:$0xff]
        %v5390 = vld [vmem:[%s311 + $0x70] sm:$0xff]
        %v5391 = vld [vmem:[%s311 + $0x78] sm:$0xff]
        %v5392 = vld [vmem:[%s311 + $0x80] sm:$0xff]
        %v5393 = vld [vmem:[%s311 + $0x88] sm:$0xff]
        %v5394 = vld [vmem:[%s311 + $0x90] sm:$0xff]
        %v5395 = vld [vmem:[%s311 + $0x98] sm:$0xff]
        %v5396 = vld [vmem:[%s311 + $0xa0] sm:$0xff]
        %v5397 = vld [vmem:[%s311 + $0xa8] sm:$0xff]
        %v5398 = vld [vmem:[%s311 + $0xb0] sm:$0xff]
        %v5399 = vld [vmem:[%s311 + $0xb8] sm:$0xff]
        %v5400 = vld [vmem:[%s311 + $0xc0] sm:$0xff]
        %v5401 = vld [vmem:[%s311 + $0xc8] sm:$0xff]
        %v5402 = vld [vmem:[%s311 + $0xd0] sm:$0xff]
        %v5403 = vld [vmem:[%s311 + $0xd8] sm:$0xff]
        %v5404 = vld [vmem:[%s311 + $0xe0] sm:$0xff]
        %v5405 = vld [vmem:[%s311 + $0xe8] sm:$0xff]
        %v5406 = vld [vmem:[%s311 + $0xf0] sm:$0xff]
        %v5407 = vld [vmem:[%s311 + $0xf8] sm:$0xff]
        %v5408 = vld [vmem:[%s311 + $0x100] sm:$0xff]
        %v5409 = vld [vmem:[%s311 + $0x108] sm:$0xff]
        %v5410 = vld [vmem:[%s311 + $0x110] sm:$0xff]
        %v5411 = vld [vmem:[%s311 + $0x118] sm:$0xff]
        %v5412 = vld [vmem:[%s311 + $0x120] sm:$0xff]
        %v5413 = vld [vmem:[%s311 + $0x128] sm:$0xff]
        %v5414 = vld [vmem:[%s311 + $0x130] sm:$0xff]
        %v5415 = vld [vmem:[%s311 + $0x138] sm:$0xff]
        %v5416 = vld [vmem:[%s311 + $0x140] sm:$0xff]
        %v5417 = vld [vmem:[%s311 + $0x148] sm:$0xff]
        %v5418 = vld [vmem:[%s311 + $0x150] sm:$0xff]
        %v5419 = vld [vmem:[%s311 + $0x158] sm:$0xff]
        %v5420 = vld [vmem:[%s311 + $0x160] sm:$0xff]
        %v5421 = vld [vmem:[%s311 + $0x168] sm:$0xff]
        %v5422 = vld [vmem:[%s311 + $0x170] sm:$0xff]
        %v5423 = vld [vmem:[%s311 + $0x178] sm:$0xff]
        %v5424 = vld [vmem:[%s311 + $0x180] sm:$0xff]
        %v5425 = vld [vmem:[%s311 + $0x188] sm:$0xff]
        %v5426 = vld [vmem:[%s311 + $0x190] sm:$0xff]
        %v5427 = vld [vmem:[%s311 + $0x198] sm:$0xff]
        %v5428 = vld [vmem:[%s311 + $0x1a0] sm:$0xff]
        %v5429 = vld [vmem:[%s311 + $0x1a8] sm:$0xff]
        %v5430 = vld [vmem:[%s311 + $0x1b0] sm:$0xff]
        %v5431 = vld [vmem:[%s311 + $0x1b8] sm:$0xff]
        %v5432 = vld [vmem:[%s311 + $0x1c0] sm:$0xff]
        %v5433 = vld [vmem:[%s311 + $0x1c8] sm:$0xff]
        %v5434 = vld [vmem:[%s311 + $0x1d0] sm:$0xff]
        %v5435 = vld [vmem:[%s311 + $0x1d8] sm:$0xff]
        %v5436 = vld [vmem:[%s311 + $0x1e0] sm:$0xff]
        %v5437 = vld [vmem:[%s311 + $0x1e8] sm:$0xff]
        %v5438 = vld [vmem:[%s311 + $0x1f0] sm:$0xff]
        %v5439 = vld [vmem:[%s311 + $0x1f8] sm:$0xff]
        %v5440 = vld [vmem:[%s311 + $0x200] sm:$0xff]
        %v5441 = vld [vmem:[%s311 + $0x208] sm:$0xff]
        %v5442 = vld [vmem:[%s311 + $0x210] sm:$0xff]
        %v5443 = vld [vmem:[%s311 + $0x218] sm:$0xff]
        %v5444 = vld [vmem:[%s311 + $0x220] sm:$0xff]
        %v5445 = vld [vmem:[%s311 + $0x228] sm:$0xff]
        %v5446 = vld [vmem:[%s311 + $0x230] sm:$0xff]
        %v5447 = vld [vmem:[%s311 + $0x238] sm:$0xff]
        %v5448 = vld [vmem:[%s311 + $0x240] sm:$0xff]
        %v5449 = vld [vmem:[%s311 + $0x248] sm:$0xff]
        %v5450 = vld [vmem:[%s311 + $0x250] sm:$0xff]
        %v5451 = vld [vmem:[%s311 + $0x258] sm:$0xff]
        %v5452 = vld [vmem:[%s311 + $0x260] sm:$0xff]
        %v5453 = vld [vmem:[%s311 + $0x268] sm:$0xff]
        %v5454 = vld [vmem:[%s311 + $0x270] sm:$0xff]
        %v5455 = vld [vmem:[%s311 + $0x278] sm:$0xff]
        %v5456 = vld [vmem:[%s311 + $0x280] sm:$0xff]
        %v5457 = vld [vmem:[%s311 + $0x288] sm:$0xff]
        %v5458 = vld [vmem:[%s311 + $0x290] sm:$0xff]
        %v5459 = vld [vmem:[%s311 + $0x298] sm:$0xff]
        %v5460 = vld [vmem:[%s311 + $0x2a0] sm:$0xff]
        %v5461 = vld [vmem:[%s311 + $0x2a8] sm:$0xff]
        %v5462 = vld [vmem:[%s311 + $0x2b0] sm:$0xff]
        %v5463 = vld [vmem:[%s311 + $0x2b8] sm:$0xff]
        %v5464 = vld [vmem:[%s311 + $0x2c0] sm:$0xff]
        %v5465 = vld [vmem:[%s311 + $0x2c8] sm:$0xff]
        %v5466 = vld [vmem:[%s311 + $0x2d0] sm:$0xff]
        %v5467 = vld [vmem:[%s311 + $0x2d8] sm:$0xff]
        %v5468 = vld [vmem:[%s311 + $0x2e0] sm:$0xff]
        %v5469 = vld [vmem:[%s311 + $0x2e8] sm:$0xff]
        %v5470 = vld [vmem:[%s311 + $0x2f0] sm:$0xff]
        %v5471 = vld [vmem:[%s311 + $0x2f8] sm:$0xff]
        %v5472 = vld [vmem:[%s311 + $0x300] sm:$0xff]
        %v5473 = vld [vmem:[%s311 + $0x308] sm:$0xff]
        %v5474 = vld [vmem:[%s311 + $0x310] sm:$0xff]
        %v5475 = vld [vmem:[%s311 + $0x318] sm:$0xff]
        %v5476 = vld [vmem:[%s311 + $0x320] sm:$0xff]
        %v5477 = vld [vmem:[%s311 + $0x328] sm:$0xff]
        %v5478 = vld [vmem:[%s311 + $0x330] sm:$0xff]
        %v5479 = vld [vmem:[%s311 + $0x338] sm:$0xff]
        %v5480 = vld [vmem:[%s311 + $0x340] sm:$0xff]
        %v5481 = vld [vmem:[%s311 + $0x348] sm:$0xff]
        %v5482 = vld [vmem:[%s311 + $0x350] sm:$0xff]
        %v5483 = vld [vmem:[%s311 + $0x358] sm:$0xff]
        %v5484 = vld [vmem:[%s311 + $0x360] sm:$0xff]
        %v5485 = vld [vmem:[%s311 + $0x368] sm:$0xff]
        %v5486 = vld [vmem:[%s311 + $0x370] sm:$0xff]
        %v5487 = vld [vmem:[%s311 + $0x378] sm:$0xff]
        %v5488 = vld [vmem:[%s311 + $0x380] sm:$0xff]
        %v5489 = vld [vmem:[%s311 + $0x388] sm:$0xff]
        %v5490 = vld [vmem:[%s311 + $0x390] sm:$0xff]
        %v5491 = vld [vmem:[%s311 + $0x398] sm:$0xff]
        %v5492 = vld [vmem:[%s311 + $0x3a0] sm:$0xff]
        %v5493 = vld [vmem:[%s311 + $0x3a8] sm:$0xff]
        %v5494 = vld [vmem:[%s311 + $0x3b0] sm:$0xff]
        %v5495 = vld [vmem:[%s311 + $0x3b8] sm:$0xff]
        %v5496 = vld [vmem:[%s311 + $0x3c0] sm:$0xff]
        %v5497 = vld [vmem:[%s311 + $0x3c8] sm:$0xff]
        %v5498 = vld [vmem:[%s311 + $0x3d0] sm:$0xff]
        %v5499 = vld [vmem:[%s311 + $0x3d8] sm:$0xff]
        %v5500 = vld [vmem:[%s311 + $0x3e0] sm:$0xff]
        %v5501 = vld [vmem:[%s311 + $0x3e8] sm:$0xff]
        %v5502 = vld [vmem:[%s311 + $0x3f0] sm:$0xff]
        %v5503 = vld [vmem:[%s311 + $0x3f8] sm:$0xff]
        %v5504 = vadd.f32 %v5030, %v5376
        %v5505 = vadd.f32 %v5119, %v5377
        %v5506 = vadd.f32 %v5208, %v5378
        %v5507 = vadd.f32 %v5297, %v5379
        %v5508 = vadd.f32 %v5032, %v5380
        %v5509 = vadd.f32 %v5121, %v5381
        %v5510 = vadd.f32 %v5210, %v5382
        %v5511 = vadd.f32 %v5299, %v5383
        %v5512 = vadd.f32 %v5035, %v5384
        %v5513 = vadd.f32 %v5124, %v5385
        %v5514 = vadd.f32 %v5213, %v5386
        %v5515 = vadd.f32 %v5302, %v5387
        %v5516 = vadd.f32 %v5037, %v5388
        %v5517 = vadd.f32 %v5126, %v5389
        %v5518 = vadd.f32 %v5215, %v5390
        %v5519 = vadd.f32 %v5304, %v5391
        %v5520 = vadd.f32 %v5040, %v5392
        %v5521 = vadd.f32 %v5129, %v5393
        %v5522 = vadd.f32 %v5218, %v5394
        %v5523 = vadd.f32 %v5307, %v5395
        %v5524 = vadd.f32 %v5042, %v5396
        %v5525 = vadd.f32 %v5131, %v5397
        %v5526 = vadd.f32 %v5220, %v5398
        %v5527 = vadd.f32 %v5309, %v5399
        %v5528 = vadd.f32 %v5045, %v5400
        %v5529 = vadd.f32 %v5134, %v5401
        %v5530 = vadd.f32 %v5223, %v5402
        %v5531 = vadd.f32 %v5312, %v5403
        %v5532 = vadd.f32 %v5047, %v5404
        %v5533 = vadd.f32 %v5136, %v5405
        %v5534 = vadd.f32 %v5225, %v5406
        %v5535 = vadd.f32 %v5314, %v5407
        %v5536 = vadd.f32 %v5050, %v5408
        %v5537 = vadd.f32 %v5139, %v5409
        %v5538 = vadd.f32 %v5228, %v5410
        %v5539 = vadd.f32 %v5317, %v5411
        %v5540 = vadd.f32 %v5052, %v5412
        %v5541 = vadd.f32 %v5141, %v5413
        %v5542 = vadd.f32 %v5230, %v5414
        %v5543 = vadd.f32 %v5319, %v5415
        %v5544 = vadd.f32 %v5055, %v5416
        %v5545 = vadd.f32 %v5144, %v5417
        %v5546 = vadd.f32 %v5233, %v5418
        %v5547 = vadd.f32 %v5322, %v5419
        %v5548 = vadd.f32 %v5057, %v5420
        %v5549 = vadd.f32 %v5146, %v5421
        %v5550 = vadd.f32 %v5235, %v5422
        %v5551 = vadd.f32 %v5324, %v5423
        %v5552 = vadd.f32 %v5060, %v5424
        %v5553 = vadd.f32 %v5149, %v5425
        %v5554 = vadd.f32 %v5238, %v5426
        %v5555 = vadd.f32 %v5327, %v5427
        %v5556 = vadd.f32 %v5062, %v5428
        %v5557 = vadd.f32 %v5151, %v5429
        %v5558 = vadd.f32 %v5240, %v5430
        %v5559 = vadd.f32 %v5329, %v5431
        %v5560 = vadd.f32 %v5065, %v5432
        %v5561 = vadd.f32 %v5154, %v5433
        %v5562 = vadd.f32 %v5243, %v5434
        %v5563 = vadd.f32 %v5332, %v5435
        %v5564 = vadd.f32 %v5067, %v5436
        %v5565 = vadd.f32 %v5156, %v5437
        %v5566 = vadd.f32 %v5245, %v5438
        %v5567 = vadd.f32 %v5334, %v5439
        %v5568 = vadd.f32 %v5070, %v5440
        %v5569 = vadd.f32 %v5159, %v5441
        %v5570 = vadd.f32 %v5248, %v5442
        %v5571 = vadd.f32 %v5337, %v5443
        %v5572 = vadd.f32 %v5072, %v5444
        %v5573 = vadd.f32 %v5161, %v5445
        %v5574 = vadd.f32 %v5250, %v5446
        %v5575 = vadd.f32 %v5339, %v5447
        %v5576 = vadd.f32 %v5075, %v5448
        %v5577 = vadd.f32 %v5164, %v5449
        %v5578 = vadd.f32 %v5253, %v5450
        %v5579 = vadd.f32 %v5342, %v5451
        %v5580 = vadd.f32 %v5077, %v5452
        %v5581 = vadd.f32 %v5166, %v5453
        %v5582 = vadd.f32 %v5255, %v5454
        %v5583 = vadd.f32 %v5344, %v5455
        %v5584 = vadd.f32 %v5080, %v5456
        %v5585 = vadd.f32 %v5169, %v5457
        %v5586 = vadd.f32 %v5258, %v5458
        %v5587 = vadd.f32 %v5347, %v5459
        %v5588 = vadd.f32 %v5082, %v5460
        %v5589 = vadd.f32 %v5171, %v5461
        %v5590 = vadd.f32 %v5260, %v5462
        %v5591 = vadd.f32 %v5349, %v5463
        %v5592 = vadd.f32 %v5085, %v5464
        %v5593 = vadd.f32 %v5174, %v5465
        %v5594 = vadd.f32 %v5263, %v5466
        %v5595 = vadd.f32 %v5352, %v5467
        %v5596 = vadd.f32 %v5087, %v5468
        %v5597 = vadd.f32 %v5176, %v5469
        %v5598 = vadd.f32 %v5265, %v5470
        %v5599 = vadd.f32 %v5354, %v5471
        %v5600 = vadd.f32 %v5090, %v5472
        %v5601 = vadd.f32 %v5179, %v5473
        %v5602 = vadd.f32 %v5268, %v5474
        %v5603 = vadd.f32 %v5357, %v5475
        %v5604 = vadd.f32 %v5092, %v5476
        %v5605 = vadd.f32 %v5181, %v5477
        %v5606 = vadd.f32 %v5270, %v5478
        %v5607 = vadd.f32 %v5359, %v5479
        %v5608 = vadd.f32 %v5095, %v5480
        %v5609 = vadd.f32 %v5184, %v5481
        %v5610 = vadd.f32 %v5273, %v5482
        %v5611 = vadd.f32 %v5362, %v5483
        %v5612 = vadd.f32 %v5097, %v5484
        %v5613 = vadd.f32 %v5186, %v5485
        %v5614 = vadd.f32 %v5275, %v5486
        %v5615 = vadd.f32 %v5364, %v5487
        %v5616 = vadd.f32 %v5100, %v5488
        %v5617 = vadd.f32 %v5189, %v5489
        %v5618 = vadd.f32 %v5278, %v5490
        %v5619 = vadd.f32 %v5367, %v5491
        %v5620 = vadd.f32 %v5102, %v5492
        %v5621 = vadd.f32 %v5191, %v5493
        %v5622 = vadd.f32 %v5280, %v5494
        %v5623 = vadd.f32 %v5369, %v5495
        %v5624 = vadd.f32 %v5105, %v5496
        %v5625 = vadd.f32 %v5194, %v5497
        %v5626 = vadd.f32 %v5283, %v5498
        %v5627 = vadd.f32 %v5372, %v5499
        %v5628 = vadd.f32 %v5107, %v5500
        %v5629 = vadd.f32 %v5196, %v5501
        %v5630 = vadd.f32 %v5285, %v5502
        %v5631 = vadd.f32 %v5374, %v5503
        %v5632 = vmax.f32 %v5504, 0.0
        %v5633 = vmax.f32 %v5505, 0.0
        %v5634 = vmax.f32 %v5506, 0.0
        %v5635 = vmax.f32 %v5507, 0.0
        %v5636 = vmax.f32 %v5508, 0.0
        %v5637 = vmax.f32 %v5509, 0.0
        %v5638 = vmax.f32 %v5510, 0.0
        %v5639 = vmax.f32 %v5511, 0.0
        %v5640 = vmax.f32 %v5512, 0.0
        %v5641 = vmax.f32 %v5513, 0.0
        %v5642 = vmax.f32 %v5514, 0.0
        %v5643 = vmax.f32 %v5515, 0.0
        %v5644 = vmax.f32 %v5516, 0.0
        %v5645 = vmax.f32 %v5517, 0.0
        %v5646 = vmax.f32 %v5518, 0.0
        %v5647 = vmax.f32 %v5519, 0.0
        %v5648 = vmax.f32 %v5520, 0.0
        %v5649 = vmax.f32 %v5521, 0.0
        %v5650 = vmax.f32 %v5522, 0.0
        %v5651 = vmax.f32 %v5523, 0.0
        %v5652 = vmax.f32 %v5524, 0.0
        %v5653 = vmax.f32 %v5525, 0.0
        %v5654 = vmax.f32 %v5526, 0.0
        %v5655 = vmax.f32 %v5527, 0.0
        %v5656 = vmax.f32 %v5528, 0.0
        %v5657 = vmax.f32 %v5529, 0.0
        %v5658 = vmax.f32 %v5530, 0.0
        %v5659 = vmax.f32 %v5531, 0.0
        %v5660 = vmax.f32 %v5532, 0.0
        %v5661 = vmax.f32 %v5533, 0.0
        %v5662 = vmax.f32 %v5534, 0.0
        %v5663 = vmax.f32 %v5535, 0.0
        %v5664 = vmax.f32 %v5536, 0.0
        %v5665 = vmax.f32 %v5537, 0.0
        %v5666 = vmax.f32 %v5538, 0.0
        %v5667 = vmax.f32 %v5539, 0.0
        %v5668 = vmax.f32 %v5540, 0.0
        %v5669 = vmax.f32 %v5541, 0.0
        %v5670 = vmax.f32 %v5542, 0.0
        %v5671 = vmax.f32 %v5543, 0.0
        %v5672 = vmax.f32 %v5544, 0.0
        %v5673 = vmax.f32 %v5545, 0.0
        %v5674 = vmax.f32 %v5546, 0.0
        %v5675 = vmax.f32 %v5547, 0.0
        %v5676 = vmax.f32 %v5548, 0.0
        %v5677 = vmax.f32 %v5549, 0.0
        %v5678 = vmax.f32 %v5550, 0.0
        %v5679 = vmax.f32 %v5551, 0.0
        %v5680 = vmax.f32 %v5552, 0.0
        %v5681 = vmax.f32 %v5553, 0.0
        %v5682 = vmax.f32 %v5554, 0.0
        %v5683 = vmax.f32 %v5555, 0.0
        %v5684 = vmax.f32 %v5556, 0.0
        %v5685 = vmax.f32 %v5557, 0.0
        %v5686 = vmax.f32 %v5558, 0.0
        %v5687 = vmax.f32 %v5559, 0.0
        %v5688 = vmax.f32 %v5560, 0.0
        %v5689 = vmax.f32 %v5561, 0.0
        %v5690 = vmax.f32 %v5562, 0.0
        %v5691 = vmax.f32 %v5563, 0.0
        %v5692 = vmax.f32 %v5564, 0.0
        %v5693 = vmax.f32 %v5565, 0.0
        %v5694 = vmax.f32 %v5566, 0.0
        %v5695 = vmax.f32 %v5567, 0.0
        %v5696 = vmax.f32 %v5568, 0.0
        %v5697 = vmax.f32 %v5569, 0.0
        %v5698 = vmax.f32 %v5570, 0.0
        %v5699 = vmax.f32 %v5571, 0.0
        %v5700 = vmax.f32 %v5572, 0.0
        %v5701 = vmax.f32 %v5573, 0.0
        %v5702 = vmax.f32 %v5574, 0.0
        %v5703 = vmax.f32 %v5575, 0.0
        %v5704 = vmax.f32 %v5576, 0.0
        %v5705 = vmax.f32 %v5577, 0.0
        %v5706 = vmax.f32 %v5578, 0.0
        %v5707 = vmax.f32 %v5579, 0.0
        %v5708 = vmax.f32 %v5580, 0.0
        %v5709 = vmax.f32 %v5581, 0.0
        %v5710 = vmax.f32 %v5582, 0.0
        %v5711 = vmax.f32 %v5583, 0.0
        %v5712 = vmax.f32 %v5584, 0.0
        %v5713 = vmax.f32 %v5585, 0.0
        %v5714 = vmax.f32 %v5586, 0.0
        %v5715 = vmax.f32 %v5587, 0.0
        %v5716 = vmax.f32 %v5588, 0.0
        %v5717 = vmax.f32 %v5589, 0.0
        %v5718 = vmax.f32 %v5590, 0.0
        %v5719 = vmax.f32 %v5591, 0.0
        %v5720 = vmax.f32 %v5592, 0.0
        %v5721 = vmax.f32 %v5593, 0.0
        %v5722 = vmax.f32 %v5594, 0.0
        %v5723 = vmax.f32 %v5595, 0.0
        %v5724 = vmax.f32 %v5596, 0.0
        %v5725 = vmax.f32 %v5597, 0.0
        %v5726 = vmax.f32 %v5598, 0.0
        %v5727 = vmax.f32 %v5599, 0.0
        %v5728 = vmax.f32 %v5600, 0.0
        %v5729 = vmax.f32 %v5601, 0.0
        %v5730 = vmax.f32 %v5602, 0.0
        %v5731 = vmax.f32 %v5603, 0.0
        %v5732 = vmax.f32 %v5604, 0.0
        %v5733 = vmax.f32 %v5605, 0.0
        %v5734 = vmax.f32 %v5606, 0.0
        %v5735 = vmax.f32 %v5607, 0.0
        %v5736 = vmax.f32 %v5608, 0.0
        %v5737 = vmax.f32 %v5609, 0.0
        %v5738 = vmax.f32 %v5610, 0.0
        %v5739 = vmax.f32 %v5611, 0.0
        %v5740 = vmax.f32 %v5612, 0.0
        %v5741 = vmax.f32 %v5613, 0.0
        %v5742 = vmax.f32 %v5614, 0.0
        %v5743 = vmax.f32 %v5615, 0.0
        %v5744 = vmax.f32 %v5616, 0.0
        %v5745 = vmax.f32 %v5617, 0.0
        %v5746 = vmax.f32 %v5618, 0.0
        %v5747 = vmax.f32 %v5619, 0.0
        %v5748 = vmax.f32 %v5620, 0.0
        %v5749 = vmax.f32 %v5621, 0.0
        %v5750 = vmax.f32 %v5622, 0.0
        %v5751 = vmax.f32 %v5623, 0.0
        %v5752 = vmax.f32 %v5624, 0.0
        %v5753 = vmax.f32 %v5625, 0.0
        %v5754 = vmax.f32 %v5626, 0.0
        %v5755 = vmax.f32 %v5627, 0.0
        %v5756 = vmax.f32 %v5628, 0.0
        %v5757 = vmax.f32 %v5629, 0.0
        %v5758 = vmax.f32 %v5630, 0.0
        %v5759 = vmax.f32 %v5631, 0.0
        %5760 = vst [vmem:[%s362] sm:$0xff] %v5632
        %5761 = vst [vmem:[%s362 + $0x8] sm:$0xff] %v5633
        %5762 = vst [vmem:[%s362 + $0x10] sm:$0xff] %v5634
        %5763 = vst [vmem:[%s362 + $0x18] sm:$0xff] %v5635
        %5764 = vst [vmem:[%s362 + $0x20] sm:$0xff] %v5636
        %5765 = vst [vmem:[%s362 + $0x28] sm:$0xff] %v5637
        %5766 = vst [vmem:[%s362 + $0x30] sm:$0xff] %v5638
        %5767 = vst [vmem:[%s362 + $0x38] sm:$0xff] %v5639
        %5768 = vst [vmem:[%s362 + $0x40] sm:$0xff] %v5640
        %5769 = vst [vmem:[%s362 + $0x48] sm:$0xff] %v5641
        %5770 = vst [vmem:[%s362 + $0x50] sm:$0xff] %v5642
        %5771 = vst [vmem:[%s362 + $0x58] sm:$0xff] %v5643
        %5772 = vst [vmem:[%s362 + $0x60] sm:$0xff] %v5644
        %5773 = vst [vmem:[%s362 + $0x68] sm:$0xff] %v5645
        %5774 = vst [vmem:[%s362 + $0x70] sm:$0xff] %v5646
        %5775 = vst [vmem:[%s362 + $0x78] sm:$0xff] %v5647
        %5776 = vst [vmem:[%s362 + $0x80] sm:$0xff] %v5648
        %5777 = vst [vmem:[%s362 + $0x88] sm:$0xff] %v5649
        %5778 = vst [vmem:[%s362 + $0x90] sm:$0xff] %v5650
        %5779 = vst [vmem:[%s362 + $0x98] sm:$0xff] %v5651
        %5780 = vst [vmem:[%s362 + $0xa0] sm:$0xff] %v5652
        %5781 = vst [vmem:[%s362 + $0xa8] sm:$0xff] %v5653
        %5782 = vst [vmem:[%s362 + $0xb0] sm:$0xff] %v5654
        %5783 = vst [vmem:[%s362 + $0xb8] sm:$0xff] %v5655
        %5784 = vst [vmem:[%s362 + $0xc0] sm:$0xff] %v5656
        %5785 = vst [vmem:[%s362 + $0xc8] sm:$0xff] %v5657
        %5786 = vst [vmem:[%s362 + $0xd0] sm:$0xff] %v5658
        %5787 = vst [vmem:[%s362 + $0xd8] sm:$0xff] %v5659
        %5788 = vst [vmem:[%s362 + $0xe0] sm:$0xff] %v5660
        %5789 = vst [vmem:[%s362 + $0xe8] sm:$0xff] %v5661
        %5790 = vst [vmem:[%s362 + $0xf0] sm:$0xff] %v5662
        %5791 = vst [vmem:[%s362 + $0xf8] sm:$0xff] %v5663
        %5792 = vst [vmem:[%s362 + $0x100] sm:$0xff] %v5664
        %5793 = vst [vmem:[%s362 + $0x108] sm:$0xff] %v5665
        %5794 = vst [vmem:[%s362 + $0x110] sm:$0xff] %v5666
        %5795 = vst [vmem:[%s362 + $0x118] sm:$0xff] %v5667
        %5796 = vst [vmem:[%s362 + $0x120] sm:$0xff] %v5668
        %5797 = vst [vmem:[%s362 + $0x128] sm:$0xff] %v5669
        %5798 = vst [vmem:[%s362 + $0x130] sm:$0xff] %v5670
        %5799 = vst [vmem:[%s362 + $0x138] sm:$0xff] %v5671
        %5800 = vst [vmem:[%s362 + $0x140] sm:$0xff] %v5672
        %5801 = vst [vmem:[%s362 + $0x148] sm:$0xff] %v5673
        %5802 = vst [vmem:[%s362 + $0x150] sm:$0xff] %v5674
        %5803 = vst [vmem:[%s362 + $0x158] sm:$0xff] %v5675
        %5804 = vst [vmem:[%s362 + $0x160] sm:$0xff] %v5676
        %5805 = vst [vmem:[%s362 + $0x168] sm:$0xff] %v5677
        %5806 = vst [vmem:[%s362 + $0x170] sm:$0xff] %v5678
        %5807 = vst [vmem:[%s362 + $0x178] sm:$0xff] %v5679
        %5808 = vst [vmem:[%s362 + $0x180] sm:$0xff] %v5680
        %5809 = vst [vmem:[%s362 + $0x188] sm:$0xff] %v5681
        %5810 = vst [vmem:[%s362 + $0x190] sm:$0xff] %v5682
        %5811 = vst [vmem:[%s362 + $0x198] sm:$0xff] %v5683
        %5812 = vst [vmem:[%s362 + $0x1a0] sm:$0xff] %v5684
        %5813 = vst [vmem:[%s362 + $0x1a8] sm:$0xff] %v5685
        %5814 = vst [vmem:[%s362 + $0x1b0] sm:$0xff] %v5686
        %5815 = vst [vmem:[%s362 + $0x1b8] sm:$0xff] %v5687
        %5816 = vst [vmem:[%s362 + $0x1c0] sm:$0xff] %v5688
        %5817 = vst [vmem:[%s362 + $0x1c8] sm:$0xff] %v5689
        %5818 = vst [vmem:[%s362 + $0x1d0] sm:$0xff] %v5690
        %5819 = vst [vmem:[%s362 + $0x1d8] sm:$0xff] %v5691
        %5820 = vst [vmem:[%s362 + $0x1e0] sm:$0xff] %v5692
        %5821 = vst [vmem:[%s362 + $0x1e8] sm:$0xff] %v5693
        %5822 = vst [vmem:[%s362 + $0x1f0] sm:$0xff] %v5694
        %5823 = vst [vmem:[%s362 + $0x1f8] sm:$0xff] %v5695
        %5824 = vst [vmem:[%s362 + $0x200] sm:$0xff] %v5696
        %5825 = vst [vmem:[%s362 + $0x208] sm:$0xff] %v5697
        %5826 = vst [vmem:[%s362 + $0x210] sm:$0xff] %v5698
        %5827 = vst [vmem:[%s362 + $0x218] sm:$0xff] %v5699
        %5828 = vst [vmem:[%s362 + $0x220] sm:$0xff] %v5700
        %5829 = vst [vmem:[%s362 + $0x228] sm:$0xff] %v5701
        %5830 = vst [vmem:[%s362 + $0x230] sm:$0xff] %v5702
        %5831 = vst [vmem:[%s362 + $0x238] sm:$0xff] %v5703
        %5832 = vst [vmem:[%s362 + $0x240] sm:$0xff] %v5704
        %5833 = vst [vmem:[%s362 + $0x248] sm:$0xff] %v5705
        %5834 = vst [vmem:[%s362 + $0x250] sm:$0xff] %v5706
        %5835 = vst [vmem:[%s362 + $0x258] sm:$0xff] %v5707
        %5836 = vst [vmem:[%s362 + $0x260] sm:$0xff] %v5708
        %5837 = vst [vmem:[%s362 + $0x268] sm:$0xff] %v5709
        %5838 = vst [vmem:[%s362 + $0x270] sm:$0xff] %v5710
        %5839 = vst [vmem:[%s362 + $0x278] sm:$0xff] %v5711
        %5840 = vst [vmem:[%s362 + $0x280] sm:$0xff] %v5712
        %5841 = vst [vmem:[%s362 + $0x288] sm:$0xff] %v5713
        %5842 = vst [vmem:[%s362 + $0x290] sm:$0xff] %v5714
        %5843 = vst [vmem:[%s362 + $0x298] sm:$0xff] %v5715
        %5844 = vst [vmem:[%s362 + $0x2a0] sm:$0xff] %v5716
        %5845 = vst [vmem:[%s362 + $0x2a8] sm:$0xff] %v5717
        %5846 = vst [vmem:[%s362 + $0x2b0] sm:$0xff] %v5718
        %5847 = vst [vmem:[%s362 + $0x2b8] sm:$0xff] %v5719
        %5848 = vst [vmem:[%s362 + $0x2c0] sm:$0xff] %v5720
        %5849 = vst [vmem:[%s362 + $0x2c8] sm:$0xff] %v5721
        %5850 = vst [vmem:[%s362 + $0x2d0] sm:$0xff] %v5722
        %5851 = vst [vmem:[%s362 + $0x2d8] sm:$0xff] %v5723
        %5852 = vst [vmem:[%s362 + $0x2e0] sm:$0xff] %v5724
        %5853 = vst [vmem:[%s362 + $0x2e8] sm:$0xff] %v5725
        %5854 = vst [vmem:[%s362 + $0x2f0] sm:$0xff] %v5726
        %5855 = vst [vmem:[%s362 + $0x2f8] sm:$0xff] %v5727
        %5856 = vst [vmem:[%s362 + $0x300] sm:$0xff] %v5728
        %5857 = vst [vmem:[%s362 + $0x308] sm:$0xff] %v5729
        %5858 = vst [vmem:[%s362 + $0x310] sm:$0xff] %v5730
        %5859 = vst [vmem:[%s362 + $0x318] sm:$0xff] %v5731
        %5860 = vst [vmem:[%s362 + $0x320] sm:$0xff] %v5732
        %5861 = vst [vmem:[%s362 + $0x328] sm:$0xff] %v5733
        %5862 = vst [vmem:[%s362 + $0x330] sm:$0xff] %v5734
        %5863 = vst [vmem:[%s362 + $0x338] sm:$0xff] %v5735
        %5864 = vst [vmem:[%s362 + $0x340] sm:$0xff] %v5736
        %5865 = vst [vmem:[%s362 + $0x348] sm:$0xff] %v5737
        %5866 = vst [vmem:[%s362 + $0x350] sm:$0xff] %v5738
        %5867 = vst [vmem:[%s362 + $0x358] sm:$0xff] %v5739
        %5868 = vst [vmem:[%s362 + $0x360] sm:$0xff] %v5740
        %5869 = vst [vmem:[%s362 + $0x368] sm:$0xff] %v5741
        %5870 = vst [vmem:[%s362 + $0x370] sm:$0xff] %v5742
        %5871 = vst [vmem:[%s362 + $0x378] sm:$0xff] %v5743
        %5872 = vst [vmem:[%s362 + $0x380] sm:$0xff] %v5744
        %5873 = vst [vmem:[%s362 + $0x388] sm:$0xff] %v5745
        %5874 = vst [vmem:[%s362 + $0x390] sm:$0xff] %v5746
        %5875 = vst [vmem:[%s362 + $0x398] sm:$0xff] %v5747
        %5876 = vst [vmem:[%s362 + $0x3a0] sm:$0xff] %v5748
        %5877 = vst [vmem:[%s362 + $0x3a8] sm:$0xff] %v5749
        %5878 = vst [vmem:[%s362 + $0x3b0] sm:$0xff] %v5750
        %5879 = vst [vmem:[%s362 + $0x3b8] sm:$0xff] %v5751
        %5880 = vst [vmem:[%s362 + $0x3c0] sm:$0xff] %v5752
        %5881 = vst [vmem:[%s362 + $0x3c8] sm:$0xff] %v5753
        %5882 = vst [vmem:[%s362 + $0x3d0] sm:$0xff] %v5754
        %5883 = vst [vmem:[%s362 + $0x3d8] sm:$0xff] %v5755
        %5884 = vst [vmem:[%s362 + $0x3e0] sm:$0xff] %v5756
        %5885 = vst [vmem:[%s362 + $0x3e8] sm:$0xff] %v5757
        %5886 = vst [vmem:[%s362 + $0x3f0] sm:$0xff] %v5758
        %5887 = vst [vmem:[%s362 + $0x3f8] sm:$0xff] %v5759
        %s5888 = sand.u32 %s186, 1
        %s5889 = scalar_lea.sflag [#allocation6], %s5888
        %s5890 = sand.u32 %s186, 1
        %s5891 = smul.addr %s5890, 1024
        %s5892 = scalar_lea.vmem [#allocation13], %s5891
        // Predicated region
        $region69: #{bottleneck_forward.1} parent=47 // pred_check
          %p5893 = pneg %p196
        $region70: #{bottleneck_forward.1} parent=47 // pred_check_branch
          %5895 = sbr.rel (%p5893) target = $region72
        $region71: #{bottleneck_forward.1} parent=47 // pred_region
          %5897 = vsyncadd %s5889, 0
          %s5898 = smul.addr %s26, 128
          %s5899 = smul.addr %s5898, 8
          %s5900 = scalar_lea.hbm %s7, %s5899
          %s5901 = sshll.u32 %s5892, 4
          %s5902 = int_to_ptr.vmem [resolvable:$true] %s5901
          %s5903 = sshll.u32 %s5900, 4
          %s5904 = int_to_ptr.hbm [resolvable:$true] %s5903
          %5909 = dma.vmem_to_hbm [thread:$0]  %s5902, 16384, %s5904, %s5889, 512, 512, 32
        $region72: #{bottleneck_forward.1} parent=47 // pred_fallthru
          _
      $region48: #{bottleneck_forward.1} parent=5 // pred_fallthru
        _
      %p5910 = scmp.le.s32.totalorder 2, %s21
      // Predicated region
      $region73: #{bottleneck_forward.1} parent=5 // pred_check
        %p5911 = pneg %p5910
      $region74: #{bottleneck_forward.1} parent=5 // pred_check_branch
        %5913 = sbr.rel (%p5911) target = $region76
      $region75: #{bottleneck_forward.1} parent=5 // pred_region
        %s5914 = ssub.s32 %s21, 2
        // Predicated region
        $region77: #{bottleneck_forward.1} parent=75 // pred_check
          %p5915 = pneg %p202
        $region78: #{bottleneck_forward.1} parent=75 // pred_check_branch
          %5917 = sbr.rel (%p5915) target = $region80
        $region79: #{bottleneck_forward.1} parent=75 // pred_region
          %s5918 = sand.u32 %s187, 1
          %s5919 = scalar_lea.sflag [#allocation6], %s5918
          %s5920 = sand.u32 %s187, 1
          %s5921 = smul.addr %s5920, 1024
          %s5922 = scalar_lea.vmem [#allocation13], %s5921
          %5924 = dma.done %s5919, 16384
        $region80: #{bottleneck_forward.1} parent=75 // pred_fallthru
          _
      $region76: #{bottleneck_forward.1} parent=5 // pred_fallthru
        _
    $region6: #{bottleneck_forward.1} parent=1 // loop_footer
      %s25 = sadd.s32 1, %s21
    $region7: #{bottleneck_forward.1} parent=1 // loop_footer_branch
      %20 = sbr.rel target = $region3
    $region8: #{bottleneck_forward.1} parent=1 // loop_exit
      _
    %5925 = vsyncpa [#allocation5], 1
    %s5926 = scalar_lea.sflag [#allocation5], 1
    %5927 = vsyncpa %s5926, 1
    %5928 = vsyncpa [#allocation8], 1
    %5929 = vsyncpa [#allocation11], 1
    %5930 = vsyncpa [#allocation6], 1
    %s5931 = scalar_lea.sflag [#allocation6], 1
    %5932 = vsyncpa %s5931, 1

</llo_original>
